<compile_context>
chip_gen: v7x
topology: tpu7x:2x2x1
jax: 0.10.0
libtpu: 0.0.40
codegen_flags: <defaults>
</compile_context>

<pallas_src>
import jax
import jax.numpy as jnp
from jax.experimental import pallas as pl
from jax.experimental.pallas import tpu as pltpu

NUM_LAYERS = 5
LANE = 128
NEG_INF = -1e30  # bias for padded output classes (drops out of log_softmax)


def _round_up(x, m):
    return ((x + m - 1) // m) * m


# ---------------------------------------------------------------------------
# Fused forward kernel (whole network in one pallas_call)
# ---------------------------------------------------------------------------
def _fused_kernel(adj_ref, pool_ref, x_ref, w_ref, b_ref, out_ref):
    # adj_ref : [Np, Np]      bf16   (A + I) with eps=0 self-loop folded in
    # pool_ref: [G,  Np]      bf16   one-hot global_add_pool matrix
    # x_ref   : [Np, Dp]      f32    zero-padded node features
    # w_ref   : [2L+2, Dp, Dp] bf16  stacked weights (BN folded into each w1)
    # b_ref   : [2L+2, 1,  Dp] f32   stacked biases (lin2 pad classes = -1e30)
    adj = adj_ref[...]                 # loaded once, reused by all layers
    h = x_ref[...]                     # f32, stays resident in VMEM/vregs

    for l in range(NUM_LAYERS):        # static unroll
        # GIN aggregation (eps=0): (I + A) h  -- single bf16 MXU pass
        z = jnp.dot(adj, h.astype(jnp.bfloat16),
                    preferred_element_type=jnp.float32)
        # Linear1 (BatchNorm eval folded in) + ReLU
        z = jnp.dot(z.astype(jnp.bfloat16), w_ref[2 * l],
                    preferred_element_type=jnp.float32) + b_ref[2 * l]
        z = jnp.maximum(z, 0.0)
        # Linear2 + ReLU
        z = jnp.dot(z.astype(jnp.bfloat16), w_ref[2 * l + 1],
                    preferred_element_type=jnp.float32) + b_ref[2 * l + 1]
        h = jnp.maximum(z, 0.0)

    # global_add_pool as one-hot pooling matmul: [G, Np] @ [Np, Dp]
    g = jnp.dot(pool_ref[...], h.astype(jnp.bfloat16),
                preferred_element_type=jnp.float32)
    # lin1 + ReLU   (dropout p=0.5 is identity in eval mode)
    g = jnp.dot(g.astype(jnp.bfloat16), w_ref[2 * NUM_LAYERS],
                preferred_element_type=jnp.float32) + b_ref[2 * NUM_LAYERS]
    g = jnp.maximum(g, 0.0)
    # lin2 + log_softmax (padded classes have -1e30 bias -> exp underflows to 0)
    logits = jnp.dot(g.astype(jnp.bfloat16), w_ref[2 * NUM_LAYERS + 1],
                     preferred_element_type=jnp.float32) + b_ref[2 * NUM_LAYERS + 1]
    m = jnp.max(logits, axis=-1, keepdims=True)
    s = logits - m
    lse = jnp.log(jnp.sum(jnp.exp(s), axis=-1, keepdims=True))
    out_ref[...] = s - lse


def net_forward(adj_I, pool, x_pad, w_all, b_all, out_channels):
    """Single fused pallas_call for the full Net forward (eval mode)."""
    num_graphs = pool.shape[0]
    dim_p = w_all.shape[-1]
    vmem = pl.BlockSpec(memory_space=pltpu.MemorySpace.VMEM)
    out = pl.pallas_call(
        _fused_kernel,
        out_shape=jax.ShapeDtypeStruct((num_graphs, dim_p), jnp.float32),
        in_specs=[vmem] * 5,
        out_specs=vmem,
    )(adj_I, pool, x_pad, w_all, b_all)
    return out[:, :out_channels]       # drop padded (masked) classes


# ---------------------------------------------------------------------------
# Parameter setup (deterministic, synthetic)
# ---------------------------------------------------------------------------
def linear_params(key, fan_in, fan_out):
    """PyTorch Linear init (uniform +-1/sqrt(fan_in)); weight pre-transposed [in, out]."""
    k1, k2 = jax.random.split(key)
    bound = 1.0 / float(fan_in) ** 0.5
    w = jax.random.uniform(k1, (fan_in, fan_out), jnp.float32, -bound, bound)
    b = jax.random.uniform(k2, (1, fan_out), jnp.float32, -bound, bound)
    return w, b


def bn_params(key, dim, eps=1e-5):
    """BatchNorm1d eval-mode scale/shift from (gamma, beta, running stats)."""
    k1, k2 = jax.random.split(key)
    gamma = 1.0 + 0.1 * jax.random.normal(k1, (1, dim), jnp.float32)
    beta = 0.1 * jax.random.normal(k2, (1, dim), jnp.float32)
    running_mean = jnp.zeros((1, dim), jnp.float32)
    running_var = jnp.ones((1, dim), jnp.float32)
    scale = gamma / jnp.sqrt(running_var + eps)
    shift = beta - running_mean * scale
    return scale, shift


def _pad2(w, rows, cols):
    return jnp.zeros((rows, cols), jnp.float32).at[: w.shape[0], : w.shape[1]].set(w)


def fold_and_pad_layer(w1, b1, bns, bnb, w2, b2, dim_p):
    """Fold eval BatchNorm into Linear1 and zero-pad to [dim_p, dim_p] (exact)."""
    w1f = w1 * bns                      # [d_in, d_out] * [1, d_out]
    b1f = b1 * bns + bnb
    return (_pad2(w1f, dim_p, dim_p), _pad2(b1f, 1, dim_p),
            _pad2(w2, dim_p, dim_p), _pad2(b2, 1, dim_p))


# ---------------------------------------------------------------------------
# Pure-JAX references for correctness checking
# ---------------------------------------------------------------------------
def reference_forward(x, adj, pool, raw_layers, lin1, lin2):
    """Unfused, unpadded, full-f32 reference (original module semantics)."""
    with jax.default_matmul_precision("highest"):
        h = x
        for (w1, b1, bns, bnb, w2, b2) in raw_layers:
            z = h + adj @ h
            z = z @ w1 + b1
            z = z * bns + bnb
            z = jnp.maximum(z, 0.0)
            z = z @ w2 + b2
            h = jnp.maximum(z, 0.0)
        g = pool @ h
        g = jnp.maximum(g @ lin1[0] + lin1[1], 0.0)
        logits = g @ lin2[0] + lin2[1]
        return jax.nn.log_softmax(logits, axis=-1)


def matched_reference(adj_I, pool, x_pad, w_all, b_all, out_channels):
    """Mirrors the kernel math (bf16 MXU operands, f32 accum) for a tight check."""
    h = x_pad
    for l in range(NUM_LAYERS):
        z = jnp.dot(adj_I, h.astype(jnp.bfloat16), preferred_element_type=jnp.float32)
        z = jnp.dot(z.astype(jnp.bfloat16), w_all[2 * l],
                    preferred_element_type=jnp.float32) + b_all[2 * l]
        z = jnp.maximum(z, 0.0)
        z = jnp.dot(z.astype(jnp.bfloat16), w_all[2 * l + 1],
                    preferred_element_type=jnp.float32) + b_all[2 * l + 1]
        h = jnp.maximum(z, 0.0)
    g = jnp.dot(pool, h.astype(jnp.bfloat16), preferred_element_type=jnp.float32)
    g = jnp.maximum(jnp.dot(g.astype(jnp.bfloat16), w_all[2 * NUM_LAYERS],
                            preferred_element_type=jnp.float32) + b_all[2 * NUM_LAYERS], 0.0)
    logits = jnp.dot(g.astype(jnp.bfloat16), w_all[2 * NUM_LAYERS + 1],
                     preferred_element_type=jnp.float32) + b_all[2 * NUM_LAYERS + 1]
    m = jnp.max(logits, axis=-1, keepdims=True)
    s = logits - m
    return (s - jnp.log(jnp.sum(jnp.exp(s), axis=-1, keepdims=True)))[:, :out_channels]


# ---------------------------------------------------------------------------
# Main
# ---------------------------------------------------------------------------
if __name__ == "__main__":
    # Small MUTAG-like setup: 2 graphs, 12 nodes each, 8 node features,
    # hidden dim 32, 2 output classes.
    N_PER_GRAPH = 12
    NUM_GRAPHS = 2
    N = N_PER_GRAPH * NUM_GRAPHS          # 24 nodes total
    IN_CHANNELS = 8
    DIM = 32
    OUT_CHANNELS = 2

    root = jax.random.PRNGKey(0)
    keys = jax.random.split(root, 16)

    # Node features
    x = jax.random.normal(keys[0], (N, IN_CHANNELS), jnp.float32)

    # edge_index: a ring within each graph, both directions (undirected)
    src_list, dst_list = [], []
    for gidx in range(NUM_GRAPHS):
        off = gidx * N_PER_GRAPH
        for i in range(N_PER_GRAPH):
            a = off + i
            b = off + (i + 1) % N_PER_GRAPH
            src_list += [a, b]
            dst_list += [b, a]
    edge_index = jnp.array([src_list, dst_list], dtype=jnp.int32)  # [2, 48]

    # batch assignment vector
    batch = jnp.repeat(jnp.arange(NUM_GRAPHS, dtype=jnp.int32), N_PER_GRAPH)

    # Dense adjacency (A[dst, src] = multiplicity) and one-hot pooling matrix
    adj = jnp.zeros((N, N), jnp.float32).at[edge_index[1], edge_index[0]].add(1.0)
    pool = (batch[None, :] == jnp.arange(NUM_GRAPHS, dtype=jnp.int32)[:, None]
            ).astype(jnp.float32)  # [NUM_GRAPHS, N]

    # Raw parameters (also used by the pure-JAX reference)
    raw_layers = []
    d_in = IN_CHANNELS
    for li in range(NUM_LAYERS):
        k1, k2, k3 = jax.random.split(keys[1 + li], 3)
        w1, b1 = linear_params(k1, d_in, DIM)
        bns, bnb = bn_params(k2, DIM)
        w2, b2 = linear_params(k3, DIM, DIM)
        raw_layers.append((w1, b1, bns, bnb, w2, b2))
        d_in = DIM
    lin1 = linear_params(keys[6], DIM, DIM)
    lin2 = linear_params(keys[7], DIM, OUT_CHANNELS)

    # ---- Host-side prep: fold BN, pad to lane-dense (128) shapes, stack ----
    DIM_P = _round_up(max(DIM, OUT_CHANNELS), LANE)       # 128
    N_PAD = _round_up(N, LANE)                            # 128

    ws, bs = [], []
    for p in raw_layers:
        w1p, b1p, w2p, b2p = fold_and_pad_layer(*p, dim_p=DIM_P)
        ws += [w1p, w2p]
        bs += [b1p, b2p]
    # head: lin1 (zero-padded) and lin2 (padded classes get -1e30 bias)
    ws.append(_pad2(lin1[0], DIM_P, DIM_P))
    bs.append(_pad2(lin1[1], 1, DIM_P))
    ws.append(_pad2(lin2[0], DIM_P, DIM_P))
    hb2 = jnp.full((1, DIM_P), NEG_INF, jnp.float32).at[:, :OUT_CHANNELS].set(lin2[1])
    bs.append(hb2)

    w_all = jnp.stack(ws).astype(jnp.bfloat16)            # [12, 128, 128] bf16
    b_all = jnp.stack(bs)                                  # [12, 1, 128]  f32

    # Self-loop folded into adjacency (eps=0): A + I, then pad; padded nodes are
    # isolated and zero-featured, and the pooling matrix masks them out.
    adj_I = adj + jnp.eye(N, dtype=jnp.float32)
    adj_I_p = _pad2(adj_I, N_PAD, N_PAD).astype(jnp.bfloat16)   # exact in bf16
    pool_p = _pad2(pool, NUM_GRAPHS, N_PAD).astype(jnp.bfloat16)
    x_p = _pad2(x, N_PAD, DIM_P)                                # f32

    # ---- Run fused kernel ----
    out = net_forward(adj_I_p, pool_p, x_p, w_all, b_all, OUT_CHANNELS)
    out = jax.block_until_ready(out)

    # ---- Checks ----
    ref_f32 = reference_forward(x, adj, pool, raw_layers, lin1, lin2)
    ref_bf16 = matched_reference(adj_I_p, pool_p, x_p, w_all, b_all, OUT_CHANNELS)

    assert out.shape == (NUM_GRAPHS, OUT_CHANNELS)
    # log_softmax rows should exponentiate-sum to 1
    assert jnp.allclose(jnp.sum(jnp.exp(out), axis=-1), 1.0, atol=1e-4)
    # tight match vs. the bf16-MXU-matched reference (structural correctness)
    assert jnp.allclose(out, ref_bf16, atol=1e-3, rtol=1e-3)
    # loose match vs. the full-f32 original-semantics reference (bf16 rounding)
    assert jnp.allclose(out, ref_f32, atol=5e-2, rtol=5e-2)
    print("KERNEL_OK")
</pallas_src>

<mosaic_0001>
module attributes {stable_mosaic.version = 11 : i64} {
  func.func @_fused_kernel(%arg0: memref<128x128xbf16, #tpu.memory_space<vmem>>, %arg1: memref<2x128xbf16, #tpu.memory_space<vmem>>, %arg2: memref<128x128xf32, #tpu.memory_space<vmem>>, %arg3: memref<12x128x128xbf16, #tpu.memory_space<vmem>>, %arg4: memref<12x1x128xf32, #tpu.memory_space<vmem>>, %arg5: memref<2x128xf32, #tpu.memory_space<vmem>>) attributes {dimension_semantics = [], scalar_prefetch = 0 : i64, scratch_operands = 0 : i64, tpu.core_type = #tpu.core_type<tc>} {
    %c0 = arith.constant 0 : index
    %c0_0 = arith.constant 0 : index
    %0 = vector.load %arg0[%c0, %c0_0] : memref<128x128xbf16, #tpu.memory_space<vmem>>, vector<128x128xbf16>
    %c0_1 = arith.constant 0 : index
    %c0_2 = arith.constant 0 : index
    %1 = vector.load %arg2[%c0_1, %c0_2] : memref<128x128xf32, #tpu.memory_space<vmem>>, vector<128x128xf32>
    %2 = arith.truncf %1 : vector<128x128xf32> to vector<128x128xbf16>
    %cst = arith.constant dense<0.000000e+00> : vector<128x128xf32>
    %3 = tpu.matmul %0, %2, %cst {dimension_numbers = #tpu.dot_dimension_numbers<[1], [0], [0], [1], [0, 0, 1, 1], [], []>} : vector<128x128xbf16>, vector<128x128xbf16>, vector<128x128xf32> -> vector<128x128xf32>
    %4 = arith.truncf %3 : vector<128x128xf32> to vector<128x128xbf16>
    %c0_3 = arith.constant 0 : index
    %c0_4 = arith.constant 0 : index
    %c0_5 = arith.constant 0 : index
    %5 = vector.load %arg3[%c0_3, %c0_4, %c0_5] : memref<12x128x128xbf16, #tpu.memory_space<vmem>>, vector<1x128x128xbf16>
    %6 = vector.shape_cast %5 : vector<1x128x128xbf16> to vector<128x128xbf16>
    %cst_6 = arith.constant dense<0.000000e+00> : vector<128x128xf32>
    %7 = tpu.matmul %4, %6, %cst_6 {dimension_numbers = #tpu.dot_dimension_numbers<[1], [0], [0], [1], [0, 0, 1, 1], [], []>} : vector<128x128xbf16>, vector<128x128xbf16>, vector<128x128xf32> -> vector<128x128xf32>
    %c0_7 = arith.constant 0 : index
    %c0_8 = arith.constant 0 : index
    %c0_9 = arith.constant 0 : index
    %8 = vector.load %arg4[%c0_7, %c0_8, %c0_9] : memref<12x1x128xf32, #tpu.memory_space<vmem>>, vector<1x1x128xf32>
    %9 = vector.shape_cast %8 : vector<1x1x128xf32> to vector<1x128xf32>
    %10 = vector.broadcast %9 : vector<1x128xf32> to vector<128x128xf32>
    %11 = arith.addf %7, %10 : vector<128x128xf32>
    %cst_10 = arith.constant 0.000000e+00 : f32
    %12 = vector.broadcast %cst_10 : f32 to vector<128x128xf32>
    %13 = arith.maximumf %11, %12 : vector<128x128xf32>
    %14 = arith.truncf %13 : vector<128x128xf32> to vector<128x128xbf16>
    %c1 = arith.constant 1 : index
    %c0_11 = arith.constant 0 : index
    %c0_12 = arith.constant 0 : index
    %15 = vector.load %arg3[%c1, %c0_11, %c0_12] : memref<12x128x128xbf16, #tpu.memory_space<vmem>>, vector<1x128x128xbf16>
    %16 = vector.shape_cast %15 : vector<1x128x128xbf16> to vector<128x128xbf16>
    %cst_13 = arith.constant dense<0.000000e+00> : vector<128x128xf32>
    %17 = tpu.matmul %14, %16, %cst_13 {dimension_numbers = #tpu.dot_dimension_numbers<[1], [0], [0], [1], [0, 0, 1, 1], [], []>} : vector<128x128xbf16>, vector<128x128xbf16>, vector<128x128xf32> -> vector<128x128xf32>
    %c1_14 = arith.constant 1 : index
    %c0_15 = arith.constant 0 : index
    %c0_16 = arith.constant 0 : index
    %18 = vector.load %arg4[%c1_14, %c0_15, %c0_16] : memref<12x1x128xf32, #tpu.memory_space<vmem>>, vector<1x1x128xf32>
    %19 = vector.shape_cast %18 : vector<1x1x128xf32> to vector<1x128xf32>
    %20 = vector.broadcast %19 : vector<1x128xf32> to vector<128x128xf32>
    %21 = arith.addf %17, %20 : vector<128x128xf32>
    %cst_17 = arith.constant 0.000000e+00 : f32
    %22 = vector.broadcast %cst_17 : f32 to vector<128x128xf32>
    %23 = arith.maximumf %21, %22 : vector<128x128xf32>
    %24 = arith.truncf %23 : vector<128x128xf32> to vector<128x128xbf16>
    %cst_18 = arith.constant dense<0.000000e+00> : vector<128x128xf32>
    %25 = tpu.matmul %0, %24, %cst_18 {dimension_numbers = #tpu.dot_dimension_numbers<[1], [0], [0], [1], [0, 0, 1, 1], [], []>} : vector<128x128xbf16>, vector<128x128xbf16>, vector<128x128xf32> -> vector<128x128xf32>
    %26 = arith.truncf %25 : vector<128x128xf32> to vector<128x128xbf16>
    %c2 = arith.constant 2 : index
    %c0_19 = arith.constant 0 : index
    %c0_20 = arith.constant 0 : index
    %27 = vector.load %arg3[%c2, %c0_19, %c0_20] : memref<12x128x128xbf16, #tpu.memory_space<vmem>>, vector<1x128x128xbf16>
    %28 = vector.shape_cast %27 : vector<1x128x128xbf16> to vector<128x128xbf16>
    %cst_21 = arith.constant dense<0.000000e+00> : vector<128x128xf32>
    %29 = tpu.matmul %26, %28, %cst_21 {dimension_numbers = #tpu.dot_dimension_numbers<[1], [0], [0], [1], [0, 0, 1, 1], [], []>} : vector<128x128xbf16>, vector<128x128xbf16>, vector<128x128xf32> -> vector<128x128xf32>
    %c2_22 = arith.constant 2 : index
    %c0_23 = arith.constant 0 : index
    %c0_24 = arith.constant 0 : index
    %30 = vector.load %arg4[%c2_22, %c0_23, %c0_24] : memref<12x1x128xf32, #tpu.memory_space<vmem>>, vector<1x1x128xf32>
    %31 = vector.shape_cast %30 : vector<1x1x128xf32> to vector<1x128xf32>
    %32 = vector.broadcast %31 : vector<1x128xf32> to vector<128x128xf32>
    %33 = arith.addf %29, %32 : vector<128x128xf32>
    %cst_25 = arith.constant 0.000000e+00 : f32
    %34 = vector.broadcast %cst_25 : f32 to vector<128x128xf32>
    %35 = arith.maximumf %33, %34 : vector<128x128xf32>
    %36 = arith.truncf %35 : vector<128x128xf32> to vector<128x128xbf16>
    %c3 = arith.constant 3 : index
    %c0_26 = arith.constant 0 : index
    %c0_27 = arith.constant 0 : index
    %37 = vector.load %arg3[%c3, %c0_26, %c0_27] : memref<12x128x128xbf16, #tpu.memory_space<vmem>>, vector<1x128x128xbf16>
    %38 = vector.shape_cast %37 : vector<1x128x128xbf16> to vector<128x128xbf16>
    %cst_28 = arith.constant dense<0.000000e+00> : vector<128x128xf32>
    %39 = tpu.matmul %36, %38, %cst_28 {dimension_numbers = #tpu.dot_dimension_numbers<[1], [0], [0], [1], [0, 0, 1, 1], [], []>} : vector<128x128xbf16>, vector<128x128xbf16>, vector<128x128xf32> -> vector<128x128xf32>
    %c3_29 = arith.constant 3 : index
    %c0_30 = arith.constant 0 : index
    %c0_31 = arith.constant 0 : index
    %40 = vector.load %arg4[%c3_29, %c0_30, %c0_31] : memref<12x1x128xf32, #tpu.memory_space<vmem>>, vector<1x1x128xf32>
    %41 = vector.shape_cast %40 : vector<1x1x128xf32> to vector<1x128xf32>
    %42 = vector.broadcast %41 : vector<1x128xf32> to vector<128x128xf32>
    %43 = arith.addf %39, %42 : vector<128x128xf32>
    %cst_32 = arith.constant 0.000000e+00 : f32
    %44 = vector.broadcast %cst_32 : f32 to vector<128x128xf32>
    %45 = arith.maximumf %43, %44 : vector<128x128xf32>
    %46 = arith.truncf %45 : vector<128x128xf32> to vector<128x128xbf16>
    %cst_33 = arith.constant dense<0.000000e+00> : vector<128x128xf32>
    %47 = tpu.matmul %0, %46, %cst_33 {dimension_numbers = #tpu.dot_dimension_numbers<[1], [0], [0], [1], [0, 0, 1, 1], [], []>} : vector<128x128xbf16>, vector<128x128xbf16>, vector<128x128xf32> -> vector<128x128xf32>
    %48 = arith.truncf %47 : vector<128x128xf32> to vector<128x128xbf16>
    %c4 = arith.constant 4 : index
    %c0_34 = arith.constant 0 : index
    %c0_35 = arith.constant 0 : index
    %49 = vector.load %arg3[%c4, %c0_34, %c0_35] : memref<12x128x128xbf16, #tpu.memory_space<vmem>>, vector<1x128x128xbf16>
    %50 = vector.shape_cast %49 : vector<1x128x128xbf16> to vector<128x128xbf16>
    %cst_36 = arith.constant dense<0.000000e+00> : vector<128x128xf32>
    %51 = tpu.matmul %48, %50, %cst_36 {dimension_numbers = #tpu.dot_dimension_numbers<[1], [0], [0], [1], [0, 0, 1, 1], [], []>} : vector<128x128xbf16>, vector<128x128xbf16>, vector<128x128xf32> -> vector<128x128xf32>
    %c4_37 = arith.constant 4 : index
    %c0_38 = arith.constant 0 : index
    %c0_39 = arith.constant 0 : index
    %52 = vector.load %arg4[%c4_37, %c0_38, %c0_39] : memref<12x1x128xf32, #tpu.memory_space<vmem>>, vector<1x1x128xf32>
    %53 = vector.shape_cast %52 : vector<1x1x128xf32> to vector<1x128xf32>
    %54 = vector.broadcast %53 : vector<1x128xf32> to vector<128x128xf32>
    %55 = arith.addf %51, %54 : vector<128x128xf32>
    %cst_40 = arith.constant 0.000000e+00 : f32
    %56 = vector.broadcast %cst_40 : f32 to vector<128x128xf32>
    %57 = arith.maximumf %55, %56 : vector<128x128xf32>
    %58 = arith.truncf %57 : vector<128x128xf32> to vector<128x128xbf16>
    %c5 = arith.constant 5 : index
    %c0_41 = arith.constant 0 : index
    %c0_42 = arith.constant 0 : index
    %59 = vector.load %arg3[%c5, %c0_41, %c0_42] : memref<12x128x128xbf16, #tpu.memory_space<vmem>>, vector<1x128x128xbf16>
    %60 = vector.shape_cast %59 : vector<1x128x128xbf16> to vector<128x128xbf16>
    %cst_43 = arith.constant dense<0.000000e+00> : vector<128x128xf32>
    %61 = tpu.matmul %58, %60, %cst_43 {dimension_numbers = #tpu.dot_dimension_numbers<[1], [0], [0], [1], [0, 0, 1, 1], [], []>} : vector<128x128xbf16>, vector<128x128xbf16>, vector<128x128xf32> -> vector<128x128xf32>
    %c5_44 = arith.constant 5 : index
    %c0_45 = arith.constant 0 : index
    %c0_46 = arith.constant 0 : index
    %62 = vector.load %arg4[%c5_44, %c0_45, %c0_46] : memref<12x1x128xf32, #tpu.memory_space<vmem>>, vector<1x1x128xf32>
    %63 = vector.shape_cast %62 : vector<1x1x128xf32> to vector<1x128xf32>
    %64 = vector.broadcast %63 : vector<1x128xf32> to vector<128x128xf32>
    %65 = arith.addf %61, %64 : vector<128x128xf32>
    %cst_47 = arith.constant 0.000000e+00 : f32
    %66 = vector.broadcast %cst_47 : f32 to vector<128x128xf32>
    %67 = arith.maximumf %65, %66 : vector<128x128xf32>
    %68 = arith.truncf %67 : vector<128x128xf32> to vector<128x128xbf16>
    %cst_48 = arith.constant dense<0.000000e+00> : vector<128x128xf32>
    %69 = tpu.matmul %0, %68, %cst_48 {dimension_numbers = #tpu.dot_dimension_numbers<[1], [0], [0], [1], [0, 0, 1, 1], [], []>} : vector<128x128xbf16>, vector<128x128xbf16>, vector<128x128xf32> -> vector<128x128xf32>
    %70 = arith.truncf %69 : vector<128x128xf32> to vector<128x128xbf16>
    %c6 = arith.constant 6 : index
    %c0_49 = arith.constant 0 : index
    %c0_50 = arith.constant 0 : index
    %71 = vector.load %arg3[%c6, %c0_49, %c0_50] : memref<12x128x128xbf16, #tpu.memory_space<vmem>>, vector<1x128x128xbf16>
    %72 = vector.shape_cast %71 : vector<1x128x128xbf16> to vector<128x128xbf16>
    %cst_51 = arith.constant dense<0.000000e+00> : vector<128x128xf32>
    %73 = tpu.matmul %70, %72, %cst_51 {dimension_numbers = #tpu.dot_dimension_numbers<[1], [0], [0], [1], [0, 0, 1, 1], [], []>} : vector<128x128xbf16>, vector<128x128xbf16>, vector<128x128xf32> -> vector<128x128xf32>
    %c6_52 = arith.constant 6 : index
    %c0_53 = arith.constant 0 : index
    %c0_54 = arith.constant 0 : index
    %74 = vector.load %arg4[%c6_52, %c0_53, %c0_54] : memref<12x1x128xf32, #tpu.memory_space<vmem>>, vector<1x1x128xf32>
    %75 = vector.shape_cast %74 : vector<1x1x128xf32> to vector<1x128xf32>
    %76 = vector.broadcast %75 : vector<1x128xf32> to vector<128x128xf32>
    %77 = arith.addf %73, %76 : vector<128x128xf32>
    %cst_55 = arith.constant 0.000000e+00 : f32
    %78 = vector.broadcast %cst_55 : f32 to vector<128x128xf32>
    %79 = arith.maximumf %77, %78 : vector<128x128xf32>
    %80 = arith.truncf %79 : vector<128x128xf32> to vector<128x128xbf16>
    %c7 = arith.constant 7 : index
    %c0_56 = arith.constant 0 : index
    %c0_57 = arith.constant 0 : index
    %81 = vector.load %arg3[%c7, %c0_56, %c0_57] : memref<12x128x128xbf16, #tpu.memory_space<vmem>>, vector<1x128x128xbf16>
    %82 = vector.shape_cast %81 : vector<1x128x128xbf16> to vector<128x128xbf16>
    %cst_58 = arith.constant dense<0.000000e+00> : vector<128x128xf32>
    %83 = tpu.matmul %80, %82, %cst_58 {dimension_numbers = #tpu.dot_dimension_numbers<[1], [0], [0], [1], [0, 0, 1, 1], [], []>} : vector<128x128xbf16>, vector<128x128xbf16>, vector<128x128xf32> -> vector<128x128xf32>
    %c7_59 = arith.constant 7 : index
    %c0_60 = arith.constant 0 : index
    %c0_61 = arith.constant 0 : index
    %84 = vector.load %arg4[%c7_59, %c0_60, %c0_61] : memref<12x1x128xf32, #tpu.memory_space<vmem>>, vector<1x1x128xf32>
    %85 = vector.shape_cast %84 : vector<1x1x128xf32> to vector<1x128xf32>
    %86 = vector.broadcast %85 : vector<1x128xf32> to vector<128x128xf32>
    %87 = arith.addf %83, %86 : vector<128x128xf32>
    %cst_62 = arith.constant 0.000000e+00 : f32
    %88 = vector.broadcast %cst_62 : f32 to vector<128x128xf32>
    %89 = arith.maximumf %87, %88 : vector<128x128xf32>
    %90 = arith.truncf %89 : vector<128x128xf32> to vector<128x128xbf16>
    %cst_63 = arith.constant dense<0.000000e+00> : vector<128x128xf32>
    %91 = tpu.matmul %0, %90, %cst_63 {dimension_numbers = #tpu.dot_dimension_numbers<[1], [0], [0], [1], [0, 0, 1, 1], [], []>} : vector<128x128xbf16>, vector<128x128xbf16>, vector<128x128xf32> -> vector<128x128xf32>
    %92 = arith.truncf %91 : vector<128x128xf32> to vector<128x128xbf16>
    %c8 = arith.constant 8 : index
    %c0_64 = arith.constant 0 : index
    %c0_65 = arith.constant 0 : index
    %93 = vector.load %arg3[%c8, %c0_64, %c0_65] : memref<12x128x128xbf16, #tpu.memory_space<vmem>>, vector<1x128x128xbf16>
    %94 = vector.shape_cast %93 : vector<1x128x128xbf16> to vector<128x128xbf16>
    %cst_66 = arith.constant dense<0.000000e+00> : vector<128x128xf32>
    %95 = tpu.matmul %92, %94, %cst_66 {dimension_numbers = #tpu.dot_dimension_numbers<[1], [0], [0], [1], [0, 0, 1, 1], [], []>} : vector<128x128xbf16>, vector<128x128xbf16>, vector<128x128xf32> -> vector<128x128xf32>
    %c8_67 = arith.constant 8 : index
    %c0_68 = arith.constant 0 : index
    %c0_69 = arith.constant 0 : index
    %96 = vector.load %arg4[%c8_67, %c0_68, %c0_69] : memref<12x1x128xf32, #tpu.memory_space<vmem>>, vector<1x1x128xf32>
    %97 = vector.shape_cast %96 : vector<1x1x128xf32> to vector<1x128xf32>
    %98 = vector.broadcast %97 : vector<1x128xf32> to vector<128x128xf32>
    %99 = arith.addf %95, %98 : vector<128x128xf32>
    %cst_70 = arith.constant 0.000000e+00 : f32
    %100 = vector.broadcast %cst_70 : f32 to vector<128x128xf32>
    %101 = arith.maximumf %99, %100 : vector<128x128xf32>
    %102 = arith.truncf %101 : vector<128x128xf32> to vector<128x128xbf16>
    %c9 = arith.constant 9 : index
    %c0_71 = arith.constant 0 : index
    %c0_72 = arith.constant 0 : index
    %103 = vector.load %arg3[%c9, %c0_71, %c0_72] : memref<12x128x128xbf16, #tpu.memory_space<vmem>>, vector<1x128x128xbf16>
    %104 = vector.shape_cast %103 : vector<1x128x128xbf16> to vector<128x128xbf16>
    %cst_73 = arith.constant dense<0.000000e+00> : vector<128x128xf32>
    %105 = tpu.matmul %102, %104, %cst_73 {dimension_numbers = #tpu.dot_dimension_numbers<[1], [0], [0], [1], [0, 0, 1, 1], [], []>} : vector<128x128xbf16>, vector<128x128xbf16>, vector<128x128xf32> -> vector<128x128xf32>
    %c9_74 = arith.constant 9 : index
    %c0_75 = arith.constant 0 : index
    %c0_76 = arith.constant 0 : index
    %106 = vector.load %arg4[%c9_74, %c0_75, %c0_76] : memref<12x1x128xf32, #tpu.memory_space<vmem>>, vector<1x1x128xf32>
    %107 = vector.shape_cast %106 : vector<1x1x128xf32> to vector<1x128xf32>
    %108 = vector.broadcast %107 : vector<1x128xf32> to vector<128x128xf32>
    %109 = arith.addf %105, %108 : vector<128x128xf32>
    %cst_77 = arith.constant 0.000000e+00 : f32
    %110 = vector.broadcast %cst_77 : f32 to vector<128x128xf32>
    %111 = arith.maximumf %109, %110 : vector<128x128xf32>
    %c0_78 = arith.constant 0 : index
    %c0_79 = arith.constant 0 : index
    %112 = vector.load %arg1[%c0_78, %c0_79] : memref<2x128xbf16, #tpu.memory_space<vmem>>, vector<2x128xbf16>
    %113 = arith.truncf %111 : vector<128x128xf32> to vector<128x128xbf16>
    %cst_80 = arith.constant dense<0.000000e+00> : vector<2x128xf32>
    %114 = tpu.matmul %112, %113, %cst_80 {dimension_numbers = #tpu.dot_dimension_numbers<[1], [0], [0], [1], [0, 0, 1, 1], [], []>} : vector<2x128xbf16>, vector<128x128xbf16>, vector<2x128xf32> -> vector<2x128xf32>
    %115 = arith.truncf %114 : vector<2x128xf32> to vector<2x128xbf16>
    %c10 = arith.constant 10 : index
    %c0_81 = arith.constant 0 : index
    %c0_82 = arith.constant 0 : index
    %116 = vector.load %arg3[%c10, %c0_81, %c0_82] : memref<12x128x128xbf16, #tpu.memory_space<vmem>>, vector<1x128x128xbf16>
    %117 = vector.shape_cast %116 : vector<1x128x128xbf16> to vector<128x128xbf16>
    %cst_83 = arith.constant dense<0.000000e+00> : vector<2x128xf32>
    %118 = tpu.matmul %115, %117, %cst_83 {dimension_numbers = #tpu.dot_dimension_numbers<[1], [0], [0], [1], [0, 0, 1, 1], [], []>} : vector<2x128xbf16>, vector<128x128xbf16>, vector<2x128xf32> -> vector<2x128xf32>
    %c10_84 = arith.constant 10 : index
    %c0_85 = arith.constant 0 : index
    %c0_86 = arith.constant 0 : index
    %119 = vector.load %arg4[%c10_84, %c0_85, %c0_86] : memref<12x1x128xf32, #tpu.memory_space<vmem>>, vector<1x1x128xf32>
    %120 = vector.shape_cast %119 : vector<1x1x128xf32> to vector<1x128xf32>
    %121 = vector.broadcast %120 : vector<1x128xf32> to vector<2x128xf32>
    %122 = arith.addf %118, %121 : vector<2x128xf32>
    %cst_87 = arith.constant 0.000000e+00 : f32
    %123 = vector.broadcast %cst_87 : f32 to vector<2x128xf32>
    %124 = arith.maximumf %122, %123 : vector<2x128xf32>
    %125 = arith.truncf %124 : vector<2x128xf32> to vector<2x128xbf16>
    %c11 = arith.constant 11 : index
    %c0_88 = arith.constant 0 : index
    %c0_89 = arith.constant 0 : index
    %126 = vector.load %arg3[%c11, %c0_88, %c0_89] : memref<12x128x128xbf16, #tpu.memory_space<vmem>>, vector<1x128x128xbf16>
    %127 = vector.shape_cast %126 : vector<1x128x128xbf16> to vector<128x128xbf16>
    %cst_90 = arith.constant dense<0.000000e+00> : vector<2x128xf32>
    %128 = tpu.matmul %125, %127, %cst_90 {dimension_numbers = #tpu.dot_dimension_numbers<[1], [0], [0], [1], [0, 0, 1, 1], [], []>} : vector<2x128xbf16>, vector<128x128xbf16>, vector<2x128xf32> -> vector<2x128xf32>
    %c11_91 = arith.constant 11 : index
    %c0_92 = arith.constant 0 : index
    %c0_93 = arith.constant 0 : index
    %129 = vector.load %arg4[%c11_91, %c0_92, %c0_93] : memref<12x1x128xf32, #tpu.memory_space<vmem>>, vector<1x1x128xf32>
    %130 = vector.shape_cast %129 : vector<1x1x128xf32> to vector<1x128xf32>
    %131 = vector.broadcast %130 : vector<1x128xf32> to vector<2x128xf32>
    %132 = arith.addf %128, %131 : vector<2x128xf32>
    %cst_94 = arith.constant dense<0xFF800000> : vector<2xf32>
    %133 = vector.multi_reduction <maximumf>, %132, %cst_94 [1] : vector<2x128xf32> to vector<2xf32>
    %134 = vector.shape_cast %133 : vector<2xf32> to vector<2x1xf32>
    %135 = vector.broadcast %134 : vector<2x1xf32> to vector<2x128xf32>
    %136 = arith.subf %132, %135 : vector<2x128xf32>
    %137 = math.exp %136 : vector<2x128xf32>
    %cst_95 = arith.constant dense<0.000000e+00> : vector<2xf32>
    %138 = vector.multi_reduction <add>, %137, %cst_95 [1] : vector<2x128xf32> to vector<2xf32>
    %139 = vector.shape_cast %138 : vector<2xf32> to vector<2x1xf32>
    %140 = math.log %139 : vector<2x1xf32>
    %141 = vector.broadcast %140 : vector<2x1xf32> to vector<2x128xf32>
    %142 = arith.subf %136, %141 : vector<2x128xf32>
    %c0_96 = arith.constant 0 : index
    %c0_97 = arith.constant 0 : index
    %143 = vector.load %arg5[%c0_96, %c0_97] : memref<2x128xf32, #tpu.memory_space<vmem>>, vector<2x128xf32>
    tpu.vector_store %arg5[%c0_96, %c0_97], %142 {strides = array<i32>} : memref<2x128xf32, #tpu.memory_space<vmem>>, vector<2x128xf32>,
    return
  }
}

</mosaic_0001>

<llo_original>
// kernel: tpu_custom_call.1
$region0: #{tpu_custom_call.1}
  #allocation0 [shape = 'u32[]', space=smem, size = 0x4, offset = 0x4, fixed_abs, tag = 'smem constant byte address 0x4 - core index']
  #allocation1 [shape = 'u32[144,128]{1,0:T(1,128)}', space=vmem, size = 0x12000, scoped, tag = 'internal scratch']
  %s0 = inlined_call_operand.hbm [shape: bf16[128,128], index: 0, kind: input, shape index: {}]
  %s1 = inlined_call_operand.vmem [shape: bf16[2,128], index: 1, kind: input, shape index: {}]
  %s2 = inlined_call_operand.hbm [shape: f32[128,128], index: 2, kind: input, shape index: {}]
  %s3 = inlined_call_operand.hbm [shape: bf16[12,128,128], index: 3, kind: input, shape index: {}]
  %s4 = inlined_call_operand.vmem [shape: f32[12,1,128], index: 4, kind: input, shape index: {}]
  %s5 = inlined_call_operand.hbm [shape: f32[2,128], index: 5, kind: output, shape index: {}]
  %s6 = sld [smem:[#allocation0]]
  $region42: #{tpu_custom_call.1} parent=0
    _
  %s8 = ssub.s32 1, %s6
  %s9 = scalar_select 0, %s8, %s6
  $region1: #{tpu_custom_call.1} parent=0
    #allocation2 [shape = 'u8[32768]{0}', space=vmem, size = 0x8000, scoped, tag = 'input window, operand 0, single buffered']
    #allocation3 [shape = 's32[1]{0}', space=sflag, size = 0x4, scoped, tag = 'scoped memory for tpu_custom_call.1']
    #allocation4 [shape = 's32[1]{0}', space=sflag, size = 0x4, scoped, tag = 'scoped memory for tpu_custom_call.1']
    #allocation5 [shape = 'u8[65536]{0}', space=vmem, size = 0x10000, scoped, tag = 'input window, operand 2, single buffered']
    #allocation6 [shape = 's32[1]{0}', space=sflag, size = 0x4, scoped, tag = 'scoped memory for tpu_custom_call.1']
    #allocation7 [shape = 'u8[393216]{0}', space=vmem, size = 0x60000, scoped, tag = 'input window, operand 3, single buffered']
    #allocation8 [shape = 'u8[1024]{0}', space=vmem, size = 0x400, scoped, tag = 'output window, operand 0, single buffered']
    %10 = vsyncpa [#allocation3], 0
    %11 = vsyncpa [#allocation6], 0
    %12 = vsyncpa [#allocation4], 0
    // Predicated region
    $region2: #{tpu_custom_call.1} parent=1 // pred_check
      _
    $region3: #{tpu_custom_call.1} parent=1 // pred_check_branch
      %14 = sbr.rel (0) target = $region5
    $region4: #{tpu_custom_call.1} parent=1 // pred_region
      %s16 = ssub.s32 1024, 1024
      %17 = vsyncadd [#allocation3], %s16
      %s18 = sshll.u32 [#allocation2], 4
      %s19 = int_to_ptr.vmem [resolvable:$true] %s18
      %24 = dma.hbm_to_vmem [thread:$0]  %s0, 1024, %s19, [#allocation3], 64, 64, 4
    $region5: #{tpu_custom_call.1} parent=1 // pred_fallthru
      _
    // Predicated region
    $region6: #{tpu_custom_call.1} parent=1 // pred_check
      _
    $region7: #{tpu_custom_call.1} parent=1 // pred_check_branch
      %26 = sbr.rel (0) target = $region9
    $region8: #{tpu_custom_call.1} parent=1 // pred_region
      _
    $region9: #{tpu_custom_call.1} parent=1 // pred_fallthru
      _
    // Predicated region
    $region10: #{tpu_custom_call.1} parent=1 // pred_check
      _
    $region11: #{tpu_custom_call.1} parent=1 // pred_check_branch
      %28 = sbr.rel (0) target = $region13
    $region12: #{tpu_custom_call.1} parent=1 // pred_region
      %s30 = ssub.s32 2048, 2048
      %31 = vsyncadd [#allocation6], %s30
      %s32 = sshll.u32 [#allocation5], 4
      %s33 = int_to_ptr.vmem [resolvable:$true] %s32
      %38 = dma.hbm_to_vmem [thread:$0]  %s2, 2048, %s33, [#allocation6], 128, 128, 8
    $region13: #{tpu_custom_call.1} parent=1 // pred_fallthru
      _
    // Predicated region
    $region14: #{tpu_custom_call.1} parent=1 // pred_check
      _
    $region15: #{tpu_custom_call.1} parent=1 // pred_check_branch
      %40 = sbr.rel (0) target = $region17
    $region16: #{tpu_custom_call.1} parent=1 // pred_region
      %s42 = ssub.s32 12288, 12288
      %43 = vsyncadd [#allocation6], %s42
      %s44 = sshll.u32 [#allocation7], 4
      %s45 = int_to_ptr.vmem [resolvable:$true] %s44
      %50 = dma.hbm_to_vmem [thread:$0]  %s3, 12288, %s45, [#allocation6], 64, 64, 4
    $region17: #{tpu_custom_call.1} parent=1 // pred_fallthru
      _
    // Predicated region
    $region18: #{tpu_custom_call.1} parent=1 // pred_check
      _
    $region19: #{tpu_custom_call.1} parent=1 // pred_check_branch
      %52 = sbr.rel (0) target = $region21
    $region20: #{tpu_custom_call.1} parent=1 // pred_region
      _
    $region21: #{tpu_custom_call.1} parent=1 // pred_fallthru
      _
    // Predicated region
    $region22: #{tpu_custom_call.1} parent=1 // pred_check
      _
    $region23: #{tpu_custom_call.1} parent=1 // pred_check_branch
      %54 = sbr.rel (0) target = $region25
    $region24: #{tpu_custom_call.1} parent=1 // pred_region
      %55 = dma.done [#allocation3], 1024
    $region25: #{tpu_custom_call.1} parent=1 // pred_fallthru
      _
    // Predicated region
    $region26: #{tpu_custom_call.1} parent=1 // pred_check
      _
    $region27: #{tpu_custom_call.1} parent=1 // pred_check_branch
      %57 = sbr.rel (0) target = $region29
    $region28: #{tpu_custom_call.1} parent=1 // pred_region
      %58 = dma.done [#allocation6], 2048
    $region29: #{tpu_custom_call.1} parent=1 // pred_fallthru
      _
    // Predicated region
    $region30: #{tpu_custom_call.1} parent=1 // pred_check
      _
    $region31: #{tpu_custom_call.1} parent=1 // pred_check_branch
      %60 = sbr.rel (0) target = $region33
    $region32: #{tpu_custom_call.1} parent=1 // pred_region
      %61 = dma.done [#allocation6], 12288
    $region33: #{tpu_custom_call.1} parent=1 // pred_fallthru
      _
    %v63 = vld [vmem:[#allocation2] sm:$0xf]
    %v64 = vld [vmem:[#allocation2 + $0x4] sm:$0xf]
    %v65 = vld [vmem:[#allocation2 + $0x8] sm:$0xf]
    %v66 = vld [vmem:[#allocation2 + $0xc] sm:$0xf]
    %v67 = vld [vmem:[#allocation2 + $0x10] sm:$0xf]
    %v68 = vld [vmem:[#allocation2 + $0x14] sm:$0xf]
    %v69 = vld [vmem:[#allocation2 + $0x18] sm:$0xf]
    %v70 = vld [vmem:[#allocation2 + $0x1c] sm:$0xf]
    %v71 = vld [vmem:[#allocation2 + $0x20] sm:$0xf]
    %v72 = vld [vmem:[#allocation2 + $0x24] sm:$0xf]
    %v73 = vld [vmem:[#allocation2 + $0x28] sm:$0xf]
    %v74 = vld [vmem:[#allocation2 + $0x2c] sm:$0xf]
    %v75 = vld [vmem:[#allocation2 + $0x30] sm:$0xf]
    %v76 = vld [vmem:[#allocation2 + $0x34] sm:$0xf]
    %v77 = vld [vmem:[#allocation2 + $0x38] sm:$0xf]
    %v78 = vld [vmem:[#allocation2 + $0x3c] sm:$0xf]
    %v79 = vld [vmem:[#allocation5] sm:$0xff]
    %v80 = vld [vmem:[#allocation5 + $0x8] sm:$0xff]
    %v81 = vld [vmem:[#allocation5 + $0x10] sm:$0xff]
    %v82 = vld [vmem:[#allocation5 + $0x18] sm:$0xff]
    %v83 = vld [vmem:[#allocation5 + $0x20] sm:$0xff]
    %v84 = vld [vmem:[#allocation5 + $0x28] sm:$0xff]
    %v85 = vld [vmem:[#allocation5 + $0x30] sm:$0xff]
    %v86 = vld [vmem:[#allocation5 + $0x38] sm:$0xff]
    %v87 = vld [vmem:[#allocation5 + $0x40] sm:$0xff]
    %v88 = vld [vmem:[#allocation5 + $0x48] sm:$0xff]
    %v89 = vld [vmem:[#allocation5 + $0x50] sm:$0xff]
    %v90 = vld [vmem:[#allocation5 + $0x58] sm:$0xff]
    %v91 = vld [vmem:[#allocation5 + $0x60] sm:$0xff]
    %v92 = vld [vmem:[#allocation5 + $0x68] sm:$0xff]
    %v93 = vld [vmem:[#allocation5 + $0x70] sm:$0xff]
    %v94 = vld [vmem:[#allocation5 + $0x78] sm:$0xff]
    %v95 = vpack.c.bf16 %v80, %v79
    %v96 = vpack.c.bf16 %v82, %v81
    %v97 = vpack.c.bf16 %v84, %v83
    %v98 = vpack.c.bf16 %v86, %v85
    %v99 = vpack.c.bf16 %v88, %v87
    %v100 = vpack.c.bf16 %v90, %v89
    %v101 = vpack.c.bf16 %v92, %v91
    %v102 = vpack.c.bf16 %v94, %v93
    %v119 = vunpack.c.l.b16 %v63
    %v120 = vunpack.c.l.b16 %v64
    %v121 = vunpack.c.l.b16 %v65
    %v122 = vunpack.c.l.b16 %v66
    %v123 = vunpack.c.l.b16 %v67
    %v124 = vunpack.c.l.b16 %v68
    %v125 = vunpack.c.l.b16 %v69
    %v126 = vunpack.c.l.b16 %v70
    %v127 = vunpack.c.l.b16 %v71
    %v128 = vunpack.c.l.b16 %v72
    %v129 = vunpack.c.l.b16 %v73
    %v130 = vunpack.c.l.b16 %v74
    %v131 = vunpack.c.l.b16 %v75
    %v132 = vunpack.c.l.b16 %v76
    %v133 = vunpack.c.l.b16 %v77
    %v134 = vunpack.c.l.b16 %v78
    %v135 = vpack.c.b16 %v120, %v119
    %v136 = vpack.c.b16 %v122, %v121
    %v137 = vpack.c.b16 %v124, %v123
    %v138 = vpack.c.b16 %v126, %v125
    %v139 = vpack.c.b16 %v128, %v127
    %v140 = vpack.c.b16 %v130, %v129
    %v141 = vpack.c.b16 %v132, %v131
    %v142 = vpack.c.b16 %v134, %v133
    %151 = vmatprep.subr.bf16.mxu0 0
    %152 = vmatpush1.bf16.msra.mxu0 %v95
    %153 = vmatprep.subr.bf16.mxu0 0
    %154 = vmatpush1.bf16.msra.mxu0 %v96
    %155 = vmatprep.subr.bf16.mxu0 0
    %156 = vmatpush1.bf16.msra.mxu0 %v97
    %157 = vmatprep.subr.bf16.mxu0 0
    %158 = vmatpush1.bf16.msra.mxu0 %v98
    %159 = vmatprep.subr.bf16.mxu0 0
    %160 = vmatpush1.bf16.msra.mxu0 %v99
    %161 = vmatprep.subr.bf16.mxu0 0
    %162 = vmatpush1.bf16.msra.mxu0 %v100
    %163 = vmatprep.subr.bf16.mxu0 0
    %164 = vmatpush1.bf16.msra.mxu0 %v101
    %165 = vmatprep.subr.bf16.mxu0 0
    %166 = vmatpush1.bf16.msra.mxu0 %v102
    %167 = vmatprep.subr.bf16.mxu0 0
    %168 = vmatpush1.bf16.msra.mxu0 0
    %169 = vmatprep.subr.bf16.mxu0 0
    %170 = vmatpush1.bf16.msra.mxu0 0
    %171 = vmatprep.subr.bf16.mxu0 0
    %172 = vmatpush1.bf16.msra.mxu0 0
    %173 = vmatprep.subr.bf16.mxu0 0
    %174 = vmatpush1.bf16.msra.mxu0 0
    %175 = vmatprep.subr.bf16.mxu0 0
    %176 = vmatpush1.bf16.msra.mxu0 0
    %177 = vmatprep.subr.bf16.mxu0 0
    %178 = vmatpush1.bf16.msra.mxu0 0
    %179 = vmatprep.subr.bf16.mxu0 0
    %180 = vmatpush1.bf16.msra.mxu0 0
    %181 = vmatprep.subr.bf16.mxu0 0
    %182 = vmatpush1.bf16.msra.mxu0 0
    %183 = vmatprep.mubr.bf16.mxu0 0
    %184 = vmatmul.mubr.bf16.gmra.mrb[0].mxu0 %v135
    %v185 = vpop.f32.mrb[0].mxu0
    %v186 = vadd.f32 0.0, %v185
    %v187 = vpop.f32.mrb[0].mxu0
    %v188 = vpop.f32.mrb[0].mxu0
    %v189 = vadd.f32 0.0, %v188
    %v190 = vpop.f32.mrb[0].mxu0
    %191 = vmatprep.mubr.bf16.mxu0 0
    %192 = vmatmul.mubr.bf16.gmra.mrb[0].mxu0 %v136
    %v193 = vpop.f32.mrb[0].mxu0
    %v194 = vadd.f32 0.0, %v193
    %v195 = vpop.f32.mrb[0].mxu0
    %v196 = vpop.f32.mrb[0].mxu0
    %v197 = vadd.f32 0.0, %v196
    %v198 = vpop.f32.mrb[0].mxu0
    %199 = vmatprep.mubr.bf16.mxu0 0
    %200 = vmatmul.mubr.bf16.gmra.mrb[0].mxu0 %v137
    %v201 = vpop.f32.mrb[0].mxu0
    %v202 = vadd.f32 0.0, %v201
    %v203 = vpop.f32.mrb[0].mxu0
    %v204 = vpop.f32.mrb[0].mxu0
    %v205 = vadd.f32 0.0, %v204
    %v206 = vpop.f32.mrb[0].mxu0
    %207 = vmatprep.mubr.bf16.mxu0 0
    %208 = vmatmul.mubr.bf16.gmra.mrb[0].mxu0 %v138
    %v209 = vpop.f32.mrb[0].mxu0
    %v210 = vadd.f32 0.0, %v209
    %v211 = vpop.f32.mrb[0].mxu0
    %v212 = vpop.f32.mrb[0].mxu0
    %v213 = vadd.f32 0.0, %v212
    %v214 = vpop.f32.mrb[0].mxu0
    %215 = vmatprep.mubr.bf16.mxu0 0
    %216 = vmatmul.mubr.bf16.gmra.mrb[0].mxu0 %v139
    %v217 = vpop.f32.mrb[0].mxu0
    %v218 = vadd.f32 0.0, %v217
    %v219 = vpop.f32.mrb[0].mxu0
    %v220 = vpop.f32.mrb[0].mxu0
    %v221 = vadd.f32 0.0, %v220
    %v222 = vpop.f32.mrb[0].mxu0
    %223 = vmatprep.mubr.bf16.mxu0 0
    %224 = vmatmul.mubr.bf16.gmra.mrb[0].mxu0 %v140
    %v225 = vpop.f32.mrb[0].mxu0
    %v226 = vadd.f32 0.0, %v225
    %v227 = vpop.f32.mrb[0].mxu0
    %v228 = vpop.f32.mrb[0].mxu0
    %v229 = vadd.f32 0.0, %v228
    %v230 = vpop.f32.mrb[0].mxu0
    %231 = vmatprep.mubr.bf16.mxu0 0
    %232 = vmatmul.mubr.bf16.gmra.mrb[0].mxu0 %v141
    %v233 = vpop.f32.mrb[0].mxu0
    %v234 = vadd.f32 0.0, %v233
    %v235 = vpop.f32.mrb[0].mxu0
    %v236 = vpop.f32.mrb[0].mxu0
    %v237 = vadd.f32 0.0, %v236
    %v238 = vpop.f32.mrb[0].mxu0
    %239 = vmatprep.mubr.bf16.mxu0 0
    %240 = vmatmul.mubr.bf16.gmra.mrb[0].mxu0 %v142
    %v241 = vpop.f32.mrb[0].mxu0
    %v242 = vadd.f32 0.0, %v241
    %v243 = vpop.f32.mrb[0].mxu0
    %v244 = vpop.f32.mrb[0].mxu0
    %v245 = vadd.f32 0.0, %v244
    %v246 = vpop.f32.mrb[0].mxu0
    %247 = vdwg.mxu0
    %v248 = vpack.c.bf16 %v189, %v186
    %v249 = vpack.c.bf16 %v197, %v194
    %v250 = vpack.c.bf16 %v205, %v202
    %v251 = vpack.c.bf16 %v213, %v210
    %v252 = vpack.c.bf16 %v221, %v218
    %v253 = vpack.c.bf16 %v229, %v226
    %v254 = vpack.c.bf16 %v237, %v234
    %v255 = vpack.c.bf16 %v245, %v242
    %v256 = vld [vmem:[#allocation7] sm:$0xf]
    %v257 = vld [vmem:[#allocation7 + $0x4] sm:$0xf]
    %v258 = vld [vmem:[#allocation7 + $0x8] sm:$0xf]
    %v259 = vld [vmem:[#allocation7 + $0xc] sm:$0xf]
    %v260 = vld [vmem:[#allocation7 + $0x10] sm:$0xf]
    %v261 = vld [vmem:[#allocation7 + $0x14] sm:$0xf]
    %v262 = vld [vmem:[#allocation7 + $0x18] sm:$0xf]
    %v263 = vld [vmem:[#allocation7 + $0x1c] sm:$0xf]
    %v264 = vld [vmem:[#allocation7 + $0x20] sm:$0xf]
    %v265 = vld [vmem:[#allocation7 + $0x24] sm:$0xf]
    %v266 = vld [vmem:[#allocation7 + $0x28] sm:$0xf]
    %v267 = vld [vmem:[#allocation7 + $0x2c] sm:$0xf]
    %v268 = vld [vmem:[#allocation7 + $0x30] sm:$0xf]
    %v269 = vld [vmem:[#allocation7 + $0x34] sm:$0xf]
    %v270 = vld [vmem:[#allocation7 + $0x38] sm:$0xf]
    %v271 = vld [vmem:[#allocation7 + $0x3c] sm:$0xf]
    %v272 = vld [vmem:[%s4] sm:$0x1]
    %v274 = vlaneseq
    %v275 = vshrl.u32 %v274, 7
    %v276 = vsub.s32 0, %v275
    %v277 = vrot.slane %v272, %v276
    %v295 = vunpack.c.l.b16 %v256
    %v296 = vunpack.c.l.b16 %v257
    %v297 = vunpack.c.l.b16 %v258
    %v298 = vunpack.c.l.b16 %v259
    %v299 = vunpack.c.l.b16 %v260
    %v300 = vunpack.c.l.b16 %v261
    %v301 = vunpack.c.l.b16 %v262
    %v302 = vunpack.c.l.b16 %v263
    %v303 = vunpack.c.l.b16 %v264
    %v304 = vunpack.c.l.b16 %v265
    %v305 = vunpack.c.l.b16 %v266
    %v306 = vunpack.c.l.b16 %v267
    %v307 = vunpack.c.l.b16 %v268
    %v308 = vunpack.c.l.b16 %v269
    %v309 = vunpack.c.l.b16 %v270
    %v310 = vunpack.c.l.b16 %v271
    %v311 = vpack.c.b16 %v296, %v295
    %v312 = vpack.c.b16 %v298, %v297
    %v313 = vpack.c.b16 %v300, %v299
    %v314 = vpack.c.b16 %v302, %v301
    %v315 = vpack.c.b16 %v304, %v303
    %v316 = vpack.c.b16 %v306, %v305
    %v317 = vpack.c.b16 %v308, %v307
    %v318 = vpack.c.b16 %v310, %v309
    %327 = vmatprep.subr.bf16.mxu0 0
    %328 = vmatpush1.bf16.msra.mxu0 %v311
    %329 = vmatprep.subr.bf16.mxu0 0
    %330 = vmatpush1.bf16.msra.mxu0 %v312
    %331 = vmatprep.subr.bf16.mxu0 0
    %332 = vmatpush1.bf16.msra.mxu0 %v313
    %333 = vmatprep.subr.bf16.mxu0 0
    %334 = vmatpush1.bf16.msra.mxu0 %v314
    %335 = vmatprep.subr.bf16.mxu0 0
    %336 = vmatpush1.bf16.msra.mxu0 %v315
    %337 = vmatprep.subr.bf16.mxu0 0
    %338 = vmatpush1.bf16.msra.mxu0 %v316
    %339 = vmatprep.subr.bf16.mxu0 0
    %340 = vmatpush1.bf16.msra.mxu0 %v317
    %341 = vmatprep.subr.bf16.mxu0 0
    %342 = vmatpush1.bf16.msra.mxu0 %v318
    %343 = vmatprep.subr.bf16.mxu0 0
    %344 = vmatpush1.bf16.msra.mxu0 0
    %345 = vmatprep.subr.bf16.mxu0 0
    %346 = vmatpush1.bf16.msra.mxu0 0
    %347 = vmatprep.subr.bf16.mxu0 0
    %348 = vmatpush1.bf16.msra.mxu0 0
    %349 = vmatprep.subr.bf16.mxu0 0
    %350 = vmatpush1.bf16.msra.mxu0 0
    %351 = vmatprep.subr.bf16.mxu0 0
    %352 = vmatpush1.bf16.msra.mxu0 0
    %353 = vmatprep.subr.bf16.mxu0 0
    %354 = vmatpush1.bf16.msra.mxu0 0
    %355 = vmatprep.subr.bf16.mxu0 0
    %356 = vmatpush1.bf16.msra.mxu0 0
    %357 = vmatprep.subr.bf16.mxu0 0
    %358 = vmatpush1.bf16.msra.mxu0 0
    %359 = vmatprep.mubr.bf16.mxu0 0
    %360 = vmatmul.mubr.bf16.gmra.mrb[0].mxu0 %v248
    %v361 = vpop.f32.mrb[0].mxu0
    %v362 = vadd.f32 %v277, %v361
    %v363 = vpop.f32.mrb[0].mxu0
    %v364 = vpop.f32.mrb[0].mxu0
    %v365 = vadd.f32 %v277, %v364
    %v366 = vpop.f32.mrb[0].mxu0
    %367 = vmatprep.mubr.bf16.mxu0 0
    %368 = vmatmul.mubr.bf16.gmra.mrb[0].mxu0 %v249
    %v369 = vpop.f32.mrb[0].mxu0
    %v370 = vadd.f32 %v277, %v369
    %v371 = vpop.f32.mrb[0].mxu0
    %v372 = vpop.f32.mrb[0].mxu0
    %v373 = vadd.f32 %v277, %v372
    %v374 = vpop.f32.mrb[0].mxu0
    %375 = vmatprep.mubr.bf16.mxu0 0
    %376 = vmatmul.mubr.bf16.gmra.mrb[0].mxu0 %v250
    %v377 = vpop.f32.mrb[0].mxu0
    %v378 = vadd.f32 %v277, %v377
    %v379 = vpop.f32.mrb[0].mxu0
    %v380 = vpop.f32.mrb[0].mxu0
    %v381 = vadd.f32 %v277, %v380
    %v382 = vpop.f32.mrb[0].mxu0
    %383 = vmatprep.mubr.bf16.mxu0 0
    %384 = vmatmul.mubr.bf16.gmra.mrb[0].mxu0 %v251
    %v385 = vpop.f32.mrb[0].mxu0
    %v386 = vadd.f32 %v277, %v385
    %v387 = vpop.f32.mrb[0].mxu0
    %v388 = vpop.f32.mrb[0].mxu0
    %v389 = vadd.f32 %v277, %v388
    %v390 = vpop.f32.mrb[0].mxu0
    %391 = vmatprep.mubr.bf16.mxu0 0
    %392 = vmatmul.mubr.bf16.gmra.mrb[0].mxu0 %v252
    %v393 = vpop.f32.mrb[0].mxu0
    %v394 = vadd.f32 %v277, %v393
    %v395 = vpop.f32.mrb[0].mxu0
    %v396 = vpop.f32.mrb[0].mxu0
    %v397 = vadd.f32 %v277, %v396
    %v398 = vpop.f32.mrb[0].mxu0
    %399 = vmatprep.mubr.bf16.mxu0 0
    %400 = vmatmul.mubr.bf16.gmra.mrb[0].mxu0 %v253
    %v401 = vpop.f32.mrb[0].mxu0
    %v402 = vadd.f32 %v277, %v401
    %v403 = vpop.f32.mrb[0].mxu0
    %v404 = vpop.f32.mrb[0].mxu0
    %v405 = vadd.f32 %v277, %v404
    %v406 = vpop.f32.mrb[0].mxu0
    %407 = vmatprep.mubr.bf16.mxu0 0
    %408 = vmatmul.mubr.bf16.gmra.mrb[0].mxu0 %v254
    %v409 = vpop.f32.mrb[0].mxu0
    %v410 = vadd.f32 %v277, %v409
    %v411 = vpop.f32.mrb[0].mxu0
    %v412 = vpop.f32.mrb[0].mxu0
    %v413 = vadd.f32 %v277, %v412
    %v414 = vpop.f32.mrb[0].mxu0
    %415 = vmatprep.mubr.bf16.mxu0 0
    %416 = vmatmul.mubr.bf16.gmra.mrb[0].mxu0 %v255
    %v417 = vpop.f32.mrb[0].mxu0
    %v418 = vadd.f32 %v277, %v417
    %v419 = vpop.f32.mrb[0].mxu0
    %v420 = vpop.f32.mrb[0].mxu0
    %v421 = vadd.f32 %v277, %v420
    %v422 = vpop.f32.mrb[0].mxu0
    %423 = vdwg.mxu0
    %v424 = vmax.f32 %v362, 0.0
    %v425 = vmax.f32 %v365, 0.0
    %v426 = vmax.f32 %v370, 0.0
    %v427 = vmax.f32 %v373, 0.0
    %v428 = vmax.f32 %v378, 0.0
    %v429 = vmax.f32 %v381, 0.0
    %v430 = vmax.f32 %v386, 0.0
    %v431 = vmax.f32 %v389, 0.0
    %v432 = vmax.f32 %v394, 0.0
    %v433 = vmax.f32 %v397, 0.0
    %v434 = vmax.f32 %v402, 0.0
    %v435 = vmax.f32 %v405, 0.0
    %v436 = vmax.f32 %v410, 0.0
    %v437 = vmax.f32 %v413, 0.0
    %v438 = vmax.f32 %v418, 0.0
    %v439 = vmax.f32 %v421, 0.0
    %v440 = vpack.c.bf16 %v425, %v424
    %v441 = vpack.c.bf16 %v427, %v426
    %v442 = vpack.c.bf16 %v429, %v428
    %v443 = vpack.c.bf16 %v431, %v430
    %v444 = vpack.c.bf16 %v433, %v432
    %v445 = vpack.c.bf16 %v435, %v434
    %v446 = vpack.c.bf16 %v437, %v436
    %v447 = vpack.c.bf16 %v439, %v438
    %s448 = scalar_lea.vmem [#allocation7], 64
    %v449 = vld [vmem:[%s448] sm:$0xf]
    %v450 = vld [vmem:[%s448 + $0x4] sm:$0xf]
    %v451 = vld [vmem:[%s448 + $0x8] sm:$0xf]
    %v452 = vld [vmem:[%s448 + $0xc] sm:$0xf]
    %v453 = vld [vmem:[%s448 + $0x10] sm:$0xf]
    %v454 = vld [vmem:[%s448 + $0x14] sm:$0xf]
    %v455 = vld [vmem:[%s448 + $0x18] sm:$0xf]
    %v456 = vld [vmem:[%s448 + $0x1c] sm:$0xf]
    %v457 = vld [vmem:[%s448 + $0x20] sm:$0xf]
    %v458 = vld [vmem:[%s448 + $0x24] sm:$0xf]
    %v459 = vld [vmem:[%s448 + $0x28] sm:$0xf]
    %v460 = vld [vmem:[%s448 + $0x2c] sm:$0xf]
    %v461 = vld [vmem:[%s448 + $0x30] sm:$0xf]
    %v462 = vld [vmem:[%s448 + $0x34] sm:$0xf]
    %v463 = vld [vmem:[%s448 + $0x38] sm:$0xf]
    %v464 = vld [vmem:[%s448 + $0x3c] sm:$0xf]
    %s465 = scalar_lea.vmem %s4, 1
    %v466 = vld [vmem:[%s465] sm:$0x1]
    %v468 = vlaneseq
    %v469 = vshrl.u32 %v468, 7
    %v470 = vsub.s32 0, %v469
    %v471 = vrot.slane %v466, %v470
    %v489 = vunpack.c.l.b16 %v449
    %v490 = vunpack.c.l.b16 %v450
    %v491 = vunpack.c.l.b16 %v451
    %v492 = vunpack.c.l.b16 %v452
    %v493 = vunpack.c.l.b16 %v453
    %v494 = vunpack.c.l.b16 %v454
    %v495 = vunpack.c.l.b16 %v455
    %v496 = vunpack.c.l.b16 %v456
    %v497 = vunpack.c.l.b16 %v457
    %v498 = vunpack.c.l.b16 %v458
    %v499 = vunpack.c.l.b16 %v459
    %v500 = vunpack.c.l.b16 %v460
    %v501 = vunpack.c.l.b16 %v461
    %v502 = vunpack.c.l.b16 %v462
    %v503 = vunpack.c.l.b16 %v463
    %v504 = vunpack.c.l.b16 %v464
    %v505 = vpack.c.b16 %v490, %v489
    %v506 = vpack.c.b16 %v492, %v491
    %v507 = vpack.c.b16 %v494, %v493
    %v508 = vpack.c.b16 %v496, %v495
    %v509 = vpack.c.b16 %v498, %v497
    %v510 = vpack.c.b16 %v500, %v499
    %v511 = vpack.c.b16 %v502, %v501
    %v512 = vpack.c.b16 %v504, %v503
    %521 = vmatprep.subr.bf16.mxu0 0
    %522 = vmatpush1.bf16.msra.mxu0 %v505
    %523 = vmatprep.subr.bf16.mxu0 0
    %524 = vmatpush1.bf16.msra.mxu0 %v506
    %525 = vmatprep.subr.bf16.mxu0 0
    %526 = vmatpush1.bf16.msra.mxu0 %v507
    %527 = vmatprep.subr.bf16.mxu0 0
    %528 = vmatpush1.bf16.msra.mxu0 %v508
    %529 = vmatprep.subr.bf16.mxu0 0
    %530 = vmatpush1.bf16.msra.mxu0 %v509
    %531 = vmatprep.subr.bf16.mxu0 0
    %532 = vmatpush1.bf16.msra.mxu0 %v510
    %533 = vmatprep.subr.bf16.mxu0 0
    %534 = vmatpush1.bf16.msra.mxu0 %v511
    %535 = vmatprep.subr.bf16.mxu0 0
    %536 = vmatpush1.bf16.msra.mxu0 %v512
    %537 = vmatprep.subr.bf16.mxu0 0
    %538 = vmatpush1.bf16.msra.mxu0 0
    %539 = vmatprep.subr.bf16.mxu0 0
    %540 = vmatpush1.bf16.msra.mxu0 0
    %541 = vmatprep.subr.bf16.mxu0 0
    %542 = vmatpush1.bf16.msra.mxu0 0
    %543 = vmatprep.subr.bf16.mxu0 0
    %544 = vmatpush1.bf16.msra.mxu0 0
    %545 = vmatprep.subr.bf16.mxu0 0
    %546 = vmatpush1.bf16.msra.mxu0 0
    %547 = vmatprep.subr.bf16.mxu0 0
    %548 = vmatpush1.bf16.msra.mxu0 0
    %549 = vmatprep.subr.bf16.mxu0 0
    %550 = vmatpush1.bf16.msra.mxu0 0
    %551 = vmatprep.subr.bf16.mxu0 0
    %552 = vmatpush1.bf16.msra.mxu0 0
    %553 = vmatprep.mubr.bf16.mxu0 0
    %554 = vmatmul.mubr.bf16.gmra.mrb[0].mxu0 %v440
    %v555 = vpop.f32.mrb[0].mxu0
    %v556 = vadd.f32 %v471, %v555
    %v557 = vpop.f32.mrb[0].mxu0
    %v558 = vpop.f32.mrb[0].mxu0
    %v559 = vadd.f32 %v471, %v558
    %v560 = vpop.f32.mrb[0].mxu0
    %561 = vmatprep.mubr.bf16.mxu0 0
    %562 = vmatmul.mubr.bf16.gmra.mrb[0].mxu0 %v441
    %v563 = vpop.f32.mrb[0].mxu0
    %v564 = vadd.f32 %v471, %v563
    %v565 = vpop.f32.mrb[0].mxu0
    %v566 = vpop.f32.mrb[0].mxu0
    %v567 = vadd.f32 %v471, %v566
    %v568 = vpop.f32.mrb[0].mxu0
    %569 = vmatprep.mubr.bf16.mxu0 0
    %570 = vmatmul.mubr.bf16.gmra.mrb[0].mxu0 %v442
    %v571 = vpop.f32.mrb[0].mxu0
    %v572 = vadd.f32 %v471, %v571
    %v573 = vpop.f32.mrb[0].mxu0
    %v574 = vpop.f32.mrb[0].mxu0
    %v575 = vadd.f32 %v471, %v574
    %v576 = vpop.f32.mrb[0].mxu0
    %577 = vmatprep.mubr.bf16.mxu0 0
    %578 = vmatmul.mubr.bf16.gmra.mrb[0].mxu0 %v443
    %v579 = vpop.f32.mrb[0].mxu0
    %v580 = vadd.f32 %v471, %v579
    %v581 = vpop.f32.mrb[0].mxu0
    %v582 = vpop.f32.mrb[0].mxu0
    %v583 = vadd.f32 %v471, %v582
    %v584 = vpop.f32.mrb[0].mxu0
    %585 = vmatprep.mubr.bf16.mxu0 0
    %586 = vmatmul.mubr.bf16.gmra.mrb[0].mxu0 %v444
    %v587 = vpop.f32.mrb[0].mxu0
    %v588 = vadd.f32 %v471, %v587
    %v589 = vpop.f32.mrb[0].mxu0
    %v590 = vpop.f32.mrb[0].mxu0
    %v591 = vadd.f32 %v471, %v590
    %v592 = vpop.f32.mrb[0].mxu0
    %593 = vmatprep.mubr.bf16.mxu0 0
    %594 = vmatmul.mubr.bf16.gmra.mrb[0].mxu0 %v445
    %v595 = vpop.f32.mrb[0].mxu0
    %v596 = vadd.f32 %v471, %v595
    %v597 = vpop.f32.mrb[0].mxu0
    %v598 = vpop.f32.mrb[0].mxu0
    %v599 = vadd.f32 %v471, %v598
    %v600 = vpop.f32.mrb[0].mxu0
    %601 = vmatprep.mubr.bf16.mxu0 0
    %602 = vmatmul.mubr.bf16.gmra.mrb[0].mxu0 %v446
    %v603 = vpop.f32.mrb[0].mxu0
    %v604 = vadd.f32 %v471, %v603
    %v605 = vpop.f32.mrb[0].mxu0
    %v606 = vpop.f32.mrb[0].mxu0
    %v607 = vadd.f32 %v471, %v606
    %v608 = vpop.f32.mrb[0].mxu0
    %609 = vmatprep.mubr.bf16.mxu0 0
    %610 = vmatmul.mubr.bf16.gmra.mrb[0].mxu0 %v447
    %v611 = vpop.f32.mrb[0].mxu0
    %v612 = vadd.f32 %v471, %v611
    %v613 = vpop.f32.mrb[0].mxu0
    %v614 = vpop.f32.mrb[0].mxu0
    %v615 = vadd.f32 %v471, %v614
    %v616 = vpop.f32.mrb[0].mxu0
    %617 = vdwg.mxu0
    %v618 = vmax.f32 %v556, 0.0
    %v619 = vmax.f32 %v559, 0.0
    %v620 = vmax.f32 %v564, 0.0
    %v621 = vmax.f32 %v567, 0.0
    %v622 = vmax.f32 %v572, 0.0
    %v623 = vmax.f32 %v575, 0.0
    %v624 = vmax.f32 %v580, 0.0
    %v625 = vmax.f32 %v583, 0.0
    %v626 = vmax.f32 %v588, 0.0
    %v627 = vmax.f32 %v591, 0.0
    %v628 = vmax.f32 %v596, 0.0
    %v629 = vmax.f32 %v599, 0.0
    %v630 = vmax.f32 %v604, 0.0
    %v631 = vmax.f32 %v607, 0.0
    %v632 = vmax.f32 %v612, 0.0
    %v633 = vmax.f32 %v615, 0.0
    %v634 = vpack.c.bf16 %v619, %v618
    %v635 = vpack.c.bf16 %v621, %v620
    %v636 = vpack.c.bf16 %v623, %v622
    %v637 = vpack.c.bf16 %v625, %v624
    %v638 = vpack.c.bf16 %v627, %v626
    %v639 = vpack.c.bf16 %v629, %v628
    %v640 = vpack.c.bf16 %v631, %v630
    %v641 = vpack.c.bf16 %v633, %v632
    %642 = vmatprep.subr.bf16.mxu0 0
    %643 = vmatpush1.bf16.msra.mxu0 %v634
    %644 = vmatprep.subr.bf16.mxu0 0
    %645 = vmatpush1.bf16.msra.mxu0 %v635
    %646 = vmatprep.subr.bf16.mxu0 0
    %647 = vmatpush1.bf16.msra.mxu0 %v636
    %648 = vmatprep.subr.bf16.mxu0 0
    %649 = vmatpush1.bf16.msra.mxu0 %v637
    %650 = vmatprep.subr.bf16.mxu0 0
    %651 = vmatpush1.bf16.msra.mxu0 %v638
    %652 = vmatprep.subr.bf16.mxu0 0
    %653 = vmatpush1.bf16.msra.mxu0 %v639
    %654 = vmatprep.subr.bf16.mxu0 0
    %655 = vmatpush1.bf16.msra.mxu0 %v640
    %656 = vmatprep.subr.bf16.mxu0 0
    %657 = vmatpush1.bf16.msra.mxu0 %v641
    %658 = vmatprep.subr.bf16.mxu0 0
    %659 = vmatpush1.bf16.msra.mxu0 0
    %660 = vmatprep.subr.bf16.mxu0 0
    %661 = vmatpush1.bf16.msra.mxu0 0
    %662 = vmatprep.subr.bf16.mxu0 0
    %663 = vmatpush1.bf16.msra.mxu0 0
    %664 = vmatprep.subr.bf16.mxu0 0
    %665 = vmatpush1.bf16.msra.mxu0 0
    %666 = vmatprep.subr.bf16.mxu0 0
    %667 = vmatpush1.bf16.msra.mxu0 0
    %668 = vmatprep.subr.bf16.mxu0 0
    %669 = vmatpush1.bf16.msra.mxu0 0
    %670 = vmatprep.subr.bf16.mxu0 0
    %671 = vmatpush1.bf16.msra.mxu0 0
    %672 = vmatprep.subr.bf16.mxu0 0
    %673 = vmatpush1.bf16.msra.mxu0 0
    %674 = vmatprep.mubr.bf16.mxu0 0
    %675 = vmatmul.mubr.bf16.gmra.mrb[0].mxu0 %v135
    %v676 = vpop.f32.mrb[0].mxu0
    %v677 = vadd.f32 0.0, %v676
    %v678 = vpop.f32.mrb[0].mxu0
    %v679 = vpop.f32.mrb[0].mxu0
    %v680 = vadd.f32 0.0, %v679
    %v681 = vpop.f32.mrb[0].mxu0
    %682 = vmatprep.mubr.bf16.mxu0 0
    %683 = vmatmul.mubr.bf16.gmra.mrb[0].mxu0 %v136
    %v684 = vpop.f32.mrb[0].mxu0
    %v685 = vadd.f32 0.0, %v684
    %v686 = vpop.f32.mrb[0].mxu0
    %v687 = vpop.f32.mrb[0].mxu0
    %v688 = vadd.f32 0.0, %v687
    %v689 = vpop.f32.mrb[0].mxu0
    %690 = vmatprep.mubr.bf16.mxu0 0
    %691 = vmatmul.mubr.bf16.gmra.mrb[0].mxu0 %v137
    %v692 = vpop.f32.mrb[0].mxu0
    %v693 = vadd.f32 0.0, %v692
    %v694 = vpop.f32.mrb[0].mxu0
    %v695 = vpop.f32.mrb[0].mxu0
    %v696 = vadd.f32 0.0, %v695
    %v697 = vpop.f32.mrb[0].mxu0
    %698 = vmatprep.mubr.bf16.mxu0 0
    %699 = vmatmul.mubr.bf16.gmra.mrb[0].mxu0 %v138
    %v700 = vpop.f32.mrb[0].mxu0
    %v701 = vadd.f32 0.0, %v700
    %v702 = vpop.f32.mrb[0].mxu0
    %v703 = vpop.f32.mrb[0].mxu0
    %v704 = vadd.f32 0.0, %v703
    %v705 = vpop.f32.mrb[0].mxu0
    %706 = vmatprep.mubr.bf16.mxu0 0
    %707 = vmatmul.mubr.bf16.gmra.mrb[0].mxu0 %v139
    %v708 = vpop.f32.mrb[0].mxu0
    %v709 = vadd.f32 0.0, %v708
    %v710 = vpop.f32.mrb[0].mxu0
    %v711 = vpop.f32.mrb[0].mxu0
    %v712 = vadd.f32 0.0, %v711
    %v713 = vpop.f32.mrb[0].mxu0
    %714 = vmatprep.mubr.bf16.mxu0 0
    %715 = vmatmul.mubr.bf16.gmra.mrb[0].mxu0 %v140
    %v716 = vpop.f32.mrb[0].mxu0
    %v717 = vadd.f32 0.0, %v716
    %v718 = vpop.f32.mrb[0].mxu0
    %v719 = vpop.f32.mrb[0].mxu0
    %v720 = vadd.f32 0.0, %v719
    %v721 = vpop.f32.mrb[0].mxu0
    %722 = vmatprep.mubr.bf16.mxu0 0
    %723 = vmatmul.mubr.bf16.gmra.mrb[0].mxu0 %v141
    %v724 = vpop.f32.mrb[0].mxu0
    %v725 = vadd.f32 0.0, %v724
    %v726 = vpop.f32.mrb[0].mxu0
    %v727 = vpop.f32.mrb[0].mxu0
    %v728 = vadd.f32 0.0, %v727
    %v729 = vpop.f32.mrb[0].mxu0
    %730 = vmatprep.mubr.bf16.mxu0 0
    %731 = vmatmul.mubr.bf16.gmra.mrb[0].mxu0 %v142
    %v732 = vpop.f32.mrb[0].mxu0
    %v733 = vadd.f32 0.0, %v732
    %v734 = vpop.f32.mrb[0].mxu0
    %v735 = vpop.f32.mrb[0].mxu0
    %v736 = vadd.f32 0.0, %v735
    %v737 = vpop.f32.mrb[0].mxu0
    %738 = vdwg.mxu0
    %v739 = vpack.c.bf16 %v680, %v677
    %v740 = vpack.c.bf16 %v688, %v685
    %v741 = vpack.c.bf16 %v696, %v693
    %v742 = vpack.c.bf16 %v704, %v701
    %v743 = vpack.c.bf16 %v712, %v709
    %v744 = vpack.c.bf16 %v720, %v717
    %v745 = vpack.c.bf16 %v728, %v725
    %v746 = vpack.c.bf16 %v736, %v733
    %s747 = scalar_lea.vmem [#allocation7], 128
    %v748 = vld [vmem:[%s747] sm:$0xf]
    %v749 = vld [vmem:[%s747 + $0x4] sm:$0xf]
    %v750 = vld [vmem:[%s747 + $0x8] sm:$0xf]
    %v751 = vld [vmem:[%s747 + $0xc] sm:$0xf]
    %v752 = vld [vmem:[%s747 + $0x10] sm:$0xf]
    %v753 = vld [vmem:[%s747 + $0x14] sm:$0xf]
    %v754 = vld [vmem:[%s747 + $0x18] sm:$0xf]
    %v755 = vld [vmem:[%s747 + $0x1c] sm:$0xf]
    %v756 = vld [vmem:[%s747 + $0x20] sm:$0xf]
    %v757 = vld [vmem:[%s747 + $0x24] sm:$0xf]
    %v758 = vld [vmem:[%s747 + $0x28] sm:$0xf]
    %v759 = vld [vmem:[%s747 + $0x2c] sm:$0xf]
    %v760 = vld [vmem:[%s747 + $0x30] sm:$0xf]
    %v761 = vld [vmem:[%s747 + $0x34] sm:$0xf]
    %v762 = vld [vmem:[%s747 + $0x38] sm:$0xf]
    %v763 = vld [vmem:[%s747 + $0x3c] sm:$0xf]
    %s764 = scalar_lea.vmem %s4, 2
    %v765 = vld [vmem:[%s764] sm:$0x1]
    %v767 = vlaneseq
    %v768 = vshrl.u32 %v767, 7
    %v769 = vsub.s32 0, %v768
    %v770 = vrot.slane %v765, %v769
    %v788 = vunpack.c.l.b16 %v748
    %v789 = vunpack.c.l.b16 %v749
    %v790 = vunpack.c.l.b16 %v750
    %v791 = vunpack.c.l.b16 %v751
    %v792 = vunpack.c.l.b16 %v752
    %v793 = vunpack.c.l.b16 %v753
    %v794 = vunpack.c.l.b16 %v754
    %v795 = vunpack.c.l.b16 %v755
    %v796 = vunpack.c.l.b16 %v756
    %v797 = vunpack.c.l.b16 %v757
    %v798 = vunpack.c.l.b16 %v758
    %v799 = vunpack.c.l.b16 %v759
    %v800 = vunpack.c.l.b16 %v760
    %v801 = vunpack.c.l.b16 %v761
    %v802 = vunpack.c.l.b16 %v762
    %v803 = vunpack.c.l.b16 %v763
    %v804 = vpack.c.b16 %v789, %v788
    %v805 = vpack.c.b16 %v791, %v790
    %v806 = vpack.c.b16 %v793, %v792
    %v807 = vpack.c.b16 %v795, %v794
    %v808 = vpack.c.b16 %v797, %v796
    %v809 = vpack.c.b16 %v799, %v798
    %v810 = vpack.c.b16 %v801, %v800
    %v811 = vpack.c.b16 %v803, %v802
    %820 = vmatprep.subr.bf16.mxu0 0
    %821 = vmatpush1.bf16.msra.mxu0 %v804
    %822 = vmatprep.subr.bf16.mxu0 0
    %823 = vmatpush1.bf16.msra.mxu0 %v805
    %824 = vmatprep.subr.bf16.mxu0 0
    %825 = vmatpush1.bf16.msra.mxu0 %v806
    %826 = vmatprep.subr.bf16.mxu0 0
    %827 = vmatpush1.bf16.msra.mxu0 %v807
    %828 = vmatprep.subr.bf16.mxu0 0
    %829 = vmatpush1.bf16.msra.mxu0 %v808
    %830 = vmatprep.subr.bf16.mxu0 0
    %831 = vmatpush1.bf16.msra.mxu0 %v809
    %832 = vmatprep.subr.bf16.mxu0 0
    %833 = vmatpush1.bf16.msra.mxu0 %v810
    %834 = vmatprep.subr.bf16.mxu0 0
    %835 = vmatpush1.bf16.msra.mxu0 %v811
    %836 = vmatprep.subr.bf16.mxu0 0
    %837 = vmatpush1.bf16.msra.mxu0 0
    %838 = vmatprep.subr.bf16.mxu0 0
    %839 = vmatpush1.bf16.msra.mxu0 0
    %840 = vmatprep.subr.bf16.mxu0 0
    %841 = vmatpush1.bf16.msra.mxu0 0
    %842 = vmatprep.subr.bf16.mxu0 0
    %843 = vmatpush1.bf16.msra.mxu0 0
    %844 = vmatprep.subr.bf16.mxu0 0
    %845 = vmatpush1.bf16.msra.mxu0 0
    %846 = vmatprep.subr.bf16.mxu0 0
    %847 = vmatpush1.bf16.msra.mxu0 0
    %848 = vmatprep.subr.bf16.mxu0 0
    %849 = vmatpush1.bf16.msra.mxu0 0
    %850 = vmatprep.subr.bf16.mxu0 0
    %851 = vmatpush1.bf16.msra.mxu0 0
    %852 = vmatprep.mubr.bf16.mxu0 0
    %853 = vmatmul.mubr.bf16.gmra.mrb[0].mxu0 %v739
    %v854 = vpop.f32.mrb[0].mxu0
    %v855 = vadd.f32 %v770, %v854
    %v856 = vpop.f32.mrb[0].mxu0
    %v857 = vpop.f32.mrb[0].mxu0
    %v858 = vadd.f32 %v770, %v857
    %v859 = vpop.f32.mrb[0].mxu0
    %860 = vmatprep.mubr.bf16.mxu0 0
    %861 = vmatmul.mubr.bf16.gmra.mrb[0].mxu0 %v740
    %v862 = vpop.f32.mrb[0].mxu0
    %v863 = vadd.f32 %v770, %v862
    %v864 = vpop.f32.mrb[0].mxu0
    %v865 = vpop.f32.mrb[0].mxu0
    %v866 = vadd.f32 %v770, %v865
    %v867 = vpop.f32.mrb[0].mxu0
    %868 = vmatprep.mubr.bf16.mxu0 0
    %869 = vmatmul.mubr.bf16.gmra.mrb[0].mxu0 %v741
    %v870 = vpop.f32.mrb[0].mxu0
    %v871 = vadd.f32 %v770, %v870
    %v872 = vpop.f32.mrb[0].mxu0
    %v873 = vpop.f32.mrb[0].mxu0
    %v874 = vadd.f32 %v770, %v873
    %v875 = vpop.f32.mrb[0].mxu0
    %876 = vmatprep.mubr.bf16.mxu0 0
    %877 = vmatmul.mubr.bf16.gmra.mrb[0].mxu0 %v742
    %v878 = vpop.f32.mrb[0].mxu0
    %v879 = vadd.f32 %v770, %v878
    %v880 = vpop.f32.mrb[0].mxu0
    %v881 = vpop.f32.mrb[0].mxu0
    %v882 = vadd.f32 %v770, %v881
    %v883 = vpop.f32.mrb[0].mxu0
    %884 = vmatprep.mubr.bf16.mxu0 0
    %885 = vmatmul.mubr.bf16.gmra.mrb[0].mxu0 %v743
    %v886 = vpop.f32.mrb[0].mxu0
    %v887 = vadd.f32 %v770, %v886
    %v888 = vpop.f32.mrb[0].mxu0
    %v889 = vpop.f32.mrb[0].mxu0
    %v890 = vadd.f32 %v770, %v889
    %v891 = vpop.f32.mrb[0].mxu0
    %892 = vmatprep.mubr.bf16.mxu0 0
    %893 = vmatmul.mubr.bf16.gmra.mrb[0].mxu0 %v744
    %v894 = vpop.f32.mrb[0].mxu0
    %v895 = vadd.f32 %v770, %v894
    %v896 = vpop.f32.mrb[0].mxu0
    %v897 = vpop.f32.mrb[0].mxu0
    %v898 = vadd.f32 %v770, %v897
    %v899 = vpop.f32.mrb[0].mxu0
    %900 = vmatprep.mubr.bf16.mxu0 0
    %901 = vmatmul.mubr.bf16.gmra.mrb[0].mxu0 %v745
    %v902 = vpop.f32.mrb[0].mxu0
    %v903 = vadd.f32 %v770, %v902
    %v904 = vpop.f32.mrb[0].mxu0
    %v905 = vpop.f32.mrb[0].mxu0
    %v906 = vadd.f32 %v770, %v905
    %v907 = vpop.f32.mrb[0].mxu0
    %908 = vmatprep.mubr.bf16.mxu0 0
    %909 = vmatmul.mubr.bf16.gmra.mrb[0].mxu0 %v746
    %v910 = vpop.f32.mrb[0].mxu0
    %v911 = vadd.f32 %v770, %v910
    %v912 = vpop.f32.mrb[0].mxu0
    %v913 = vpop.f32.mrb[0].mxu0
    %v914 = vadd.f32 %v770, %v913
    %v915 = vpop.f32.mrb[0].mxu0
    %916 = vdwg.mxu0
    %v917 = vmax.f32 %v855, 0.0
    %v918 = vmax.f32 %v858, 0.0
    %v919 = vmax.f32 %v863, 0.0
    %v920 = vmax.f32 %v866, 0.0
    %v921 = vmax.f32 %v871, 0.0
    %v922 = vmax.f32 %v874, 0.0
    %v923 = vmax.f32 %v879, 0.0
    %v924 = vmax.f32 %v882, 0.0
    %v925 = vmax.f32 %v887, 0.0
    %v926 = vmax.f32 %v890, 0.0
    %v927 = vmax.f32 %v895, 0.0
    %v928 = vmax.f32 %v898, 0.0
    %v929 = vmax.f32 %v903, 0.0
    %v930 = vmax.f32 %v906, 0.0
    %v931 = vmax.f32 %v911, 0.0
    %v932 = vmax.f32 %v914, 0.0
    %v933 = vpack.c.bf16 %v918, %v917
    %v934 = vpack.c.bf16 %v920, %v919
    %v935 = vpack.c.bf16 %v922, %v921
    %v936 = vpack.c.bf16 %v924, %v923
    %v937 = vpack.c.bf16 %v926, %v925
    %v938 = vpack.c.bf16 %v928, %v927
    %v939 = vpack.c.bf16 %v930, %v929
    %v940 = vpack.c.bf16 %v932, %v931
    %s941 = scalar_lea.vmem [#allocation7], 192
    %v942 = vld [vmem:[%s941] sm:$0xf]
    %v943 = vld [vmem:[%s941 + $0x4] sm:$0xf]
    %v944 = vld [vmem:[%s941 + $0x8] sm:$0xf]
    %v945 = vld [vmem:[%s941 + $0xc] sm:$0xf]
    %v946 = vld [vmem:[%s941 + $0x10] sm:$0xf]
    %v947 = vld [vmem:[%s941 + $0x14] sm:$0xf]
    %v948 = vld [vmem:[%s941 + $0x18] sm:$0xf]
    %v949 = vld [vmem:[%s941 + $0x1c] sm:$0xf]
    %v950 = vld [vmem:[%s941 + $0x20] sm:$0xf]
    %v951 = vld [vmem:[%s941 + $0x24] sm:$0xf]
    %v952 = vld [vmem:[%s941 + $0x28] sm:$0xf]
    %v953 = vld [vmem:[%s941 + $0x2c] sm:$0xf]
    %v954 = vld [vmem:[%s941 + $0x30] sm:$0xf]
    %v955 = vld [vmem:[%s941 + $0x34] sm:$0xf]
    %v956 = vld [vmem:[%s941 + $0x38] sm:$0xf]
    %v957 = vld [vmem:[%s941 + $0x3c] sm:$0xf]
    %s958 = scalar_lea.vmem %s4, 3
    %v959 = vld [vmem:[%s958] sm:$0x1]
    %v961 = vlaneseq
    %v962 = vshrl.u32 %v961, 7
    %v963 = vsub.s32 0, %v962
    %v964 = vrot.slane %v959, %v963
    %v982 = vunpack.c.l.b16 %v942
    %v983 = vunpack.c.l.b16 %v943
    %v984 = vunpack.c.l.b16 %v944
    %v985 = vunpack.c.l.b16 %v945
    %v986 = vunpack.c.l.b16 %v946
    %v987 = vunpack.c.l.b16 %v947
    %v988 = vunpack.c.l.b16 %v948
    %v989 = vunpack.c.l.b16 %v949
    %v990 = vunpack.c.l.b16 %v950
    %v991 = vunpack.c.l.b16 %v951
    %v992 = vunpack.c.l.b16 %v952
    %v993 = vunpack.c.l.b16 %v953
    %v994 = vunpack.c.l.b16 %v954
    %v995 = vunpack.c.l.b16 %v955
    %v996 = vunpack.c.l.b16 %v956
    %v997 = vunpack.c.l.b16 %v957
    %v998 = vpack.c.b16 %v983, %v982
    %v999 = vpack.c.b16 %v985, %v984
    %v1000 = vpack.c.b16 %v987, %v986
    %v1001 = vpack.c.b16 %v989, %v988
    %v1002 = vpack.c.b16 %v991, %v990
    %v1003 = vpack.c.b16 %v993, %v992
    %v1004 = vpack.c.b16 %v995, %v994
    %v1005 = vpack.c.b16 %v997, %v996
    %1014 = vmatprep.subr.bf16.mxu0 0
    %1015 = vmatpush1.bf16.msra.mxu0 %v998
    %1016 = vmatprep.subr.bf16.mxu0 0
    %1017 = vmatpush1.bf16.msra.mxu0 %v999
    %1018 = vmatprep.subr.bf16.mxu0 0
    %1019 = vmatpush1.bf16.msra.mxu0 %v1000
    %1020 = vmatprep.subr.bf16.mxu0 0
    %1021 = vmatpush1.bf16.msra.mxu0 %v1001
    %1022 = vmatprep.subr.bf16.mxu0 0
    %1023 = vmatpush1.bf16.msra.mxu0 %v1002
    %1024 = vmatprep.subr.bf16.mxu0 0
    %1025 = vmatpush1.bf16.msra.mxu0 %v1003
    %1026 = vmatprep.subr.bf16.mxu0 0
    %1027 = vmatpush1.bf16.msra.mxu0 %v1004
    %1028 = vmatprep.subr.bf16.mxu0 0
    %1029 = vmatpush1.bf16.msra.mxu0 %v1005
    %1030 = vmatprep.subr.bf16.mxu0 0
    %1031 = vmatpush1.bf16.msra.mxu0 0
    %1032 = vmatprep.subr.bf16.mxu0 0
    %1033 = vmatpush1.bf16.msra.mxu0 0
    %1034 = vmatprep.subr.bf16.mxu0 0
    %1035 = vmatpush1.bf16.msra.mxu0 0
    %1036 = vmatprep.subr.bf16.mxu0 0
    %1037 = vmatpush1.bf16.msra.mxu0 0
    %1038 = vmatprep.subr.bf16.mxu0 0
    %1039 = vmatpush1.bf16.msra.mxu0 0
    %1040 = vmatprep.subr.bf16.mxu0 0
    %1041 = vmatpush1.bf16.msra.mxu0 0
    %1042 = vmatprep.subr.bf16.mxu0 0
    %1043 = vmatpush1.bf16.msra.mxu0 0
    %1044 = vmatprep.subr.bf16.mxu0 0
    %1045 = vmatpush1.bf16.msra.mxu0 0
    %1046 = vmatprep.mubr.bf16.mxu0 0
    %1047 = vmatmul.mubr.bf16.gmra.mrb[0].mxu0 %v933
    %v1048 = vpop.f32.mrb[0].mxu0
    %v1049 = vadd.f32 %v964, %v1048
    %v1050 = vpop.f32.mrb[0].mxu0
    %v1051 = vpop.f32.mrb[0].mxu0
    %v1052 = vadd.f32 %v964, %v1051
    %v1053 = vpop.f32.mrb[0].mxu0
    %1054 = vmatprep.mubr.bf16.mxu0 0
    %1055 = vmatmul.mubr.bf16.gmra.mrb[0].mxu0 %v934
    %v1056 = vpop.f32.mrb[0].mxu0
    %v1057 = vadd.f32 %v964, %v1056
    %v1058 = vpop.f32.mrb[0].mxu0
    %v1059 = vpop.f32.mrb[0].mxu0
    %v1060 = vadd.f32 %v964, %v1059
    %v1061 = vpop.f32.mrb[0].mxu0
    %1062 = vmatprep.mubr.bf16.mxu0 0
    %1063 = vmatmul.mubr.bf16.gmra.mrb[0].mxu0 %v935
    %v1064 = vpop.f32.mrb[0].mxu0
    %v1065 = vadd.f32 %v964, %v1064
    %v1066 = vpop.f32.mrb[0].mxu0
    %v1067 = vpop.f32.mrb[0].mxu0
    %v1068 = vadd.f32 %v964, %v1067
    %v1069 = vpop.f32.mrb[0].mxu0
    %1070 = vmatprep.mubr.bf16.mxu0 0
    %1071 = vmatmul.mubr.bf16.gmra.mrb[0].mxu0 %v936
    %v1072 = vpop.f32.mrb[0].mxu0
    %v1073 = vadd.f32 %v964, %v1072
    %v1074 = vpop.f32.mrb[0].mxu0
    %v1075 = vpop.f32.mrb[0].mxu0
    %v1076 = vadd.f32 %v964, %v1075
    %v1077 = vpop.f32.mrb[0].mxu0
    %1078 = vmatprep.mubr.bf16.mxu0 0
    %1079 = vmatmul.mubr.bf16.gmra.mrb[0].mxu0 %v937
    %v1080 = vpop.f32.mrb[0].mxu0
    %v1081 = vadd.f32 %v964, %v1080
    %v1082 = vpop.f32.mrb[0].mxu0
    %v1083 = vpop.f32.mrb[0].mxu0
    %v1084 = vadd.f32 %v964, %v1083
    %v1085 = vpop.f32.mrb[0].mxu0
    %1086 = vmatprep.mubr.bf16.mxu0 0
    %1087 = vmatmul.mubr.bf16.gmra.mrb[0].mxu0 %v938
    %v1088 = vpop.f32.mrb[0].mxu0
    %v1089 = vadd.f32 %v964, %v1088
    %v1090 = vpop.f32.mrb[0].mxu0
    %v1091 = vpop.f32.mrb[0].mxu0
    %v1092 = vadd.f32 %v964, %v1091
    %v1093 = vpop.f32.mrb[0].mxu0
    %1094 = vmatprep.mubr.bf16.mxu0 0
    %1095 = vmatmul.mubr.bf16.gmra.mrb[0].mxu0 %v939
    %v1096 = vpop.f32.mrb[0].mxu0
    %v1097 = vadd.f32 %v964, %v1096
    %v1098 = vpop.f32.mrb[0].mxu0
    %v1099 = vpop.f32.mrb[0].mxu0
    %v1100 = vadd.f32 %v964, %v1099
    %v1101 = vpop.f32.mrb[0].mxu0
    %1102 = vmatprep.mubr.bf16.mxu0 0
    %1103 = vmatmul.mubr.bf16.gmra.mrb[0].mxu0 %v940
    %v1104 = vpop.f32.mrb[0].mxu0
    %v1105 = vadd.f32 %v964, %v1104
    %v1106 = vpop.f32.mrb[0].mxu0
    %v1107 = vpop.f32.mrb[0].mxu0
    %v1108 = vadd.f32 %v964, %v1107
    %v1109 = vpop.f32.mrb[0].mxu0
    %1110 = vdwg.mxu0
    %v1111 = vmax.f32 %v1049, 0.0
    %v1112 = vmax.f32 %v1052, 0.0
    %v1113 = vmax.f32 %v1057, 0.0
    %v1114 = vmax.f32 %v1060, 0.0
    %v1115 = vmax.f32 %v1065, 0.0
    %v1116 = vmax.f32 %v1068, 0.0
    %v1117 = vmax.f32 %v1073, 0.0
    %v1118 = vmax.f32 %v1076, 0.0
    %v1119 = vmax.f32 %v1081, 0.0
    %v1120 = vmax.f32 %v1084, 0.0
    %v1121 = vmax.f32 %v1089, 0.0
    %v1122 = vmax.f32 %v1092, 0.0
    %v1123 = vmax.f32 %v1097, 0.0
    %v1124 = vmax.f32 %v1100, 0.0
    %v1125 = vmax.f32 %v1105, 0.0
    %v1126 = vmax.f32 %v1108, 0.0
    %v1127 = vpack.c.bf16 %v1112, %v1111
    %v1128 = vpack.c.bf16 %v1114, %v1113
    %v1129 = vpack.c.bf16 %v1116, %v1115
    %v1130 = vpack.c.bf16 %v1118, %v1117
    %v1131 = vpack.c.bf16 %v1120, %v1119
    %v1132 = vpack.c.bf16 %v1122, %v1121
    %v1133 = vpack.c.bf16 %v1124, %v1123
    %v1134 = vpack.c.bf16 %v1126, %v1125
    %1135 = vmatprep.subr.bf16.mxu0 0
    %1136 = vmatpush1.bf16.msra.mxu0 %v1127
    %1137 = vmatprep.subr.bf16.mxu0 0
    %1138 = vmatpush1.bf16.msra.mxu0 %v1128
    %1139 = vmatprep.subr.bf16.mxu0 0
    %1140 = vmatpush1.bf16.msra.mxu0 %v1129
    %1141 = vmatprep.subr.bf16.mxu0 0
    %1142 = vmatpush1.bf16.msra.mxu0 %v1130
    %1143 = vmatprep.subr.bf16.mxu0 0
    %1144 = vmatpush1.bf16.msra.mxu0 %v1131
    %1145 = vmatprep.subr.bf16.mxu0 0
    %1146 = vmatpush1.bf16.msra.mxu0 %v1132
    %1147 = vmatprep.subr.bf16.mxu0 0
    %1148 = vmatpush1.bf16.msra.mxu0 %v1133
    %1149 = vmatprep.subr.bf16.mxu0 0
    %1150 = vmatpush1.bf16.msra.mxu0 %v1134
    %1151 = vmatprep.subr.bf16.mxu0 0
    %1152 = vmatpush1.bf16.msra.mxu0 0
    %1153 = vmatprep.subr.bf16.mxu0 0
    %1154 = vmatpush1.bf16.msra.mxu0 0
    %1155 = vmatprep.subr.bf16.mxu0 0
    %1156 = vmatpush1.bf16.msra.mxu0 0
    %1157 = vmatprep.subr.bf16.mxu0 0
    %1158 = vmatpush1.bf16.msra.mxu0 0
    %1159 = vmatprep.subr.bf16.mxu0 0
    %1160 = vmatpush1.bf16.msra.mxu0 0
    %1161 = vmatprep.subr.bf16.mxu0 0
    %1162 = vmatpush1.bf16.msra.mxu0 0
    %1163 = vmatprep.subr.bf16.mxu0 0
    %1164 = vmatpush1.bf16.msra.mxu0 0
    %1165 = vmatprep.subr.bf16.mxu0 0
    %1166 = vmatpush1.bf16.msra.mxu0 0
    %1167 = vmatprep.mubr.bf16.mxu0 0
    %1168 = vmatmul.mubr.bf16.gmra.mrb[0].mxu0 %v135
    %v1169 = vpop.f32.mrb[0].mxu0
    %v1170 = vadd.f32 0.0, %v1169
    %v1171 = vpop.f32.mrb[0].mxu0
    %v1172 = vpop.f32.mrb[0].mxu0
    %v1173 = vadd.f32 0.0, %v1172
    %v1174 = vpop.f32.mrb[0].mxu0
    %1175 = vmatprep.mubr.bf16.mxu0 0
    %1176 = vmatmul.mubr.bf16.gmra.mrb[0].mxu0 %v136
    %v1177 = vpop.f32.mrb[0].mxu0
    %v1178 = vadd.f32 0.0, %v1177
    %v1179 = vpop.f32.mrb[0].mxu0
    %v1180 = vpop.f32.mrb[0].mxu0
    %v1181 = vadd.f32 0.0, %v1180
    %v1182 = vpop.f32.mrb[0].mxu0
    %1183 = vmatprep.mubr.bf16.mxu0 0
    %1184 = vmatmul.mubr.bf16.gmra.mrb[0].mxu0 %v137
    %v1185 = vpop.f32.mrb[0].mxu0
    %v1186 = vadd.f32 0.0, %v1185
    %v1187 = vpop.f32.mrb[0].mxu0
    %v1188 = vpop.f32.mrb[0].mxu0
    %v1189 = vadd.f32 0.0, %v1188
    %v1190 = vpop.f32.mrb[0].mxu0
    %1191 = vmatprep.mubr.bf16.mxu0 0
    %1192 = vmatmul.mubr.bf16.gmra.mrb[0].mxu0 %v138
    %v1193 = vpop.f32.mrb[0].mxu0
    %v1194 = vadd.f32 0.0, %v1193
    %v1195 = vpop.f32.mrb[0].mxu0
    %v1196 = vpop.f32.mrb[0].mxu0
    %v1197 = vadd.f32 0.0, %v1196
    %v1198 = vpop.f32.mrb[0].mxu0
    %1199 = vmatprep.mubr.bf16.mxu0 0
    %1200 = vmatmul.mubr.bf16.gmra.mrb[0].mxu0 %v139
    %v1201 = vpop.f32.mrb[0].mxu0
    %v1202 = vadd.f32 0.0, %v1201
    %v1203 = vpop.f32.mrb[0].mxu0
    %v1204 = vpop.f32.mrb[0].mxu0
    %v1205 = vadd.f32 0.0, %v1204
    %v1206 = vpop.f32.mrb[0].mxu0
    %1207 = vmatprep.mubr.bf16.mxu0 0
    %1208 = vmatmul.mubr.bf16.gmra.mrb[0].mxu0 %v140
    %v1209 = vpop.f32.mrb[0].mxu0
    %v1210 = vadd.f32 0.0, %v1209
    %v1211 = vpop.f32.mrb[0].mxu0
    %v1212 = vpop.f32.mrb[0].mxu0
    %v1213 = vadd.f32 0.0, %v1212
    %v1214 = vpop.f32.mrb[0].mxu0
    %1215 = vmatprep.mubr.bf16.mxu0 0
    %1216 = vmatmul.mubr.bf16.gmra.mrb[0].mxu0 %v141
    %v1217 = vpop.f32.mrb[0].mxu0
    %v1218 = vadd.f32 0.0, %v1217
    %v1219 = vpop.f32.mrb[0].mxu0
    %v1220 = vpop.f32.mrb[0].mxu0
    %v1221 = vadd.f32 0.0, %v1220
    %v1222 = vpop.f32.mrb[0].mxu0
    %1223 = vmatprep.mubr.bf16.mxu0 0
    %1224 = vmatmul.mubr.bf16.gmra.mrb[0].mxu0 %v142
    %v1225 = vpop.f32.mrb[0].mxu0
    %v1226 = vadd.f32 0.0, %v1225
    %v1227 = vpop.f32.mrb[0].mxu0
    %v1228 = vpop.f32.mrb[0].mxu0
    %v1229 = vadd.f32 0.0, %v1228
    %v1230 = vpop.f32.mrb[0].mxu0
    %1231 = vdwg.mxu0
    %v1232 = vpack.c.bf16 %v1173, %v1170
    %v1233 = vpack.c.bf16 %v1181, %v1178
    %v1234 = vpack.c.bf16 %v1189, %v1186
    %v1235 = vpack.c.bf16 %v1197, %v1194
    %v1236 = vpack.c.bf16 %v1205, %v1202
    %v1237 = vpack.c.bf16 %v1213, %v1210
    %v1238 = vpack.c.bf16 %v1221, %v1218
    %v1239 = vpack.c.bf16 %v1229, %v1226
    %s1240 = scalar_lea.vmem [#allocation7], 256
    %v1241 = vld [vmem:[%s1240] sm:$0xf]
    %v1242 = vld [vmem:[%s1240 + $0x4] sm:$0xf]
    %v1243 = vld [vmem:[%s1240 + $0x8] sm:$0xf]
    %v1244 = vld [vmem:[%s1240 + $0xc] sm:$0xf]
    %v1245 = vld [vmem:[%s1240 + $0x10] sm:$0xf]
    %v1246 = vld [vmem:[%s1240 + $0x14] sm:$0xf]
    %v1247 = vld [vmem:[%s1240 + $0x18] sm:$0xf]
    %v1248 = vld [vmem:[%s1240 + $0x1c] sm:$0xf]
    %v1249 = vld [vmem:[%s1240 + $0x20] sm:$0xf]
    %v1250 = vld [vmem:[%s1240 + $0x24] sm:$0xf]
    %v1251 = vld [vmem:[%s1240 + $0x28] sm:$0xf]
    %v1252 = vld [vmem:[%s1240 + $0x2c] sm:$0xf]
    %v1253 = vld [vmem:[%s1240 + $0x30] sm:$0xf]
    %v1254 = vld [vmem:[%s1240 + $0x34] sm:$0xf]
    %v1255 = vld [vmem:[%s1240 + $0x38] sm:$0xf]
    %v1256 = vld [vmem:[%s1240 + $0x3c] sm:$0xf]
    %s1257 = scalar_lea.vmem %s4, 4
    %v1258 = vld [vmem:[%s1257] sm:$0x1]
    %v1260 = vlaneseq
    %v1261 = vshrl.u32 %v1260, 7
    %v1262 = vsub.s32 0, %v1261
    %v1263 = vrot.slane %v1258, %v1262
    %v1281 = vunpack.c.l.b16 %v1241
    %v1282 = vunpack.c.l.b16 %v1242
    %v1283 = vunpack.c.l.b16 %v1243
    %v1284 = vunpack.c.l.b16 %v1244
    %v1285 = vunpack.c.l.b16 %v1245
    %v1286 = vunpack.c.l.b16 %v1246
    %v1287 = vunpack.c.l.b16 %v1247
    %v1288 = vunpack.c.l.b16 %v1248
    %v1289 = vunpack.c.l.b16 %v1249
    %v1290 = vunpack.c.l.b16 %v1250
    %v1291 = vunpack.c.l.b16 %v1251
    %v1292 = vunpack.c.l.b16 %v1252
    %v1293 = vunpack.c.l.b16 %v1253
    %v1294 = vunpack.c.l.b16 %v1254
    %v1295 = vunpack.c.l.b16 %v1255
    %v1296 = vunpack.c.l.b16 %v1256
    %v1297 = vpack.c.b16 %v1282, %v1281
    %v1298 = vpack.c.b16 %v1284, %v1283
    %v1299 = vpack.c.b16 %v1286, %v1285
    %v1300 = vpack.c.b16 %v1288, %v1287
    %v1301 = vpack.c.b16 %v1290, %v1289
    %v1302 = vpack.c.b16 %v1292, %v1291
    %v1303 = vpack.c.b16 %v1294, %v1293
    %v1304 = vpack.c.b16 %v1296, %v1295
    %1313 = vmatprep.subr.bf16.mxu0 0
    %1314 = vmatpush1.bf16.msra.mxu0 %v1297
    %1315 = vmatprep.subr.bf16.mxu0 0
    %1316 = vmatpush1.bf16.msra.mxu0 %v1298
    %1317 = vmatprep.subr.bf16.mxu0 0
    %1318 = vmatpush1.bf16.msra.mxu0 %v1299
    %1319 = vmatprep.subr.bf16.mxu0 0
    %1320 = vmatpush1.bf16.msra.mxu0 %v1300
    %1321 = vmatprep.subr.bf16.mxu0 0
    %1322 = vmatpush1.bf16.msra.mxu0 %v1301
    %1323 = vmatprep.subr.bf16.mxu0 0
    %1324 = vmatpush1.bf16.msra.mxu0 %v1302
    %1325 = vmatprep.subr.bf16.mxu0 0
    %1326 = vmatpush1.bf16.msra.mxu0 %v1303
    %1327 = vmatprep.subr.bf16.mxu0 0
    %1328 = vmatpush1.bf16.msra.mxu0 %v1304
    %1329 = vmatprep.subr.bf16.mxu0 0
    %1330 = vmatpush1.bf16.msra.mxu0 0
    %1331 = vmatprep.subr.bf16.mxu0 0
    %1332 = vmatpush1.bf16.msra.mxu0 0
    %1333 = vmatprep.subr.bf16.mxu0 0
    %1334 = vmatpush1.bf16.msra.mxu0 0
    %1335 = vmatprep.subr.bf16.mxu0 0
    %1336 = vmatpush1.bf16.msra.mxu0 0
    %1337 = vmatprep.subr.bf16.mxu0 0
    %1338 = vmatpush1.bf16.msra.mxu0 0
    %1339 = vmatprep.subr.bf16.mxu0 0
    %1340 = vmatpush1.bf16.msra.mxu0 0
    %1341 = vmatprep.subr.bf16.mxu0 0
    %1342 = vmatpush1.bf16.msra.mxu0 0
    %1343 = vmatprep.subr.bf16.mxu0 0
    %1344 = vmatpush1.bf16.msra.mxu0 0
    %1345 = vmatprep.mubr.bf16.mxu0 0
    %1346 = vmatmul.mubr.bf16.gmra.mrb[0].mxu0 %v1232
    %v1347 = vpop.f32.mrb[0].mxu0
    %v1348 = vadd.f32 %v1263, %v1347
    %v1349 = vpop.f32.mrb[0].mxu0
    %v1350 = vpop.f32.mrb[0].mxu0
    %v1351 = vadd.f32 %v1263, %v1350
    %v1352 = vpop.f32.mrb[0].mxu0
    %1353 = vmatprep.mubr.bf16.mxu0 0
    %1354 = vmatmul.mubr.bf16.gmra.mrb[0].mxu0 %v1233
    %v1355 = vpop.f32.mrb[0].mxu0
    %v1356 = vadd.f32 %v1263, %v1355
    %v1357 = vpop.f32.mrb[0].mxu0
    %v1358 = vpop.f32.mrb[0].mxu0
    %v1359 = vadd.f32 %v1263, %v1358
    %v1360 = vpop.f32.mrb[0].mxu0
    %1361 = vmatprep.mubr.bf16.mxu0 0
    %1362 = vmatmul.mubr.bf16.gmra.mrb[0].mxu0 %v1234
    %v1363 = vpop.f32.mrb[0].mxu0
    %v1364 = vadd.f32 %v1263, %v1363
    %v1365 = vpop.f32.mrb[0].mxu0
    %v1366 = vpop.f32.mrb[0].mxu0
    %v1367 = vadd.f32 %v1263, %v1366
    %v1368 = vpop.f32.mrb[0].mxu0
    %1369 = vmatprep.mubr.bf16.mxu0 0
    %1370 = vmatmul.mubr.bf16.gmra.mrb[0].mxu0 %v1235
    %v1371 = vpop.f32.mrb[0].mxu0
    %v1372 = vadd.f32 %v1263, %v1371
    %v1373 = vpop.f32.mrb[0].mxu0
    %v1374 = vpop.f32.mrb[0].mxu0
    %v1375 = vadd.f32 %v1263, %v1374
    %v1376 = vpop.f32.mrb[0].mxu0
    %1377 = vmatprep.mubr.bf16.mxu0 0
    %1378 = vmatmul.mubr.bf16.gmra.mrb[0].mxu0 %v1236
    %v1379 = vpop.f32.mrb[0].mxu0
    %v1380 = vadd.f32 %v1263, %v1379
    %v1381 = vpop.f32.mrb[0].mxu0
    %v1382 = vpop.f32.mrb[0].mxu0
    %v1383 = vadd.f32 %v1263, %v1382
    %v1384 = vpop.f32.mrb[0].mxu0
    %1385 = vmatprep.mubr.bf16.mxu0 0
    %1386 = vmatmul.mubr.bf16.gmra.mrb[0].mxu0 %v1237
    %v1387 = vpop.f32.mrb[0].mxu0
    %v1388 = vadd.f32 %v1263, %v1387
    %v1389 = vpop.f32.mrb[0].mxu0
    %v1390 = vpop.f32.mrb[0].mxu0
    %v1391 = vadd.f32 %v1263, %v1390
    %v1392 = vpop.f32.mrb[0].mxu0
    %1393 = vmatprep.mubr.bf16.mxu0 0
    %1394 = vmatmul.mubr.bf16.gmra.mrb[0].mxu0 %v1238
    %v1395 = vpop.f32.mrb[0].mxu0
    %v1396 = vadd.f32 %v1263, %v1395
    %v1397 = vpop.f32.mrb[0].mxu0
    %v1398 = vpop.f32.mrb[0].mxu0
    %v1399 = vadd.f32 %v1263, %v1398
    %v1400 = vpop.f32.mrb[0].mxu0
    %1401 = vmatprep.mubr.bf16.mxu0 0
    %1402 = vmatmul.mubr.bf16.gmra.mrb[0].mxu0 %v1239
    %v1403 = vpop.f32.mrb[0].mxu0
    %v1404 = vadd.f32 %v1263, %v1403
    %v1405 = vpop.f32.mrb[0].mxu0
    %v1406 = vpop.f32.mrb[0].mxu0
    %v1407 = vadd.f32 %v1263, %v1406
    %v1408 = vpop.f32.mrb[0].mxu0
    %1409 = vdwg.mxu0
    %v1410 = vmax.f32 %v1348, 0.0
    %v1411 = vmax.f32 %v1351, 0.0
    %v1412 = vmax.f32 %v1356, 0.0
    %v1413 = vmax.f32 %v1359, 0.0
    %v1414 = vmax.f32 %v1364, 0.0
    %v1415 = vmax.f32 %v1367, 0.0
    %v1416 = vmax.f32 %v1372, 0.0
    %v1417 = vmax.f32 %v1375, 0.0
    %v1418 = vmax.f32 %v1380, 0.0
    %v1419 = vmax.f32 %v1383, 0.0
    %v1420 = vmax.f32 %v1388, 0.0
    %v1421 = vmax.f32 %v1391, 0.0
    %v1422 = vmax.f32 %v1396, 0.0
    %v1423 = vmax.f32 %v1399, 0.0
    %v1424 = vmax.f32 %v1404, 0.0
    %v1425 = vmax.f32 %v1407, 0.0
    %v1426 = vpack.c.bf16 %v1411, %v1410
    %v1427 = vpack.c.bf16 %v1413, %v1412
    %v1428 = vpack.c.bf16 %v1415, %v1414
    %v1429 = vpack.c.bf16 %v1417, %v1416
    %v1430 = vpack.c.bf16 %v1419, %v1418
    %v1431 = vpack.c.bf16 %v1421, %v1420
    %v1432 = vpack.c.bf16 %v1423, %v1422
    %v1433 = vpack.c.bf16 %v1425, %v1424
    %s1434 = scalar_lea.vmem [#allocation7], 320
    %v1435 = vld [vmem:[%s1434] sm:$0xf]
    %v1436 = vld [vmem:[%s1434 + $0x4] sm:$0xf]
    %v1437 = vld [vmem:[%s1434 + $0x8] sm:$0xf]
    %v1438 = vld [vmem:[%s1434 + $0xc] sm:$0xf]
    %v1439 = vld [vmem:[%s1434 + $0x10] sm:$0xf]
    %v1440 = vld [vmem:[%s1434 + $0x14] sm:$0xf]
    %v1441 = vld [vmem:[%s1434 + $0x18] sm:$0xf]
    %v1442 = vld [vmem:[%s1434 + $0x1c] sm:$0xf]
    %v1443 = vld [vmem:[%s1434 + $0x20] sm:$0xf]
    %v1444 = vld [vmem:[%s1434 + $0x24] sm:$0xf]
    %v1445 = vld [vmem:[%s1434 + $0x28] sm:$0xf]
    %v1446 = vld [vmem:[%s1434 + $0x2c] sm:$0xf]
    %v1447 = vld [vmem:[%s1434 + $0x30] sm:$0xf]
    %v1448 = vld [vmem:[%s1434 + $0x34] sm:$0xf]
    %v1449 = vld [vmem:[%s1434 + $0x38] sm:$0xf]
    %v1450 = vld [vmem:[%s1434 + $0x3c] sm:$0xf]
    %s1451 = scalar_lea.vmem %s4, 5
    %v1452 = vld [vmem:[%s1451] sm:$0x1]
    %v1454 = vlaneseq
    %v1455 = vshrl.u32 %v1454, 7
    %v1456 = vsub.s32 0, %v1455
    %v1457 = vrot.slane %v1452, %v1456
    %v1475 = vunpack.c.l.b16 %v1435
    %v1476 = vunpack.c.l.b16 %v1436
    %v1477 = vunpack.c.l.b16 %v1437
    %v1478 = vunpack.c.l.b16 %v1438
    %v1479 = vunpack.c.l.b16 %v1439
    %v1480 = vunpack.c.l.b16 %v1440
    %v1481 = vunpack.c.l.b16 %v1441
    %v1482 = vunpack.c.l.b16 %v1442
    %v1483 = vunpack.c.l.b16 %v1443
    %v1484 = vunpack.c.l.b16 %v1444
    %v1485 = vunpack.c.l.b16 %v1445
    %v1486 = vunpack.c.l.b16 %v1446
    %v1487 = vunpack.c.l.b16 %v1447
    %v1488 = vunpack.c.l.b16 %v1448
    %v1489 = vunpack.c.l.b16 %v1449
    %v1490 = vunpack.c.l.b16 %v1450
    %v1491 = vpack.c.b16 %v1476, %v1475
    %v1492 = vpack.c.b16 %v1478, %v1477
    %v1493 = vpack.c.b16 %v1480, %v1479
    %v1494 = vpack.c.b16 %v1482, %v1481
    %v1495 = vpack.c.b16 %v1484, %v1483
    %v1496 = vpack.c.b16 %v1486, %v1485
    %v1497 = vpack.c.b16 %v1488, %v1487
    %v1498 = vpack.c.b16 %v1490, %v1489
    %1507 = vmatprep.subr.bf16.mxu0 0
    %1508 = vmatpush1.bf16.msra.mxu0 %v1491
    %1509 = vmatprep.subr.bf16.mxu0 0
    %1510 = vmatpush1.bf16.msra.mxu0 %v1492
    %1511 = vmatprep.subr.bf16.mxu0 0
    %1512 = vmatpush1.bf16.msra.mxu0 %v1493
    %1513 = vmatprep.subr.bf16.mxu0 0
    %1514 = vmatpush1.bf16.msra.mxu0 %v1494
    %1515 = vmatprep.subr.bf16.mxu0 0
    %1516 = vmatpush1.bf16.msra.mxu0 %v1495
    %1517 = vmatprep.subr.bf16.mxu0 0
    %1518 = vmatpush1.bf16.msra.mxu0 %v1496
    %1519 = vmatprep.subr.bf16.mxu0 0
    %1520 = vmatpush1.bf16.msra.mxu0 %v1497
    %1521 = vmatprep.subr.bf16.mxu0 0
    %1522 = vmatpush1.bf16.msra.mxu0 %v1498
    %1523 = vmatprep.subr.bf16.mxu0 0
    %1524 = vmatpush1.bf16.msra.mxu0 0
    %1525 = vmatprep.subr.bf16.mxu0 0
    %1526 = vmatpush1.bf16.msra.mxu0 0
    %1527 = vmatprep.subr.bf16.mxu0 0
    %1528 = vmatpush1.bf16.msra.mxu0 0
    %1529 = vmatprep.subr.bf16.mxu0 0
    %1530 = vmatpush1.bf16.msra.mxu0 0
    %1531 = vmatprep.subr.bf16.mxu0 0
    %1532 = vmatpush1.bf16.msra.mxu0 0
    %1533 = vmatprep.subr.bf16.mxu0 0
    %1534 = vmatpush1.bf16.msra.mxu0 0
    %1535 = vmatprep.subr.bf16.mxu0 0
    %1536 = vmatpush1.bf16.msra.mxu0 0
    %1537 = vmatprep.subr.bf16.mxu0 0
    %1538 = vmatpush1.bf16.msra.mxu0 0
    %1539 = vmatprep.mubr.bf16.mxu0 0
    %1540 = vmatmul.mubr.bf16.gmra.mrb[0].mxu0 %v1426
    %v1541 = vpop.f32.mrb[0].mxu0
    %v1542 = vadd.f32 %v1457, %v1541
    %v1543 = vpop.f32.mrb[0].mxu0
    %v1544 = vpop.f32.mrb[0].mxu0
    %v1545 = vadd.f32 %v1457, %v1544
    %v1546 = vpop.f32.mrb[0].mxu0
    %1547 = vmatprep.mubr.bf16.mxu0 0
    %1548 = vmatmul.mubr.bf16.gmra.mrb[0].mxu0 %v1427
    %v1549 = vpop.f32.mrb[0].mxu0
    %v1550 = vadd.f32 %v1457, %v1549
    %v1551 = vpop.f32.mrb[0].mxu0
    %v1552 = vpop.f32.mrb[0].mxu0
    %v1553 = vadd.f32 %v1457, %v1552
    %v1554 = vpop.f32.mrb[0].mxu0
    %1555 = vmatprep.mubr.bf16.mxu0 0
    %1556 = vmatmul.mubr.bf16.gmra.mrb[0].mxu0 %v1428
    %v1557 = vpop.f32.mrb[0].mxu0
    %v1558 = vadd.f32 %v1457, %v1557
    %v1559 = vpop.f32.mrb[0].mxu0
    %v1560 = vpop.f32.mrb[0].mxu0
    %v1561 = vadd.f32 %v1457, %v1560
    %v1562 = vpop.f32.mrb[0].mxu0
    %1563 = vmatprep.mubr.bf16.mxu0 0
    %1564 = vmatmul.mubr.bf16.gmra.mrb[0].mxu0 %v1429
    %v1565 = vpop.f32.mrb[0].mxu0
    %v1566 = vadd.f32 %v1457, %v1565
    %v1567 = vpop.f32.mrb[0].mxu0
    %v1568 = vpop.f32.mrb[0].mxu0
    %v1569 = vadd.f32 %v1457, %v1568
    %v1570 = vpop.f32.mrb[0].mxu0
    %1571 = vmatprep.mubr.bf16.mxu0 0
    %1572 = vmatmul.mubr.bf16.gmra.mrb[0].mxu0 %v1430
    %v1573 = vpop.f32.mrb[0].mxu0
    %v1574 = vadd.f32 %v1457, %v1573
    %v1575 = vpop.f32.mrb[0].mxu0
    %v1576 = vpop.f32.mrb[0].mxu0
    %v1577 = vadd.f32 %v1457, %v1576
    %v1578 = vpop.f32.mrb[0].mxu0
    %1579 = vmatprep.mubr.bf16.mxu0 0
    %1580 = vmatmul.mubr.bf16.gmra.mrb[0].mxu0 %v1431
    %v1581 = vpop.f32.mrb[0].mxu0
    %v1582 = vadd.f32 %v1457, %v1581
    %v1583 = vpop.f32.mrb[0].mxu0
    %v1584 = vpop.f32.mrb[0].mxu0
    %v1585 = vadd.f32 %v1457, %v1584
    %v1586 = vpop.f32.mrb[0].mxu0
    %1587 = vmatprep.mubr.bf16.mxu0 0
    %1588 = vmatmul.mubr.bf16.gmra.mrb[0].mxu0 %v1432
    %v1589 = vpop.f32.mrb[0].mxu0
    %v1590 = vadd.f32 %v1457, %v1589
    %v1591 = vpop.f32.mrb[0].mxu0
    %v1592 = vpop.f32.mrb[0].mxu0
    %v1593 = vadd.f32 %v1457, %v1592
    %v1594 = vpop.f32.mrb[0].mxu0
    %1595 = vmatprep.mubr.bf16.mxu0 0
    %1596 = vmatmul.mubr.bf16.gmra.mrb[0].mxu0 %v1433
    %v1597 = vpop.f32.mrb[0].mxu0
    %v1598 = vadd.f32 %v1457, %v1597
    %v1599 = vpop.f32.mrb[0].mxu0
    %v1600 = vpop.f32.mrb[0].mxu0
    %v1601 = vadd.f32 %v1457, %v1600
    %v1602 = vpop.f32.mrb[0].mxu0
    %1603 = vdwg.mxu0
    %v1604 = vmax.f32 %v1542, 0.0
    %v1605 = vmax.f32 %v1545, 0.0
    %v1606 = vmax.f32 %v1550, 0.0
    %v1607 = vmax.f32 %v1553, 0.0
    %v1608 = vmax.f32 %v1558, 0.0
    %v1609 = vmax.f32 %v1561, 0.0
    %v1610 = vmax.f32 %v1566, 0.0
    %v1611 = vmax.f32 %v1569, 0.0
    %v1612 = vmax.f32 %v1574, 0.0
    %v1613 = vmax.f32 %v1577, 0.0
    %v1614 = vmax.f32 %v1582, 0.0
    %v1615 = vmax.f32 %v1585, 0.0
    %v1616 = vmax.f32 %v1590, 0.0
    %v1617 = vmax.f32 %v1593, 0.0
    %v1618 = vmax.f32 %v1598, 0.0
    %v1619 = vmax.f32 %v1601, 0.0
    %v1620 = vpack.c.bf16 %v1605, %v1604
    %v1621 = vpack.c.bf16 %v1607, %v1606
    %v1622 = vpack.c.bf16 %v1609, %v1608
    %v1623 = vpack.c.bf16 %v1611, %v1610
    %v1624 = vpack.c.bf16 %v1613, %v1612
    %v1625 = vpack.c.bf16 %v1615, %v1614
    %v1626 = vpack.c.bf16 %v1617, %v1616
    %v1627 = vpack.c.bf16 %v1619, %v1618
    %1628 = vmatprep.subr.bf16.mxu0 0
    %1629 = vmatpush1.bf16.msra.mxu0 %v1620
    %1630 = vmatprep.subr.bf16.mxu0 0
    %1631 = vmatpush1.bf16.msra.mxu0 %v1621
    %1632 = vmatprep.subr.bf16.mxu0 0
    %1633 = vmatpush1.bf16.msra.mxu0 %v1622
    %1634 = vmatprep.subr.bf16.mxu0 0
    %1635 = vmatpush1.bf16.msra.mxu0 %v1623
    %1636 = vmatprep.subr.bf16.mxu0 0
    %1637 = vmatpush1.bf16.msra.mxu0 %v1624
    %1638 = vmatprep.subr.bf16.mxu0 0
    %1639 = vmatpush1.bf16.msra.mxu0 %v1625
    %1640 = vmatprep.subr.bf16.mxu0 0
    %1641 = vmatpush1.bf16.msra.mxu0 %v1626
    %1642 = vmatprep.subr.bf16.mxu0 0
    %1643 = vmatpush1.bf16.msra.mxu0 %v1627
    %1644 = vmatprep.subr.bf16.mxu0 0
    %1645 = vmatpush1.bf16.msra.mxu0 0
    %1646 = vmatprep.subr.bf16.mxu0 0
    %1647 = vmatpush1.bf16.msra.mxu0 0
    %1648 = vmatprep.subr.bf16.mxu0 0
    %1649 = vmatpush1.bf16.msra.mxu0 0
    %1650 = vmatprep.subr.bf16.mxu0 0
    %1651 = vmatpush1.bf16.msra.mxu0 0
    %1652 = vmatprep.subr.bf16.mxu0 0
    %1653 = vmatpush1.bf16.msra.mxu0 0
    %1654 = vmatprep.subr.bf16.mxu0 0
    %1655 = vmatpush1.bf16.msra.mxu0 0
    %1656 = vmatprep.subr.bf16.mxu0 0
    %1657 = vmatpush1.bf16.msra.mxu0 0
    %1658 = vmatprep.subr.bf16.mxu0 0
    %1659 = vmatpush1.bf16.msra.mxu0 0
    %1660 = vmatprep.mubr.bf16.mxu0 0
    %1661 = vmatmul.mubr.bf16.gmra.mrb[0].mxu0 %v135
    %v1662 = vpop.f32.mrb[0].mxu0
    %v1663 = vadd.f32 0.0, %v1662
    %v1664 = vpop.f32.mrb[0].mxu0
    %v1665 = vpop.f32.mrb[0].mxu0
    %v1666 = vadd.f32 0.0, %v1665
    %v1667 = vpop.f32.mrb[0].mxu0
    %1668 = vmatprep.mubr.bf16.mxu0 0
    %1669 = vmatmul.mubr.bf16.gmra.mrb[0].mxu0 %v136
    %v1670 = vpop.f32.mrb[0].mxu0
    %v1671 = vadd.f32 0.0, %v1670
    %v1672 = vpop.f32.mrb[0].mxu0
    %v1673 = vpop.f32.mrb[0].mxu0
    %v1674 = vadd.f32 0.0, %v1673
    %v1675 = vpop.f32.mrb[0].mxu0
    %1676 = vmatprep.mubr.bf16.mxu0 0
    %1677 = vmatmul.mubr.bf16.gmra.mrb[0].mxu0 %v137
    %v1678 = vpop.f32.mrb[0].mxu0
    %v1679 = vadd.f32 0.0, %v1678
    %v1680 = vpop.f32.mrb[0].mxu0
    %v1681 = vpop.f32.mrb[0].mxu0
    %v1682 = vadd.f32 0.0, %v1681
    %v1683 = vpop.f32.mrb[0].mxu0
    %1684 = vmatprep.mubr.bf16.mxu0 0
    %1685 = vmatmul.mubr.bf16.gmra.mrb[0].mxu0 %v138
    %v1686 = vpop.f32.mrb[0].mxu0
    %v1687 = vadd.f32 0.0, %v1686
    %v1688 = vpop.f32.mrb[0].mxu0
    %v1689 = vpop.f32.mrb[0].mxu0
    %v1690 = vadd.f32 0.0, %v1689
    %v1691 = vpop.f32.mrb[0].mxu0
    %1692 = vmatprep.mubr.bf16.mxu0 0
    %1693 = vmatmul.mubr.bf16.gmra.mrb[0].mxu0 %v139
    %v1694 = vpop.f32.mrb[0].mxu0
    %v1695 = vadd.f32 0.0, %v1694
    %v1696 = vpop.f32.mrb[0].mxu0
    %v1697 = vpop.f32.mrb[0].mxu0
    %v1698 = vadd.f32 0.0, %v1697
    %v1699 = vpop.f32.mrb[0].mxu0
    %1700 = vmatprep.mubr.bf16.mxu0 0
    %1701 = vmatmul.mubr.bf16.gmra.mrb[0].mxu0 %v140
    %v1702 = vpop.f32.mrb[0].mxu0
    %v1703 = vadd.f32 0.0, %v1702
    %v1704 = vpop.f32.mrb[0].mxu0
    %v1705 = vpop.f32.mrb[0].mxu0
    %v1706 = vadd.f32 0.0, %v1705
    %v1707 = vpop.f32.mrb[0].mxu0
    %1708 = vmatprep.mubr.bf16.mxu0 0
    %1709 = vmatmul.mubr.bf16.gmra.mrb[0].mxu0 %v141
    %v1710 = vpop.f32.mrb[0].mxu0
    %v1711 = vadd.f32 0.0, %v1710
    %v1712 = vpop.f32.mrb[0].mxu0
    %v1713 = vpop.f32.mrb[0].mxu0
    %v1714 = vadd.f32 0.0, %v1713
    %v1715 = vpop.f32.mrb[0].mxu0
    %1716 = vmatprep.mubr.bf16.mxu0 0
    %1717 = vmatmul.mubr.bf16.gmra.mrb[0].mxu0 %v142
    %v1718 = vpop.f32.mrb[0].mxu0
    %v1719 = vadd.f32 0.0, %v1718
    %v1720 = vpop.f32.mrb[0].mxu0
    %v1721 = vpop.f32.mrb[0].mxu0
    %v1722 = vadd.f32 0.0, %v1721
    %v1723 = vpop.f32.mrb[0].mxu0
    %1724 = vdwg.mxu0
    %v1725 = vpack.c.bf16 %v1666, %v1663
    %v1726 = vpack.c.bf16 %v1674, %v1671
    %v1727 = vpack.c.bf16 %v1682, %v1679
    %v1728 = vpack.c.bf16 %v1690, %v1687
    %v1729 = vpack.c.bf16 %v1698, %v1695
    %v1730 = vpack.c.bf16 %v1706, %v1703
    %v1731 = vpack.c.bf16 %v1714, %v1711
    %v1732 = vpack.c.bf16 %v1722, %v1719
    %s1733 = scalar_lea.vmem [#allocation7], 384
    %v1734 = vld [vmem:[%s1733] sm:$0xf]
    %v1735 = vld [vmem:[%s1733 + $0x4] sm:$0xf]
    %v1736 = vld [vmem:[%s1733 + $0x8] sm:$0xf]
    %v1737 = vld [vmem:[%s1733 + $0xc] sm:$0xf]
    %v1738 = vld [vmem:[%s1733 + $0x10] sm:$0xf]
    %v1739 = vld [vmem:[%s1733 + $0x14] sm:$0xf]
    %v1740 = vld [vmem:[%s1733 + $0x18] sm:$0xf]
    %v1741 = vld [vmem:[%s1733 + $0x1c] sm:$0xf]
    %v1742 = vld [vmem:[%s1733 + $0x20] sm:$0xf]
    %v1743 = vld [vmem:[%s1733 + $0x24] sm:$0xf]
    %v1744 = vld [vmem:[%s1733 + $0x28] sm:$0xf]
    %v1745 = vld [vmem:[%s1733 + $0x2c] sm:$0xf]
    %v1746 = vld [vmem:[%s1733 + $0x30] sm:$0xf]
    %v1747 = vld [vmem:[%s1733 + $0x34] sm:$0xf]
    %v1748 = vld [vmem:[%s1733 + $0x38] sm:$0xf]
    %v1749 = vld [vmem:[%s1733 + $0x3c] sm:$0xf]
    %s1750 = scalar_lea.vmem %s4, 6
    %v1751 = vld [vmem:[%s1750] sm:$0x1]
    %v1753 = vlaneseq
    %v1754 = vshrl.u32 %v1753, 7
    %v1755 = vsub.s32 0, %v1754
    %v1756 = vrot.slane %v1751, %v1755
    %v1774 = vunpack.c.l.b16 %v1734
    %v1775 = vunpack.c.l.b16 %v1735
    %v1776 = vunpack.c.l.b16 %v1736
    %v1777 = vunpack.c.l.b16 %v1737
    %v1778 = vunpack.c.l.b16 %v1738
    %v1779 = vunpack.c.l.b16 %v1739
    %v1780 = vunpack.c.l.b16 %v1740
    %v1781 = vunpack.c.l.b16 %v1741
    %v1782 = vunpack.c.l.b16 %v1742
    %v1783 = vunpack.c.l.b16 %v1743
    %v1784 = vunpack.c.l.b16 %v1744
    %v1785 = vunpack.c.l.b16 %v1745
    %v1786 = vunpack.c.l.b16 %v1746
    %v1787 = vunpack.c.l.b16 %v1747
    %v1788 = vunpack.c.l.b16 %v1748
    %v1789 = vunpack.c.l.b16 %v1749
    %v1790 = vpack.c.b16 %v1775, %v1774
    %v1791 = vpack.c.b16 %v1777, %v1776
    %v1792 = vpack.c.b16 %v1779, %v1778
    %v1793 = vpack.c.b16 %v1781, %v1780
    %v1794 = vpack.c.b16 %v1783, %v1782
    %v1795 = vpack.c.b16 %v1785, %v1784
    %v1796 = vpack.c.b16 %v1787, %v1786
    %v1797 = vpack.c.b16 %v1789, %v1788
    %1806 = vmatprep.subr.bf16.mxu0 0
    %1807 = vmatpush1.bf16.msra.mxu0 %v1790
    %1808 = vmatprep.subr.bf16.mxu0 0
    %1809 = vmatpush1.bf16.msra.mxu0 %v1791
    %1810 = vmatprep.subr.bf16.mxu0 0
    %1811 = vmatpush1.bf16.msra.mxu0 %v1792
    %1812 = vmatprep.subr.bf16.mxu0 0
    %1813 = vmatpush1.bf16.msra.mxu0 %v1793
    %1814 = vmatprep.subr.bf16.mxu0 0
    %1815 = vmatpush1.bf16.msra.mxu0 %v1794
    %1816 = vmatprep.subr.bf16.mxu0 0
    %1817 = vmatpush1.bf16.msra.mxu0 %v1795
    %1818 = vmatprep.subr.bf16.mxu0 0
    %1819 = vmatpush1.bf16.msra.mxu0 %v1796
    %1820 = vmatprep.subr.bf16.mxu0 0
    %1821 = vmatpush1.bf16.msra.mxu0 %v1797
    %1822 = vmatprep.subr.bf16.mxu0 0
    %1823 = vmatpush1.bf16.msra.mxu0 0
    %1824 = vmatprep.subr.bf16.mxu0 0
    %1825 = vmatpush1.bf16.msra.mxu0 0
    %1826 = vmatprep.subr.bf16.mxu0 0
    %1827 = vmatpush1.bf16.msra.mxu0 0
    %1828 = vmatprep.subr.bf16.mxu0 0
    %1829 = vmatpush1.bf16.msra.mxu0 0
    %1830 = vmatprep.subr.bf16.mxu0 0
    %1831 = vmatpush1.bf16.msra.mxu0 0
    %1832 = vmatprep.subr.bf16.mxu0 0
    %1833 = vmatpush1.bf16.msra.mxu0 0
    %1834 = vmatprep.subr.bf16.mxu0 0
    %1835 = vmatpush1.bf16.msra.mxu0 0
    %1836 = vmatprep.subr.bf16.mxu0 0
    %1837 = vmatpush1.bf16.msra.mxu0 0
    %1838 = vmatprep.mubr.bf16.mxu0 0
    %1839 = vmatmul.mubr.bf16.gmra.mrb[0].mxu0 %v1725
    %v1840 = vpop.f32.mrb[0].mxu0
    %v1841 = vadd.f32 %v1756, %v1840
    %v1842 = vpop.f32.mrb[0].mxu0
    %v1843 = vpop.f32.mrb[0].mxu0
    %v1844 = vadd.f32 %v1756, %v1843
    %v1845 = vpop.f32.mrb[0].mxu0
    %1846 = vmatprep.mubr.bf16.mxu0 0
    %1847 = vmatmul.mubr.bf16.gmra.mrb[0].mxu0 %v1726
    %v1848 = vpop.f32.mrb[0].mxu0
    %v1849 = vadd.f32 %v1756, %v1848
    %v1850 = vpop.f32.mrb[0].mxu0
    %v1851 = vpop.f32.mrb[0].mxu0
    %v1852 = vadd.f32 %v1756, %v1851
    %v1853 = vpop.f32.mrb[0].mxu0
    %1854 = vmatprep.mubr.bf16.mxu0 0
    %1855 = vmatmul.mubr.bf16.gmra.mrb[0].mxu0 %v1727
    %v1856 = vpop.f32.mrb[0].mxu0
    %v1857 = vadd.f32 %v1756, %v1856
    %v1858 = vpop.f32.mrb[0].mxu0
    %v1859 = vpop.f32.mrb[0].mxu0
    %v1860 = vadd.f32 %v1756, %v1859
    %v1861 = vpop.f32.mrb[0].mxu0
    %1862 = vmatprep.mubr.bf16.mxu0 0
    %1863 = vmatmul.mubr.bf16.gmra.mrb[0].mxu0 %v1728
    %v1864 = vpop.f32.mrb[0].mxu0
    %v1865 = vadd.f32 %v1756, %v1864
    %v1866 = vpop.f32.mrb[0].mxu0
    %v1867 = vpop.f32.mrb[0].mxu0
    %v1868 = vadd.f32 %v1756, %v1867
    %v1869 = vpop.f32.mrb[0].mxu0
    %1870 = vmatprep.mubr.bf16.mxu0 0
    %1871 = vmatmul.mubr.bf16.gmra.mrb[0].mxu0 %v1729
    %v1872 = vpop.f32.mrb[0].mxu0
    %v1873 = vadd.f32 %v1756, %v1872
    %v1874 = vpop.f32.mrb[0].mxu0
    %v1875 = vpop.f32.mrb[0].mxu0
    %v1876 = vadd.f32 %v1756, %v1875
    %v1877 = vpop.f32.mrb[0].mxu0
    %1878 = vmatprep.mubr.bf16.mxu0 0
    %1879 = vmatmul.mubr.bf16.gmra.mrb[0].mxu0 %v1730
    %v1880 = vpop.f32.mrb[0].mxu0
    %v1881 = vadd.f32 %v1756, %v1880
    %v1882 = vpop.f32.mrb[0].mxu0
    %v1883 = vpop.f32.mrb[0].mxu0
    %v1884 = vadd.f32 %v1756, %v1883
    %v1885 = vpop.f32.mrb[0].mxu0
    %1886 = vmatprep.mubr.bf16.mxu0 0
    %1887 = vmatmul.mubr.bf16.gmra.mrb[0].mxu0 %v1731
    %v1888 = vpop.f32.mrb[0].mxu0
    %v1889 = vadd.f32 %v1756, %v1888
    %v1890 = vpop.f32.mrb[0].mxu0
    %v1891 = vpop.f32.mrb[0].mxu0
    %v1892 = vadd.f32 %v1756, %v1891
    %v1893 = vpop.f32.mrb[0].mxu0
    %1894 = vmatprep.mubr.bf16.mxu0 0
    %1895 = vmatmul.mubr.bf16.gmra.mrb[0].mxu0 %v1732
    %v1896 = vpop.f32.mrb[0].mxu0
    %v1897 = vadd.f32 %v1756, %v1896
    %v1898 = vpop.f32.mrb[0].mxu0
    %v1899 = vpop.f32.mrb[0].mxu0
    %v1900 = vadd.f32 %v1756, %v1899
    %v1901 = vpop.f32.mrb[0].mxu0
    %1902 = vdwg.mxu0
    %v1903 = vmax.f32 %v1841, 0.0
    %v1904 = vmax.f32 %v1844, 0.0
    %v1905 = vmax.f32 %v1849, 0.0
    %v1906 = vmax.f32 %v1852, 0.0
    %v1907 = vmax.f32 %v1857, 0.0
    %v1908 = vmax.f32 %v1860, 0.0
    %v1909 = vmax.f32 %v1865, 0.0
    %v1910 = vmax.f32 %v1868, 0.0
    %v1911 = vmax.f32 %v1873, 0.0
    %v1912 = vmax.f32 %v1876, 0.0
    %v1913 = vmax.f32 %v1881, 0.0
    %v1914 = vmax.f32 %v1884, 0.0
    %v1915 = vmax.f32 %v1889, 0.0
    %v1916 = vmax.f32 %v1892, 0.0
    %v1917 = vmax.f32 %v1897, 0.0
    %v1918 = vmax.f32 %v1900, 0.0
    %v1919 = vpack.c.bf16 %v1904, %v1903
    %v1920 = vpack.c.bf16 %v1906, %v1905
    %v1921 = vpack.c.bf16 %v1908, %v1907
    %v1922 = vpack.c.bf16 %v1910, %v1909
    %v1923 = vpack.c.bf16 %v1912, %v1911
    %v1924 = vpack.c.bf16 %v1914, %v1913
    %v1925 = vpack.c.bf16 %v1916, %v1915
    %v1926 = vpack.c.bf16 %v1918, %v1917
    %s1927 = scalar_lea.vmem [#allocation7], 448
    %v1928 = vld [vmem:[%s1927] sm:$0xf]
    %v1929 = vld [vmem:[%s1927 + $0x4] sm:$0xf]
    %v1930 = vld [vmem:[%s1927 + $0x8] sm:$0xf]
    %v1931 = vld [vmem:[%s1927 + $0xc] sm:$0xf]
    %v1932 = vld [vmem:[%s1927 + $0x10] sm:$0xf]
    %v1933 = vld [vmem:[%s1927 + $0x14] sm:$0xf]
    %v1934 = vld [vmem:[%s1927 + $0x18] sm:$0xf]
    %v1935 = vld [vmem:[%s1927 + $0x1c] sm:$0xf]
    %v1936 = vld [vmem:[%s1927 + $0x20] sm:$0xf]
    %v1937 = vld [vmem:[%s1927 + $0x24] sm:$0xf]
    %v1938 = vld [vmem:[%s1927 + $0x28] sm:$0xf]
    %v1939 = vld [vmem:[%s1927 + $0x2c] sm:$0xf]
    %v1940 = vld [vmem:[%s1927 + $0x30] sm:$0xf]
    %v1941 = vld [vmem:[%s1927 + $0x34] sm:$0xf]
    %v1942 = vld [vmem:[%s1927 + $0x38] sm:$0xf]
    %v1943 = vld [vmem:[%s1927 + $0x3c] sm:$0xf]
    %s1944 = scalar_lea.vmem %s4, 7
    %v1945 = vld [vmem:[%s1944] sm:$0x1]
    %v1947 = vlaneseq
    %v1948 = vshrl.u32 %v1947, 7
    %v1949 = vsub.s32 0, %v1948
    %v1950 = vrot.slane %v1945, %v1949
    %v1968 = vunpack.c.l.b16 %v1928
    %v1969 = vunpack.c.l.b16 %v1929
    %v1970 = vunpack.c.l.b16 %v1930
    %v1971 = vunpack.c.l.b16 %v1931
    %v1972 = vunpack.c.l.b16 %v1932
    %v1973 = vunpack.c.l.b16 %v1933
    %v1974 = vunpack.c.l.b16 %v1934
    %v1975 = vunpack.c.l.b16 %v1935
    %v1976 = vunpack.c.l.b16 %v1936
    %v1977 = vunpack.c.l.b16 %v1937
    %v1978 = vunpack.c.l.b16 %v1938
    %v1979 = vunpack.c.l.b16 %v1939
    %v1980 = vunpack.c.l.b16 %v1940
    %v1981 = vunpack.c.l.b16 %v1941
    %v1982 = vunpack.c.l.b16 %v1942
    %v1983 = vunpack.c.l.b16 %v1943
    %v1984 = vpack.c.b16 %v1969, %v1968
    %v1985 = vpack.c.b16 %v1971, %v1970
    %v1986 = vpack.c.b16 %v1973, %v1972
    %v1987 = vpack.c.b16 %v1975, %v1974
    %v1988 = vpack.c.b16 %v1977, %v1976
    %v1989 = vpack.c.b16 %v1979, %v1978
    %v1990 = vpack.c.b16 %v1981, %v1980
    %v1991 = vpack.c.b16 %v1983, %v1982
    %2000 = vmatprep.subr.bf16.mxu0 0
    %2001 = vmatpush1.bf16.msra.mxu0 %v1984
    %2002 = vmatprep.subr.bf16.mxu0 0
    %2003 = vmatpush1.bf16.msra.mxu0 %v1985
    %2004 = vmatprep.subr.bf16.mxu0 0
    %2005 = vmatpush1.bf16.msra.mxu0 %v1986
    %2006 = vmatprep.subr.bf16.mxu0 0
    %2007 = vmatpush1.bf16.msra.mxu0 %v1987
    %2008 = vmatprep.subr.bf16.mxu0 0
    %2009 = vmatpush1.bf16.msra.mxu0 %v1988
    %2010 = vmatprep.subr.bf16.mxu0 0
    %2011 = vmatpush1.bf16.msra.mxu0 %v1989
    %2012 = vmatprep.subr.bf16.mxu0 0
    %2013 = vmatpush1.bf16.msra.mxu0 %v1990
    %2014 = vmatprep.subr.bf16.mxu0 0
    %2015 = vmatpush1.bf16.msra.mxu0 %v1991
    %2016 = vmatprep.subr.bf16.mxu0 0
    %2017 = vmatpush1.bf16.msra.mxu0 0
    %2018 = vmatprep.subr.bf16.mxu0 0
    %2019 = vmatpush1.bf16.msra.mxu0 0
    %2020 = vmatprep.subr.bf16.mxu0 0
    %2021 = vmatpush1.bf16.msra.mxu0 0
    %2022 = vmatprep.subr.bf16.mxu0 0
    %2023 = vmatpush1.bf16.msra.mxu0 0
    %2024 = vmatprep.subr.bf16.mxu0 0
    %2025 = vmatpush1.bf16.msra.mxu0 0
    %2026 = vmatprep.subr.bf16.mxu0 0
    %2027 = vmatpush1.bf16.msra.mxu0 0
    %2028 = vmatprep.subr.bf16.mxu0 0
    %2029 = vmatpush1.bf16.msra.mxu0 0
    %2030 = vmatprep.subr.bf16.mxu0 0
    %2031 = vmatpush1.bf16.msra.mxu0 0
    %2032 = vmatprep.mubr.bf16.mxu0 0
    %2033 = vmatmul.mubr.bf16.gmra.mrb[0].mxu0 %v1919
    %v2034 = vpop.f32.mrb[0].mxu0
    %v2035 = vadd.f32 %v1950, %v2034
    %v2036 = vpop.f32.mrb[0].mxu0
    %v2037 = vpop.f32.mrb[0].mxu0
    %v2038 = vadd.f32 %v1950, %v2037
    %v2039 = vpop.f32.mrb[0].mxu0
    %2040 = vmatprep.mubr.bf16.mxu0 0
    %2041 = vmatmul.mubr.bf16.gmra.mrb[0].mxu0 %v1920
    %v2042 = vpop.f32.mrb[0].mxu0
    %v2043 = vadd.f32 %v1950, %v2042
    %v2044 = vpop.f32.mrb[0].mxu0
    %v2045 = vpop.f32.mrb[0].mxu0
    %v2046 = vadd.f32 %v1950, %v2045
    %v2047 = vpop.f32.mrb[0].mxu0
    %2048 = vmatprep.mubr.bf16.mxu0 0
    %2049 = vmatmul.mubr.bf16.gmra.mrb[0].mxu0 %v1921
    %v2050 = vpop.f32.mrb[0].mxu0
    %v2051 = vadd.f32 %v1950, %v2050
    %v2052 = vpop.f32.mrb[0].mxu0
    %v2053 = vpop.f32.mrb[0].mxu0
    %v2054 = vadd.f32 %v1950, %v2053
    %v2055 = vpop.f32.mrb[0].mxu0
    %2056 = vmatprep.mubr.bf16.mxu0 0
    %2057 = vmatmul.mubr.bf16.gmra.mrb[0].mxu0 %v1922
    %v2058 = vpop.f32.mrb[0].mxu0
    %v2059 = vadd.f32 %v1950, %v2058
    %v2060 = vpop.f32.mrb[0].mxu0
    %v2061 = vpop.f32.mrb[0].mxu0
    %v2062 = vadd.f32 %v1950, %v2061
    %v2063 = vpop.f32.mrb[0].mxu0
    %2064 = vmatprep.mubr.bf16.mxu0 0
    %2065 = vmatmul.mubr.bf16.gmra.mrb[0].mxu0 %v1923
    %v2066 = vpop.f32.mrb[0].mxu0
    %v2067 = vadd.f32 %v1950, %v2066
    %v2068 = vpop.f32.mrb[0].mxu0
    %v2069 = vpop.f32.mrb[0].mxu0
    %v2070 = vadd.f32 %v1950, %v2069
    %v2071 = vpop.f32.mrb[0].mxu0
    %2072 = vmatprep.mubr.bf16.mxu0 0
    %2073 = vmatmul.mubr.bf16.gmra.mrb[0].mxu0 %v1924
    %v2074 = vpop.f32.mrb[0].mxu0
    %v2075 = vadd.f32 %v1950, %v2074
    %v2076 = vpop.f32.mrb[0].mxu0
    %v2077 = vpop.f32.mrb[0].mxu0
    %v2078 = vadd.f32 %v1950, %v2077
    %v2079 = vpop.f32.mrb[0].mxu0
    %2080 = vmatprep.mubr.bf16.mxu0 0
    %2081 = vmatmul.mubr.bf16.gmra.mrb[0].mxu0 %v1925
    %v2082 = vpop.f32.mrb[0].mxu0
    %v2083 = vadd.f32 %v1950, %v2082
    %v2084 = vpop.f32.mrb[0].mxu0
    %v2085 = vpop.f32.mrb[0].mxu0
    %v2086 = vadd.f32 %v1950, %v2085
    %v2087 = vpop.f32.mrb[0].mxu0
    %2088 = vmatprep.mubr.bf16.mxu0 0
    %2089 = vmatmul.mubr.bf16.gmra.mrb[0].mxu0 %v1926
    %v2090 = vpop.f32.mrb[0].mxu0
    %v2091 = vadd.f32 %v1950, %v2090
    %v2092 = vpop.f32.mrb[0].mxu0
    %v2093 = vpop.f32.mrb[0].mxu0
    %v2094 = vadd.f32 %v1950, %v2093
    %v2095 = vpop.f32.mrb[0].mxu0
    %2096 = vdwg.mxu0
    %v2097 = vmax.f32 %v2035, 0.0
    %v2098 = vmax.f32 %v2038, 0.0
    %v2099 = vmax.f32 %v2043, 0.0
    %v2100 = vmax.f32 %v2046, 0.0
    %v2101 = vmax.f32 %v2051, 0.0
    %v2102 = vmax.f32 %v2054, 0.0
    %v2103 = vmax.f32 %v2059, 0.0
    %v2104 = vmax.f32 %v2062, 0.0
    %v2105 = vmax.f32 %v2067, 0.0
    %v2106 = vmax.f32 %v2070, 0.0
    %v2107 = vmax.f32 %v2075, 0.0
    %v2108 = vmax.f32 %v2078, 0.0
    %v2109 = vmax.f32 %v2083, 0.0
    %v2110 = vmax.f32 %v2086, 0.0
    %v2111 = vmax.f32 %v2091, 0.0
    %v2112 = vmax.f32 %v2094, 0.0
    %v2113 = vpack.c.bf16 %v2098, %v2097
    %v2114 = vpack.c.bf16 %v2100, %v2099
    %v2115 = vpack.c.bf16 %v2102, %v2101
    %v2116 = vpack.c.bf16 %v2104, %v2103
    %v2117 = vpack.c.bf16 %v2106, %v2105
    %v2118 = vpack.c.bf16 %v2108, %v2107
    %v2119 = vpack.c.bf16 %v2110, %v2109
    %v2120 = vpack.c.bf16 %v2112, %v2111
    %2121 = vmatprep.subr.bf16.mxu0 0
    %2122 = vmatpush1.bf16.msra.mxu0 %v2113
    %2123 = vmatprep.subr.bf16.mxu0 0
    %2124 = vmatpush1.bf16.msra.mxu0 %v2114
    %2125 = vmatprep.subr.bf16.mxu0 0
    %2126 = vmatpush1.bf16.msra.mxu0 %v2115
    %2127 = vmatprep.subr.bf16.mxu0 0
    %2128 = vmatpush1.bf16.msra.mxu0 %v2116
    %2129 = vmatprep.subr.bf16.mxu0 0
    %2130 = vmatpush1.bf16.msra.mxu0 %v2117
    %2131 = vmatprep.subr.bf16.mxu0 0
    %2132 = vmatpush1.bf16.msra.mxu0 %v2118
    %2133 = vmatprep.subr.bf16.mxu0 0
    %2134 = vmatpush1.bf16.msra.mxu0 %v2119
    %2135 = vmatprep.subr.bf16.mxu0 0
    %2136 = vmatpush1.bf16.msra.mxu0 %v2120
    %2137 = vmatprep.subr.bf16.mxu0 0
    %2138 = vmatpush1.bf16.msra.mxu0 0
    %2139 = vmatprep.subr.bf16.mxu0 0
    %2140 = vmatpush1.bf16.msra.mxu0 0
    %2141 = vmatprep.subr.bf16.mxu0 0
    %2142 = vmatpush1.bf16.msra.mxu0 0
    %2143 = vmatprep.subr.bf16.mxu0 0
    %2144 = vmatpush1.bf16.msra.mxu0 0
    %2145 = vmatprep.subr.bf16.mxu0 0
    %2146 = vmatpush1.bf16.msra.mxu0 0
    %2147 = vmatprep.subr.bf16.mxu0 0
    %2148 = vmatpush1.bf16.msra.mxu0 0
    %2149 = vmatprep.subr.bf16.mxu0 0
    %2150 = vmatpush1.bf16.msra.mxu0 0
    %2151 = vmatprep.subr.bf16.mxu0 0
    %2152 = vmatpush1.bf16.msra.mxu0 0
    %2153 = vmatprep.mubr.bf16.mxu0 0
    %2154 = vmatmul.mubr.bf16.gmra.mrb[0].mxu0 %v135
    %v2155 = vpop.f32.mrb[0].mxu0
    %v2156 = vadd.f32 0.0, %v2155
    %v2157 = vpop.f32.mrb[0].mxu0
    %v2158 = vpop.f32.mrb[0].mxu0
    %v2159 = vadd.f32 0.0, %v2158
    %v2160 = vpop.f32.mrb[0].mxu0
    %2161 = vmatprep.mubr.bf16.mxu0 0
    %2162 = vmatmul.mubr.bf16.gmra.mrb[0].mxu0 %v136
    %v2163 = vpop.f32.mrb[0].mxu0
    %v2164 = vadd.f32 0.0, %v2163
    %v2165 = vpop.f32.mrb[0].mxu0
    %v2166 = vpop.f32.mrb[0].mxu0
    %v2167 = vadd.f32 0.0, %v2166
    %v2168 = vpop.f32.mrb[0].mxu0
    %2169 = vmatprep.mubr.bf16.mxu0 0
    %2170 = vmatmul.mubr.bf16.gmra.mrb[0].mxu0 %v137
    %v2171 = vpop.f32.mrb[0].mxu0
    %v2172 = vadd.f32 0.0, %v2171
    %v2173 = vpop.f32.mrb[0].mxu0
    %v2174 = vpop.f32.mrb[0].mxu0
    %v2175 = vadd.f32 0.0, %v2174
    %v2176 = vpop.f32.mrb[0].mxu0
    %2177 = vmatprep.mubr.bf16.mxu0 0
    %2178 = vmatmul.mubr.bf16.gmra.mrb[0].mxu0 %v138
    %v2179 = vpop.f32.mrb[0].mxu0
    %v2180 = vadd.f32 0.0, %v2179
    %v2181 = vpop.f32.mrb[0].mxu0
    %v2182 = vpop.f32.mrb[0].mxu0
    %v2183 = vadd.f32 0.0, %v2182
    %v2184 = vpop.f32.mrb[0].mxu0
    %2185 = vmatprep.mubr.bf16.mxu0 0
    %2186 = vmatmul.mubr.bf16.gmra.mrb[0].mxu0 %v139
    %v2187 = vpop.f32.mrb[0].mxu0
    %v2188 = vadd.f32 0.0, %v2187
    %v2189 = vpop.f32.mrb[0].mxu0
    %v2190 = vpop.f32.mrb[0].mxu0
    %v2191 = vadd.f32 0.0, %v2190
    %v2192 = vpop.f32.mrb[0].mxu0
    %2193 = vmatprep.mubr.bf16.mxu0 0
    %2194 = vmatmul.mubr.bf16.gmra.mrb[0].mxu0 %v140
    %v2195 = vpop.f32.mrb[0].mxu0
    %v2196 = vadd.f32 0.0, %v2195
    %v2197 = vpop.f32.mrb[0].mxu0
    %v2198 = vpop.f32.mrb[0].mxu0
    %v2199 = vadd.f32 0.0, %v2198
    %v2200 = vpop.f32.mrb[0].mxu0
    %2201 = vmatprep.mubr.bf16.mxu0 0
    %2202 = vmatmul.mubr.bf16.gmra.mrb[0].mxu0 %v141
    %v2203 = vpop.f32.mrb[0].mxu0
    %v2204 = vadd.f32 0.0, %v2203
    %v2205 = vpop.f32.mrb[0].mxu0
    %v2206 = vpop.f32.mrb[0].mxu0
    %v2207 = vadd.f32 0.0, %v2206
    %v2208 = vpop.f32.mrb[0].mxu0
    %2209 = vmatprep.mubr.bf16.mxu0 0
    %2210 = vmatmul.mubr.bf16.gmra.mrb[0].mxu0 %v142
    %v2211 = vpop.f32.mrb[0].mxu0
    %v2212 = vadd.f32 0.0, %v2211
    %v2213 = vpop.f32.mrb[0].mxu0
    %v2214 = vpop.f32.mrb[0].mxu0
    %v2215 = vadd.f32 0.0, %v2214
    %v2216 = vpop.f32.mrb[0].mxu0
    %2217 = vdwg.mxu0
    %v2218 = vpack.c.bf16 %v2159, %v2156
    %v2219 = vpack.c.bf16 %v2167, %v2164
    %v2220 = vpack.c.bf16 %v2175, %v2172
    %v2221 = vpack.c.bf16 %v2183, %v2180
    %v2222 = vpack.c.bf16 %v2191, %v2188
    %v2223 = vpack.c.bf16 %v2199, %v2196
    %v2224 = vpack.c.bf16 %v2207, %v2204
    %v2225 = vpack.c.bf16 %v2215, %v2212
    %s2226 = scalar_lea.vmem [#allocation7], 512
    %v2227 = vld [vmem:[%s2226] sm:$0xf]
    %v2228 = vld [vmem:[%s2226 + $0x4] sm:$0xf]
    %v2229 = vld [vmem:[%s2226 + $0x8] sm:$0xf]
    %v2230 = vld [vmem:[%s2226 + $0xc] sm:$0xf]
    %v2231 = vld [vmem:[%s2226 + $0x10] sm:$0xf]
    %v2232 = vld [vmem:[%s2226 + $0x14] sm:$0xf]
    %v2233 = vld [vmem:[%s2226 + $0x18] sm:$0xf]
    %v2234 = vld [vmem:[%s2226 + $0x1c] sm:$0xf]
    %v2235 = vld [vmem:[%s2226 + $0x20] sm:$0xf]
    %v2236 = vld [vmem:[%s2226 + $0x24] sm:$0xf]
    %v2237 = vld [vmem:[%s2226 + $0x28] sm:$0xf]
    %v2238 = vld [vmem:[%s2226 + $0x2c] sm:$0xf]
    %v2239 = vld [vmem:[%s2226 + $0x30] sm:$0xf]
    %v2240 = vld [vmem:[%s2226 + $0x34] sm:$0xf]
    %v2241 = vld [vmem:[%s2226 + $0x38] sm:$0xf]
    %v2242 = vld [vmem:[%s2226 + $0x3c] sm:$0xf]
    %s2243 = scalar_lea.vmem %s4, 8
    %v2244 = vld [vmem:[%s2243] sm:$0x1]
    %v2246 = vlaneseq
    %v2247 = vshrl.u32 %v2246, 7
    %v2248 = vsub.s32 0, %v2247
    %v2249 = vrot.slane %v2244, %v2248
    %v2267 = vunpack.c.l.b16 %v2227
    %v2268 = vunpack.c.l.b16 %v2228
    %v2269 = vunpack.c.l.b16 %v2229
    %v2270 = vunpack.c.l.b16 %v2230
    %v2271 = vunpack.c.l.b16 %v2231
    %v2272 = vunpack.c.l.b16 %v2232
    %v2273 = vunpack.c.l.b16 %v2233
    %v2274 = vunpack.c.l.b16 %v2234
    %v2275 = vunpack.c.l.b16 %v2235
    %v2276 = vunpack.c.l.b16 %v2236
    %v2277 = vunpack.c.l.b16 %v2237
    %v2278 = vunpack.c.l.b16 %v2238
    %v2279 = vunpack.c.l.b16 %v2239
    %v2280 = vunpack.c.l.b16 %v2240
    %v2281 = vunpack.c.l.b16 %v2241
    %v2282 = vunpack.c.l.b16 %v2242
    %v2283 = vpack.c.b16 %v2268, %v2267
    %v2284 = vpack.c.b16 %v2270, %v2269
    %v2285 = vpack.c.b16 %v2272, %v2271
    %v2286 = vpack.c.b16 %v2274, %v2273
    %v2287 = vpack.c.b16 %v2276, %v2275
    %v2288 = vpack.c.b16 %v2278, %v2277
    %v2289 = vpack.c.b16 %v2280, %v2279
    %v2290 = vpack.c.b16 %v2282, %v2281
    %2299 = vmatprep.subr.bf16.mxu0 0
    %2300 = vmatpush1.bf16.msra.mxu0 %v2283
    %2301 = vmatprep.subr.bf16.mxu0 0
    %2302 = vmatpush1.bf16.msra.mxu0 %v2284
    %2303 = vmatprep.subr.bf16.mxu0 0
    %2304 = vmatpush1.bf16.msra.mxu0 %v2285
    %2305 = vmatprep.subr.bf16.mxu0 0
    %2306 = vmatpush1.bf16.msra.mxu0 %v2286
    %2307 = vmatprep.subr.bf16.mxu0 0
    %2308 = vmatpush1.bf16.msra.mxu0 %v2287
    %2309 = vmatprep.subr.bf16.mxu0 0
    %2310 = vmatpush1.bf16.msra.mxu0 %v2288
    %2311 = vmatprep.subr.bf16.mxu0 0
    %2312 = vmatpush1.bf16.msra.mxu0 %v2289
    %2313 = vmatprep.subr.bf16.mxu0 0
    %2314 = vmatpush1.bf16.msra.mxu0 %v2290
    %2315 = vmatprep.subr.bf16.mxu0 0
    %2316 = vmatpush1.bf16.msra.mxu0 0
    %2317 = vmatprep.subr.bf16.mxu0 0
    %2318 = vmatpush1.bf16.msra.mxu0 0
    %2319 = vmatprep.subr.bf16.mxu0 0
    %2320 = vmatpush1.bf16.msra.mxu0 0
    %2321 = vmatprep.subr.bf16.mxu0 0
    %2322 = vmatpush1.bf16.msra.mxu0 0
    %2323 = vmatprep.subr.bf16.mxu0 0
    %2324 = vmatpush1.bf16.msra.mxu0 0
    %2325 = vmatprep.subr.bf16.mxu0 0
    %2326 = vmatpush1.bf16.msra.mxu0 0
    %2327 = vmatprep.subr.bf16.mxu0 0
    %2328 = vmatpush1.bf16.msra.mxu0 0
    %2329 = vmatprep.subr.bf16.mxu0 0
    %2330 = vmatpush1.bf16.msra.mxu0 0
    %2331 = vmatprep.mubr.bf16.mxu0 0
    %2332 = vmatmul.mubr.bf16.gmra.mrb[0].mxu0 %v2218
    %v2333 = vpop.f32.mrb[0].mxu0
    %v2334 = vadd.f32 %v2249, %v2333
    %v2335 = vpop.f32.mrb[0].mxu0
    %v2336 = vpop.f32.mrb[0].mxu0
    %v2337 = vadd.f32 %v2249, %v2336
    %v2338 = vpop.f32.mrb[0].mxu0
    %2339 = vmatprep.mubr.bf16.mxu0 0
    %2340 = vmatmul.mubr.bf16.gmra.mrb[0].mxu0 %v2219
    %v2341 = vpop.f32.mrb[0].mxu0
    %v2342 = vadd.f32 %v2249, %v2341
    %v2343 = vpop.f32.mrb[0].mxu0
    %v2344 = vpop.f32.mrb[0].mxu0
    %v2345 = vadd.f32 %v2249, %v2344
    %v2346 = vpop.f32.mrb[0].mxu0
    %2347 = vmatprep.mubr.bf16.mxu0 0
    %2348 = vmatmul.mubr.bf16.gmra.mrb[0].mxu0 %v2220
    %v2349 = vpop.f32.mrb[0].mxu0
    %v2350 = vadd.f32 %v2249, %v2349
    %v2351 = vpop.f32.mrb[0].mxu0
    %v2352 = vpop.f32.mrb[0].mxu0
    %v2353 = vadd.f32 %v2249, %v2352
    %v2354 = vpop.f32.mrb[0].mxu0
    %2355 = vmatprep.mubr.bf16.mxu0 0
    %2356 = vmatmul.mubr.bf16.gmra.mrb[0].mxu0 %v2221
    %v2357 = vpop.f32.mrb[0].mxu0
    %v2358 = vadd.f32 %v2249, %v2357
    %v2359 = vpop.f32.mrb[0].mxu0
    %v2360 = vpop.f32.mrb[0].mxu0
    %v2361 = vadd.f32 %v2249, %v2360
    %v2362 = vpop.f32.mrb[0].mxu0
    %2363 = vmatprep.mubr.bf16.mxu0 0
    %2364 = vmatmul.mubr.bf16.gmra.mrb[0].mxu0 %v2222
    %v2365 = vpop.f32.mrb[0].mxu0
    %v2366 = vadd.f32 %v2249, %v2365
    %v2367 = vpop.f32.mrb[0].mxu0
    %v2368 = vpop.f32.mrb[0].mxu0
    %v2369 = vadd.f32 %v2249, %v2368
    %v2370 = vpop.f32.mrb[0].mxu0
    %2371 = vmatprep.mubr.bf16.mxu0 0
    %2372 = vmatmul.mubr.bf16.gmra.mrb[0].mxu0 %v2223
    %v2373 = vpop.f32.mrb[0].mxu0
    %v2374 = vadd.f32 %v2249, %v2373
    %v2375 = vpop.f32.mrb[0].mxu0
    %v2376 = vpop.f32.mrb[0].mxu0
    %v2377 = vadd.f32 %v2249, %v2376
    %v2378 = vpop.f32.mrb[0].mxu0
    %2379 = vmatprep.mubr.bf16.mxu0 0
    %2380 = vmatmul.mubr.bf16.gmra.mrb[0].mxu0 %v2224
    %v2381 = vpop.f32.mrb[0].mxu0
    %v2382 = vadd.f32 %v2249, %v2381
    %v2383 = vpop.f32.mrb[0].mxu0
    %v2384 = vpop.f32.mrb[0].mxu0
    %v2385 = vadd.f32 %v2249, %v2384
    %v2386 = vpop.f32.mrb[0].mxu0
    %2387 = vmatprep.mubr.bf16.mxu0 0
    %2388 = vmatmul.mubr.bf16.gmra.mrb[0].mxu0 %v2225
    %v2389 = vpop.f32.mrb[0].mxu0
    %v2390 = vadd.f32 %v2249, %v2389
    %v2391 = vpop.f32.mrb[0].mxu0
    %v2392 = vpop.f32.mrb[0].mxu0
    %v2393 = vadd.f32 %v2249, %v2392
    %v2394 = vpop.f32.mrb[0].mxu0
    %2395 = vdwg.mxu0
    %v2396 = vmax.f32 %v2334, 0.0
    %v2397 = vmax.f32 %v2337, 0.0
    %v2398 = vmax.f32 %v2342, 0.0
    %v2399 = vmax.f32 %v2345, 0.0
    %v2400 = vmax.f32 %v2350, 0.0
    %v2401 = vmax.f32 %v2353, 0.0
    %v2402 = vmax.f32 %v2358, 0.0
    %v2403 = vmax.f32 %v2361, 0.0
    %v2404 = vmax.f32 %v2366, 0.0
    %v2405 = vmax.f32 %v2369, 0.0
    %v2406 = vmax.f32 %v2374, 0.0
    %v2407 = vmax.f32 %v2377, 0.0
    %v2408 = vmax.f32 %v2382, 0.0
    %v2409 = vmax.f32 %v2385, 0.0
    %v2410 = vmax.f32 %v2390, 0.0
    %v2411 = vmax.f32 %v2393, 0.0
    %v2412 = vpack.c.bf16 %v2397, %v2396
    %v2413 = vpack.c.bf16 %v2399, %v2398
    %v2414 = vpack.c.bf16 %v2401, %v2400
    %v2415 = vpack.c.bf16 %v2403, %v2402
    %v2416 = vpack.c.bf16 %v2405, %v2404
    %v2417 = vpack.c.bf16 %v2407, %v2406
    %v2418 = vpack.c.bf16 %v2409, %v2408
    %v2419 = vpack.c.bf16 %v2411, %v2410
    %s2420 = scalar_lea.vmem [#allocation7], 576
    %v2421 = vld [vmem:[%s2420] sm:$0xf]
    %v2422 = vld [vmem:[%s2420 + $0x4] sm:$0xf]
    %v2423 = vld [vmem:[%s2420 + $0x8] sm:$0xf]
    %v2424 = vld [vmem:[%s2420 + $0xc] sm:$0xf]
    %v2425 = vld [vmem:[%s2420 + $0x10] sm:$0xf]
    %v2426 = vld [vmem:[%s2420 + $0x14] sm:$0xf]
    %v2427 = vld [vmem:[%s2420 + $0x18] sm:$0xf]
    %v2428 = vld [vmem:[%s2420 + $0x1c] sm:$0xf]
    %v2429 = vld [vmem:[%s2420 + $0x20] sm:$0xf]
    %v2430 = vld [vmem:[%s2420 + $0x24] sm:$0xf]
    %v2431 = vld [vmem:[%s2420 + $0x28] sm:$0xf]
    %v2432 = vld [vmem:[%s2420 + $0x2c] sm:$0xf]
    %v2433 = vld [vmem:[%s2420 + $0x30] sm:$0xf]
    %v2434 = vld [vmem:[%s2420 + $0x34] sm:$0xf]
    %v2435 = vld [vmem:[%s2420 + $0x38] sm:$0xf]
    %v2436 = vld [vmem:[%s2420 + $0x3c] sm:$0xf]
    %s2437 = scalar_lea.vmem %s4, 9
    %v2438 = vld [vmem:[%s2437] sm:$0x1]
    %v2440 = vlaneseq
    %v2441 = vshrl.u32 %v2440, 7
    %v2442 = vsub.s32 0, %v2441
    %v2443 = vrot.slane %v2438, %v2442
    %v2461 = vunpack.c.l.b16 %v2421
    %v2462 = vunpack.c.l.b16 %v2422
    %v2463 = vunpack.c.l.b16 %v2423
    %v2464 = vunpack.c.l.b16 %v2424
    %v2465 = vunpack.c.l.b16 %v2425
    %v2466 = vunpack.c.l.b16 %v2426
    %v2467 = vunpack.c.l.b16 %v2427
    %v2468 = vunpack.c.l.b16 %v2428
    %v2469 = vunpack.c.l.b16 %v2429
    %v2470 = vunpack.c.l.b16 %v2430
    %v2471 = vunpack.c.l.b16 %v2431
    %v2472 = vunpack.c.l.b16 %v2432
    %v2473 = vunpack.c.l.b16 %v2433
    %v2474 = vunpack.c.l.b16 %v2434
    %v2475 = vunpack.c.l.b16 %v2435
    %v2476 = vunpack.c.l.b16 %v2436
    %v2477 = vpack.c.b16 %v2462, %v2461
    %v2478 = vpack.c.b16 %v2464, %v2463
    %v2479 = vpack.c.b16 %v2466, %v2465
    %v2480 = vpack.c.b16 %v2468, %v2467
    %v2481 = vpack.c.b16 %v2470, %v2469
    %v2482 = vpack.c.b16 %v2472, %v2471
    %v2483 = vpack.c.b16 %v2474, %v2473
    %v2484 = vpack.c.b16 %v2476, %v2475
    %2493 = vmatprep.subr.bf16.mxu0 0
    %2494 = vmatpush1.bf16.msra.mxu0 %v2477
    %2495 = vmatprep.subr.bf16.mxu0 0
    %2496 = vmatpush1.bf16.msra.mxu0 %v2478
    %2497 = vmatprep.subr.bf16.mxu0 0
    %2498 = vmatpush1.bf16.msra.mxu0 %v2479
    %2499 = vmatprep.subr.bf16.mxu0 0
    %2500 = vmatpush1.bf16.msra.mxu0 %v2480
    %2501 = vmatprep.subr.bf16.mxu0 0
    %2502 = vmatpush1.bf16.msra.mxu0 %v2481
    %2503 = vmatprep.subr.bf16.mxu0 0
    %2504 = vmatpush1.bf16.msra.mxu0 %v2482
    %2505 = vmatprep.subr.bf16.mxu0 0
    %2506 = vmatpush1.bf16.msra.mxu0 %v2483
    %2507 = vmatprep.subr.bf16.mxu0 0
    %2508 = vmatpush1.bf16.msra.mxu0 %v2484
    %2509 = vmatprep.subr.bf16.mxu0 0
    %2510 = vmatpush1.bf16.msra.mxu0 0
    %2511 = vmatprep.subr.bf16.mxu0 0
    %2512 = vmatpush1.bf16.msra.mxu0 0
    %2513 = vmatprep.subr.bf16.mxu0 0
    %2514 = vmatpush1.bf16.msra.mxu0 0
    %2515 = vmatprep.subr.bf16.mxu0 0
    %2516 = vmatpush1.bf16.msra.mxu0 0
    %2517 = vmatprep.subr.bf16.mxu0 0
    %2518 = vmatpush1.bf16.msra.mxu0 0
    %2519 = vmatprep.subr.bf16.mxu0 0
    %2520 = vmatpush1.bf16.msra.mxu0 0
    %2521 = vmatprep.subr.bf16.mxu0 0
    %2522 = vmatpush1.bf16.msra.mxu0 0
    %2523 = vmatprep.subr.bf16.mxu0 0
    %2524 = vmatpush1.bf16.msra.mxu0 0
    %2525 = vmatprep.mubr.bf16.mxu0 0
    %2526 = vmatmul.mubr.bf16.gmra.mrb[0].mxu0 %v2412
    %v2527 = vpop.f32.mrb[0].mxu0
    %v2528 = vadd.f32 %v2443, %v2527
    %v2529 = vpop.f32.mrb[0].mxu0
    %v2530 = vpop.f32.mrb[0].mxu0
    %v2531 = vadd.f32 %v2443, %v2530
    %v2532 = vpop.f32.mrb[0].mxu0
    %2533 = vmatprep.mubr.bf16.mxu0 0
    %2534 = vmatmul.mubr.bf16.gmra.mrb[0].mxu0 %v2413
    %v2535 = vpop.f32.mrb[0].mxu0
    %v2536 = vadd.f32 %v2443, %v2535
    %v2537 = vpop.f32.mrb[0].mxu0
    %v2538 = vpop.f32.mrb[0].mxu0
    %v2539 = vadd.f32 %v2443, %v2538
    %v2540 = vpop.f32.mrb[0].mxu0
    %2541 = vmatprep.mubr.bf16.mxu0 0
    %2542 = vmatmul.mubr.bf16.gmra.mrb[0].mxu0 %v2414
    %v2543 = vpop.f32.mrb[0].mxu0
    %v2544 = vadd.f32 %v2443, %v2543
    %v2545 = vpop.f32.mrb[0].mxu0
    %v2546 = vpop.f32.mrb[0].mxu0
    %v2547 = vadd.f32 %v2443, %v2546
    %v2548 = vpop.f32.mrb[0].mxu0
    %2549 = vmatprep.mubr.bf16.mxu0 0
    %2550 = vmatmul.mubr.bf16.gmra.mrb[0].mxu0 %v2415
    %v2551 = vpop.f32.mrb[0].mxu0
    %v2552 = vadd.f32 %v2443, %v2551
    %v2553 = vpop.f32.mrb[0].mxu0
    %v2554 = vpop.f32.mrb[0].mxu0
    %v2555 = vadd.f32 %v2443, %v2554
    %v2556 = vpop.f32.mrb[0].mxu0
    %2557 = vmatprep.mubr.bf16.mxu0 0
    %2558 = vmatmul.mubr.bf16.gmra.mrb[0].mxu0 %v2416
    %v2559 = vpop.f32.mrb[0].mxu0
    %v2560 = vadd.f32 %v2443, %v2559
    %v2561 = vpop.f32.mrb[0].mxu0
    %v2562 = vpop.f32.mrb[0].mxu0
    %v2563 = vadd.f32 %v2443, %v2562
    %v2564 = vpop.f32.mrb[0].mxu0
    %2565 = vmatprep.mubr.bf16.mxu0 0
    %2566 = vmatmul.mubr.bf16.gmra.mrb[0].mxu0 %v2417
    %v2567 = vpop.f32.mrb[0].mxu0
    %v2568 = vadd.f32 %v2443, %v2567
    %v2569 = vpop.f32.mrb[0].mxu0
    %v2570 = vpop.f32.mrb[0].mxu0
    %v2571 = vadd.f32 %v2443, %v2570
    %v2572 = vpop.f32.mrb[0].mxu0
    %2573 = vmatprep.mubr.bf16.mxu0 0
    %2574 = vmatmul.mubr.bf16.gmra.mrb[0].mxu0 %v2418
    %v2575 = vpop.f32.mrb[0].mxu0
    %v2576 = vadd.f32 %v2443, %v2575
    %v2577 = vpop.f32.mrb[0].mxu0
    %v2578 = vpop.f32.mrb[0].mxu0
    %v2579 = vadd.f32 %v2443, %v2578
    %v2580 = vpop.f32.mrb[0].mxu0
    %2581 = vmatprep.mubr.bf16.mxu0 0
    %2582 = vmatmul.mubr.bf16.gmra.mrb[0].mxu0 %v2419
    %v2583 = vpop.f32.mrb[0].mxu0
    %v2584 = vadd.f32 %v2443, %v2583
    %v2585 = vpop.f32.mrb[0].mxu0
    %v2586 = vpop.f32.mrb[0].mxu0
    %v2587 = vadd.f32 %v2443, %v2586
    %v2588 = vpop.f32.mrb[0].mxu0
    %2589 = vdwg.mxu0
    %v2590 = vmax.f32 %v2528, 0.0
    %v2591 = vmax.f32 %v2531, 0.0
    %v2592 = vmax.f32 %v2536, 0.0
    %v2593 = vmax.f32 %v2539, 0.0
    %v2594 = vmax.f32 %v2544, 0.0
    %v2595 = vmax.f32 %v2547, 0.0
    %v2596 = vmax.f32 %v2552, 0.0
    %v2597 = vmax.f32 %v2555, 0.0
    %v2598 = vmax.f32 %v2560, 0.0
    %v2599 = vmax.f32 %v2563, 0.0
    %v2600 = vmax.f32 %v2568, 0.0
    %v2601 = vmax.f32 %v2571, 0.0
    %v2602 = vmax.f32 %v2576, 0.0
    %v2603 = vmax.f32 %v2579, 0.0
    %v2604 = vmax.f32 %v2584, 0.0
    %v2605 = vmax.f32 %v2587, 0.0
    %v2606 = vld [vmem:[%s1] sm:$0x1]
    %v2607 = vpack.c.bf16 %v2591, %v2590
    %v2608 = vpack.c.bf16 %v2593, %v2592
    %v2609 = vpack.c.bf16 %v2595, %v2594
    %v2610 = vpack.c.bf16 %v2597, %v2596
    %v2611 = vpack.c.bf16 %v2599, %v2598
    %v2612 = vpack.c.bf16 %v2601, %v2600
    %v2613 = vpack.c.bf16 %v2603, %v2602
    %v2614 = vpack.c.bf16 %v2605, %v2604
    %2615 = vmatprep.subr.bf16.mxu0 0
    %2616 = vmatpush1.bf16.msra.mxu0 %v2607
    %2617 = vmatprep.subr.bf16.mxu0 0
    %2618 = vmatpush1.bf16.msra.mxu0 %v2608
    %2619 = vmatprep.subr.bf16.mxu0 0
    %2620 = vmatpush1.bf16.msra.mxu0 %v2609
    %2621 = vmatprep.subr.bf16.mxu0 0
    %2622 = vmatpush1.bf16.msra.mxu0 %v2610
    %2623 = vmatprep.subr.bf16.mxu0 0
    %2624 = vmatpush1.bf16.msra.mxu0 %v2611
    %2625 = vmatprep.subr.bf16.mxu0 0
    %2626 = vmatpush1.bf16.msra.mxu0 %v2612
    %2627 = vmatprep.subr.bf16.mxu0 0
    %2628 = vmatpush1.bf16.msra.mxu0 %v2613
    %2629 = vmatprep.subr.bf16.mxu0 0
    %2630 = vmatpush1.bf16.msra.mxu0 %v2614
    %2631 = vmatprep.subr.bf16.mxu0 0
    %2632 = vmatpush1.bf16.msra.mxu0 0
    %2633 = vmatprep.subr.bf16.mxu0 0
    %2634 = vmatpush1.bf16.msra.mxu0 0
    %2635 = vmatprep.subr.bf16.mxu0 0
    %2636 = vmatpush1.bf16.msra.mxu0 0
    %2637 = vmatprep.subr.bf16.mxu0 0
    %2638 = vmatpush1.bf16.msra.mxu0 0
    %2639 = vmatprep.subr.bf16.mxu0 0
    %2640 = vmatpush1.bf16.msra.mxu0 0
    %2641 = vmatprep.subr.bf16.mxu0 0
    %2642 = vmatpush1.bf16.msra.mxu0 0
    %2643 = vmatprep.subr.bf16.mxu0 0
    %2644 = vmatpush1.bf16.msra.mxu0 0
    %2645 = vmatprep.subr.bf16.mxu0 0
    %2646 = vmatpush1.bf16.msra.mxu0 0
    %2647 = vmatprep.mubr.bf16.mxu0 0
    %2648 = vmatmul.mubr.bf16.gmra.mrb[0].mxu0 %v2606
    %v2649 = vpop.f32.mrb[0].mxu0
    %v2650 = vadd.f32 0.0, %v2649
    %v2651 = vpop.f32.mrb[0].mxu0
    %v2652 = vpop.f32.mrb[0].mxu0
    %v2653 = vpop.f32.mrb[0].mxu0
    %2654 = vdwg.mxu0
    %v2655 = vpack.c.bf16 %v2650, %v2650
    %s2656 = scalar_lea.vmem [#allocation7], 640
    %v2657 = vld [vmem:[%s2656] sm:$0xf]
    %v2658 = vld [vmem:[%s2656 + $0x4] sm:$0xf]
    %v2659 = vld [vmem:[%s2656 + $0x8] sm:$0xf]
    %v2660 = vld [vmem:[%s2656 + $0xc] sm:$0xf]
    %v2661 = vld [vmem:[%s2656 + $0x10] sm:$0xf]
    %v2662 = vld [vmem:[%s2656 + $0x14] sm:$0xf]
    %v2663 = vld [vmem:[%s2656 + $0x18] sm:$0xf]
    %v2664 = vld [vmem:[%s2656 + $0x1c] sm:$0xf]
    %v2665 = vld [vmem:[%s2656 + $0x20] sm:$0xf]
    %v2666 = vld [vmem:[%s2656 + $0x24] sm:$0xf]
    %v2667 = vld [vmem:[%s2656 + $0x28] sm:$0xf]
    %v2668 = vld [vmem:[%s2656 + $0x2c] sm:$0xf]
    %v2669 = vld [vmem:[%s2656 + $0x30] sm:$0xf]
    %v2670 = vld [vmem:[%s2656 + $0x34] sm:$0xf]
    %v2671 = vld [vmem:[%s2656 + $0x38] sm:$0xf]
    %v2672 = vld [vmem:[%s2656 + $0x3c] sm:$0xf]
    %s2673 = scalar_lea.vmem %s4, 10
    %v2674 = vld [vmem:[%s2673] sm:$0x1]
    %v2676 = vlaneseq
    %v2677 = vshrl.u32 %v2676, 7
    %v2678 = vsub.s32 0, %v2677
    %v2679 = vrot.slane %v2674, %v2678
    %v2697 = vunpack.c.l.b16 %v2657
    %v2698 = vunpack.c.l.b16 %v2658
    %v2699 = vunpack.c.l.b16 %v2659
    %v2700 = vunpack.c.l.b16 %v2660
    %v2701 = vunpack.c.l.b16 %v2661
    %v2702 = vunpack.c.l.b16 %v2662
    %v2703 = vunpack.c.l.b16 %v2663
    %v2704 = vunpack.c.l.b16 %v2664
    %v2705 = vunpack.c.l.b16 %v2665
    %v2706 = vunpack.c.l.b16 %v2666
    %v2707 = vunpack.c.l.b16 %v2667
    %v2708 = vunpack.c.l.b16 %v2668
    %v2709 = vunpack.c.l.b16 %v2669
    %v2710 = vunpack.c.l.b16 %v2670
    %v2711 = vunpack.c.l.b16 %v2671
    %v2712 = vunpack.c.l.b16 %v2672
    %v2713 = vpack.c.b16 %v2698, %v2697
    %v2714 = vpack.c.b16 %v2700, %v2699
    %v2715 = vpack.c.b16 %v2702, %v2701
    %v2716 = vpack.c.b16 %v2704, %v2703
    %v2717 = vpack.c.b16 %v2706, %v2705
    %v2718 = vpack.c.b16 %v2708, %v2707
    %v2719 = vpack.c.b16 %v2710, %v2709
    %v2720 = vpack.c.b16 %v2712, %v2711
    %2729 = vmatprep.subr.bf16.mxu0 0
    %2730 = vmatpush1.bf16.msra.mxu0 %v2713
    %2731 = vmatprep.subr.bf16.mxu0 0
    %2732 = vmatpush1.bf16.msra.mxu0 %v2714
    %2733 = vmatprep.subr.bf16.mxu0 0
    %2734 = vmatpush1.bf16.msra.mxu0 %v2715
    %2735 = vmatprep.subr.bf16.mxu0 0
    %2736 = vmatpush1.bf16.msra.mxu0 %v2716
    %2737 = vmatprep.subr.bf16.mxu0 0
    %2738 = vmatpush1.bf16.msra.mxu0 %v2717
    %2739 = vmatprep.subr.bf16.mxu0 0
    %2740 = vmatpush1.bf16.msra.mxu0 %v2718
    %2741 = vmatprep.subr.bf16.mxu0 0
    %2742 = vmatpush1.bf16.msra.mxu0 %v2719
    %2743 = vmatprep.subr.bf16.mxu0 0
    %2744 = vmatpush1.bf16.msra.mxu0 %v2720
    %2745 = vmatprep.subr.bf16.mxu0 0
    %2746 = vmatpush1.bf16.msra.mxu0 0
    %2747 = vmatprep.subr.bf16.mxu0 0
    %2748 = vmatpush1.bf16.msra.mxu0 0
    %2749 = vmatprep.subr.bf16.mxu0 0
    %2750 = vmatpush1.bf16.msra.mxu0 0
    %2751 = vmatprep.subr.bf16.mxu0 0
    %2752 = vmatpush1.bf16.msra.mxu0 0
    %2753 = vmatprep.subr.bf16.mxu0 0
    %2754 = vmatpush1.bf16.msra.mxu0 0
    %2755 = vmatprep.subr.bf16.mxu0 0
    %2756 = vmatpush1.bf16.msra.mxu0 0
    %2757 = vmatprep.subr.bf16.mxu0 0
    %2758 = vmatpush1.bf16.msra.mxu0 0
    %2759 = vmatprep.subr.bf16.mxu0 0
    %2760 = vmatpush1.bf16.msra.mxu0 0
    %2761 = vmatprep.mubr.bf16.mxu0 0
    %2762 = vmatmul.mubr.bf16.gmra.mrb[0].mxu0 %v2655
    %v2763 = vpop.f32.mrb[0].mxu0
    %v2764 = vadd.f32 %v2679, %v2763
    %v2765 = vpop.f32.mrb[0].mxu0
    %v2766 = vpop.f32.mrb[0].mxu0
    %v2767 = vpop.f32.mrb[0].mxu0
    %2768 = vdwg.mxu0
    %v2769 = vmax.f32 %v2764, 0.0
    %v2770 = vpack.c.bf16 %v2769, %v2769
    %s2771 = scalar_lea.vmem [#allocation7], 704
    %v2772 = vld [vmem:[%s2771] sm:$0xf]
    %v2773 = vld [vmem:[%s2771 + $0x4] sm:$0xf]
    %v2774 = vld [vmem:[%s2771 + $0x8] sm:$0xf]
    %v2775 = vld [vmem:[%s2771 + $0xc] sm:$0xf]
    %v2776 = vld [vmem:[%s2771 + $0x10] sm:$0xf]
    %v2777 = vld [vmem:[%s2771 + $0x14] sm:$0xf]
    %v2778 = vld [vmem:[%s2771 + $0x18] sm:$0xf]
    %v2779 = vld [vmem:[%s2771 + $0x1c] sm:$0xf]
    %v2780 = vld [vmem:[%s2771 + $0x20] sm:$0xf]
    %v2781 = vld [vmem:[%s2771 + $0x24] sm:$0xf]
    %v2782 = vld [vmem:[%s2771 + $0x28] sm:$0xf]
    %v2783 = vld [vmem:[%s2771 + $0x2c] sm:$0xf]
    %v2784 = vld [vmem:[%s2771 + $0x30] sm:$0xf]
    %v2785 = vld [vmem:[%s2771 + $0x34] sm:$0xf]
    %v2786 = vld [vmem:[%s2771 + $0x38] sm:$0xf]
    %v2787 = vld [vmem:[%s2771 + $0x3c] sm:$0xf]
    %s2788 = scalar_lea.vmem %s4, 11
    %v2789 = vld [vmem:[%s2788] sm:$0x1]
    %v2791 = vlaneseq
    %v2792 = vshrl.u32 %v2791, 7
    %v2793 = vsub.s32 0, %v2792
    %v2794 = vrot.slane %v2789, %v2793
    %v2812 = vunpack.c.l.b16 %v2772
    %v2813 = vunpack.c.l.b16 %v2773
    %v2814 = vunpack.c.l.b16 %v2774
    %v2815 = vunpack.c.l.b16 %v2775
    %v2816 = vunpack.c.l.b16 %v2776
    %v2817 = vunpack.c.l.b16 %v2777
    %v2818 = vunpack.c.l.b16 %v2778
    %v2819 = vunpack.c.l.b16 %v2779
    %v2820 = vunpack.c.l.b16 %v2780
    %v2821 = vunpack.c.l.b16 %v2781
    %v2822 = vunpack.c.l.b16 %v2782
    %v2823 = vunpack.c.l.b16 %v2783
    %v2824 = vunpack.c.l.b16 %v2784
    %v2825 = vunpack.c.l.b16 %v2785
    %v2826 = vunpack.c.l.b16 %v2786
    %v2827 = vunpack.c.l.b16 %v2787
    %v2828 = vpack.c.b16 %v2813, %v2812
    %v2829 = vpack.c.b16 %v2815, %v2814
    %v2830 = vpack.c.b16 %v2817, %v2816
    %v2831 = vpack.c.b16 %v2819, %v2818
    %v2832 = vpack.c.b16 %v2821, %v2820
    %v2833 = vpack.c.b16 %v2823, %v2822
    %v2834 = vpack.c.b16 %v2825, %v2824
    %v2835 = vpack.c.b16 %v2827, %v2826
    %2844 = vmatprep.subr.bf16.mxu0 0
    %2845 = vmatpush1.bf16.msra.mxu0 %v2828
    %2846 = vmatprep.subr.bf16.mxu0 0
    %2847 = vmatpush1.bf16.msra.mxu0 %v2829
    %2848 = vmatprep.subr.bf16.mxu0 0
    %2849 = vmatpush1.bf16.msra.mxu0 %v2830
    %2850 = vmatprep.subr.bf16.mxu0 0
    %2851 = vmatpush1.bf16.msra.mxu0 %v2831
    %2852 = vmatprep.subr.bf16.mxu0 0
    %2853 = vmatpush1.bf16.msra.mxu0 %v2832
    %2854 = vmatprep.subr.bf16.mxu0 0
    %2855 = vmatpush1.bf16.msra.mxu0 %v2833
    %2856 = vmatprep.subr.bf16.mxu0 0
    %2857 = vmatpush1.bf16.msra.mxu0 %v2834
    %2858 = vmatprep.subr.bf16.mxu0 0
    %2859 = vmatpush1.bf16.msra.mxu0 %v2835
    %2860 = vmatprep.subr.bf16.mxu0 0
    %2861 = vmatpush1.bf16.msra.mxu0 0
    %2862 = vmatprep.subr.bf16.mxu0 0
    %2863 = vmatpush1.bf16.msra.mxu0 0
    %2864 = vmatprep.subr.bf16.mxu0 0
    %2865 = vmatpush1.bf16.msra.mxu0 0
    %2866 = vmatprep.subr.bf16.mxu0 0
    %2867 = vmatpush1.bf16.msra.mxu0 0
    %2868 = vmatprep.subr.bf16.mxu0 0
    %2869 = vmatpush1.bf16.msra.mxu0 0
    %2870 = vmatprep.subr.bf16.mxu0 0
    %2871 = vmatpush1.bf16.msra.mxu0 0
    %2872 = vmatprep.subr.bf16.mxu0 0
    %2873 = vmatpush1.bf16.msra.mxu0 0
    %2874 = vmatprep.subr.bf16.mxu0 0
    %2875 = vmatpush1.bf16.msra.mxu0 0
    %2876 = vmatprep.mubr.bf16.mxu0 0
    %2877 = vmatmul.mubr.bf16.gmra.mrb[0].mxu0 %v2770
    %v2878 = vpop.f32.mrb[0].mxu0
    %v2879 = vadd.f32 %v2794, %v2878
    %v2880 = vpop.f32.mrb[0].mxu0
    %v2881 = vpop.f32.mrb[0].mxu0
    %v2882 = vpop.f32.mrb[0].mxu0
    %2883 = vdwg.mxu0
    %vm2884 = vcmask 1041408
    %v2885 = vsel %vm2884, %v2879, -inf
    %2886 = vmax.xlane.f32.xlu0 %v2885
    %v2887 = vpop.xlane.xlu0 %2886
    %v2888 = vsub.f32 %v2879, %v2887
    %v2889 = vmul.f32 %v2888, 1.442695
    %v2890 = vpow.pop %v2889
    %v2891 = vsel %vm2884, %v2890, 0.0
    %2892 = vadd.xlane.f32.xlu0 %v2891
    %v2893 = vpop.xlane.xlu0 %2892
    %v2894 = vlog2.pop %v2893
    %v2895 = vmul.f32 %v2894, 0.6931472
    %v2896 = vsub.f32 %v2888, %v2895
    %2897 = vst [vmem:[#allocation8] sm:$0x3] %v2896
    // Predicated region
    $region34: #{tpu_custom_call.1} parent=1 // pred_check
      _
    $region35: #{tpu_custom_call.1} parent=1 // pred_check_branch
      %2899 = sbr.rel (0) target = $region37
    $region36: #{tpu_custom_call.1} parent=1 // pred_region
      %s2901 = ssub.s32 32, 32
      %2902 = vsyncadd [#allocation4], %s2901
      %s2904 = sshll.u32 [#allocation8], 4
      %s2905 = int_to_ptr.vmem [resolvable:$true] %s2904
      %2907 = dma.vmem_to_hbm [thread:$0]  %s2905, 32, %s5, [#allocation4]
    $region37: #{tpu_custom_call.1} parent=1 // pred_fallthru
      _
    // Predicated region
    $region38: #{tpu_custom_call.1} parent=1 // pred_check
      _
    $region39: #{tpu_custom_call.1} parent=1 // pred_check_branch
      %2909 = sbr.rel (0) target = $region41
    $region40: #{tpu_custom_call.1} parent=1 // pred_region
      %2910 = dma.done [#allocation4], 32
    $region41: #{tpu_custom_call.1} parent=1 // pred_fallthru
      _
    %2911 = vsyncpa [#allocation3], 1
    %2912 = vsyncpa [#allocation6], 1
    %2913 = vsyncpa [#allocation4], 1

</llo_original>
